<compile_context>
chip_gen: v6e
topology: v6e:2x2x1
jax: 0.10.0
libtpu: 0.0.40
codegen_flags: <defaults>
</compile_context>

<pallas_src>
import jax
import jax.numpy as jnp
from jax import lax
from jax.experimental import pallas as pl
from jax.experimental.pallas import tpu as pltpu


# ---------------------------------------------------------------------------
# Pallas kernel: whole seq2seq forward in one invocation (tiny model, no grid)
# ---------------------------------------------------------------------------
def seq2seq_kernel(en_ids_ref, de_ids_ref, h0_ref, c0_ref,
                   emb_enc_ref, emb_dec_ref,
                   we_ih_ref, we_hh_ref, be_ref,
                   wd_ih_ref, wd_hh_ref, bd_ref,
                   wc_ctx_ref, wc_h_ref, wout_ref,
                   out_ref, hs_ref, hht_ref):
    B, H = h0_ref.shape
    T_de = out_ref.shape[1]
    T_en = hs_ref.shape[0] // B
    V = wout_ref.shape[1]
    f32 = jnp.float32

    we_hh = we_hh_ref[...]            # (H, 4H)
    wd_hh = wd_hh_ref[...]            # (H, 4H)
    wc_h = wc_h_ref[...]              # (H, H)

    # ---- embedding lookup (one-hot matmul, exact) + input-gate precompute --
    # ids are time-major flattened columns (T*B, 1); rows of gx_* are (t*B + b)
    lane_v_en = lax.broadcasted_iota(jnp.int32, (T_en * B, V), 1)
    onehot_en = (en_ids_ref[...] == lane_v_en).astype(f32)                 # (T_en*B, V)
    emb_en = jnp.dot(onehot_en, emb_enc_ref[...], preferred_element_type=f32)
    gx_en = jnp.dot(emb_en, we_ih_ref[...], preferred_element_type=f32) + be_ref[...]

    lane_v_de = lax.broadcasted_iota(jnp.int32, (T_de * B, V), 1)
    onehot_de = (de_ids_ref[...] == lane_v_de).astype(f32)                 # (T_de*B, V)
    emb_de = jnp.dot(onehot_de, emb_dec_ref[...], preferred_element_type=f32)
    gx_de = jnp.dot(emb_de, wd_ih_ref[...], preferred_element_type=f32) + bd_ref[...]

    def cell(gx_t, h, c, w_hh):
        """One nn.LSTM cell step; input-side gates + biases precomputed."""
        gates = gx_t + jnp.dot(h, w_hh, preferred_element_type=f32)        # (B, 4H)
        i = jax.nn.sigmoid(gates[:, 0 * H:1 * H])
        f = jax.nn.sigmoid(gates[:, 1 * H:2 * H])
        g = jnp.tanh(gates[:, 2 * H:3 * H])
        o = jax.nn.sigmoid(gates[:, 3 * H:4 * H])
        c_new = f * c + i * g
        h_new = o * jnp.tanh(c_new)
        return h_new, c_new

    # ---------------- encoder LSTM (statically unrolled) --------------------
    h, c = h0_ref[...], c0_ref[...]
    for t in range(T_en):
        h, c = cell(gx_en[t * B:(t + 1) * B, :], h, c, we_hh)
        hs_ref[t * B:(t + 1) * B, :] = h                                   # lane-dense stash

    h_s = hs_ref[...]                                                      # (T_en*B, H)
    # hoist the ctx half of Wc: (attn^T h_s) Wc_ctx == attn^T (h_s Wc_ctx)
    hs_proj = jnp.dot(h_s, wc_ctx_ref[...], preferred_element_type=f32)    # (T_en*B, H)

    # static mask: column b selects rows belonging to batch b (row = t*B + b)
    row_b = lax.broadcasted_iota(jnp.int32, (T_en * B, B), 0) % B
    col_b = lax.broadcasted_iota(jnp.int32, (T_en * B, B), 1)
    amask = row_b == col_b
    neg_big = jnp.float32(-1e30)

    # ---------------- decoder LSTM + Luong dot attention --------------------
    for t in range(T_de):
        h, c = cell(gx_de[t * B:(t + 1) * B, :], h, c, wd_hh)
        wch = jnp.dot(h, wc_h, preferred_element_type=f32)                 # (B, H)
        for b in range(B):
            # scores over encoder time for batch b (flat layout + row mask)
            s = jnp.sum(h_s * h[b:b + 1, :], axis=1, keepdims=True)        # (T_en*B, 1)
            s = jnp.where(amask[:, b:b + 1], s, neg_big)
            m = jnp.max(s, axis=0, keepdims=True)
            e = jnp.exp(s - m)
            d = jnp.sum(e, axis=0, keepdims=True)
            a = e * pl.reciprocal(d, approx=True)                          # softmax weights
            ctxp = jnp.sum(a * hs_proj, axis=0, keepdims=True)             # (1, H) = ctx @ Wc_ctx
            hht_b = jnp.tanh(ctxp + wch[b:b + 1, :])
            row = b * T_de + t                                             # batch-major stash
            hht_ref[row:row + 1, :] = hht_b

    # ------------- batched vocab projection + dense output stores -----------
    logits = jnp.dot(hht_ref[...], wout_ref[...], preferred_element_type=f32)  # (B*T_de, V)
    for b in range(B):
        out_ref[b] = logits[b * T_de:(b + 1) * T_de, :]                    # (T_de, V) dense


# ---------------------------------------------------------------------------
# Wrapper: only tiny int-id reshapes and one-time weight pre-transposes remain
# ---------------------------------------------------------------------------
@jax.jit
def seq2seq_forward(en_input, de_input, hidden, hht, params):
    del hht  # only used on the input_feed=True path (not implemented)

    h0_all, c0_all = hidden                  # (L, B, H) each; L == 1
    h0, c0 = h0_all[0], c0_all[0]

    B, T_en = en_input.shape
    T_de = de_input.shape[1]
    H = h0.shape[-1]
    V = params["out_w"].shape[0]

    # time-major flattened token ids as (T*B, 1) int32 columns
    en_ids = jnp.transpose(en_input).reshape(T_en * B, 1).astype(jnp.int32)
    de_ids = jnp.transpose(de_input).reshape(T_de * B, 1).astype(jnp.int32)

    # pre-transpose weights to (in, out) so the kernel does plain x @ W
    we_ih = params["enc_w_ih"].T                         # (E, 4H)
    we_hh = params["enc_w_hh"].T                         # (H, 4H)
    be = (params["enc_b_ih"] + params["enc_b_hh"]).reshape(1, 4 * H)
    wd_ih = params["dec_w_ih"].T
    wd_hh = params["dec_w_hh"].T
    bd = (params["dec_b_ih"] + params["dec_b_hh"]).reshape(1, 4 * H)
    # Luong: hht = tanh(Wc [ctx; h])  -- assumes [ctx; h] concatenation order
    wc_ctx = params["attn_wc"][:, :H].T                  # (H, H)
    wc_h = params["attn_wc"][:, H:].T                    # (H, H)
    wout = params["out_w"].T                             # (H, V)

    vmem = pl.BlockSpec(memory_space=pltpu.MemorySpace.VMEM)

    out = pl.pallas_call(
        seq2seq_kernel,
        out_shape=jax.ShapeDtypeStruct((B, T_de, V), jnp.float32),
        in_specs=[vmem] * 15,
        out_specs=vmem,
        scratch_shapes=[pltpu.VMEM((T_en * B, H), jnp.float32),   # encoder states (flat)
                        pltpu.VMEM((B * T_de, H), jnp.float32)],  # hht, batch-major
    )(en_ids, de_ids, h0, c0,
      params["emb_enc"], params["emb_dec"],
      we_ih, we_hh, be,
      wd_ih, wd_hh, bd,
      wc_ctx, wc_h, wout)

    return out                                            # already (B, max_len, vocab)


# ---------------------------------------------------------------------------
# Deterministic parameter init (uniform(-0.1, 0.1), like init_weights())
# ---------------------------------------------------------------------------
def init_params(key, vocab, embed_dim, hidden_dim):
    keys = jax.random.split(key, 12)
    u = lambda k, shape: jax.random.uniform(k, shape, jnp.float32, -0.1, 0.1)
    H = hidden_dim
    return {
        "emb_enc": u(keys[0], (vocab, embed_dim)),
        "emb_dec": u(keys[1], (vocab, embed_dim)),
        "enc_w_ih": u(keys[2], (4 * H, embed_dim)),
        "enc_w_hh": u(keys[3], (4 * H, H)),
        "enc_b_ih": u(keys[4], (4 * H,)),
        "enc_b_hh": u(keys[5], (4 * H,)),
        "dec_w_ih": u(keys[6], (4 * H, embed_dim)),
        "dec_w_hh": u(keys[7], (4 * H, H)),
        "dec_b_ih": u(keys[8], (4 * H,)),
        "dec_b_hh": u(keys[9], (4 * H,)),
        "attn_wc": u(keys[10], (H, 2 * H)),   # Luong: hht = tanh(Wc [ctx; h])
        "out_w": u(keys[11], (vocab, H)),     # self.linear (bias=False)
    }


if __name__ == "__main__":
    # small config implied by the module; vocab chosen = 128 so the logits /
    # gate matrices are lane-dense (multiple of 128 lanes).
    B, T_en, MAX_LEN = 2, 8, 8
    VOCAB, EMBED, HIDDEN, LAYERS = 128, 32, 32, 1

    key = jax.random.PRNGKey(0)
    pkey, ek, dk = jax.random.split(key, 3)
    params = init_params(pkey, VOCAB, EMBED, HIDDEN)

    en_input = jax.random.randint(ek, (B, T_en), 0, VOCAB, dtype=jnp.int32)
    de_input = jax.random.randint(dk, (B, MAX_LEN), 0, VOCAB, dtype=jnp.int32)
    hidden = (jnp.zeros((LAYERS, B, HIDDEN), jnp.float32),
              jnp.zeros((LAYERS, B, HIDDEN), jnp.float32))
    hht = jnp.zeros((B, 1, HIDDEN), jnp.float32)

    out = seq2seq_forward(en_input, de_input, hidden, hht, params)
    out = jax.block_until_ready(out)
    assert out.shape == (B, MAX_LEN, VOCAB), out.shape
    assert out.dtype == jnp.float32
    assert bool(jnp.all(jnp.isfinite(out)))
    print("KERNEL_OK")
</pallas_src>

<mosaic_0001>
module attributes {stable_mosaic.version = 11 : i64} {
  func.func @seq2seq_kernel(%arg0: memref<16x1xi32, #tpu.memory_space<vmem>>, %arg1: memref<16x1xi32, #tpu.memory_space<vmem>>, %arg2: memref<2x32xf32, #tpu.memory_space<vmem>>, %arg3: memref<2x32xf32, #tpu.memory_space<vmem>>, %arg4: memref<128x32xf32, #tpu.memory_space<vmem>>, %arg5: memref<128x32xf32, #tpu.memory_space<vmem>>, %arg6: memref<32x128xf32, #tpu.memory_space<vmem>>, %arg7: memref<32x128xf32, #tpu.memory_space<vmem>>, %arg8: memref<1x128xf32, #tpu.memory_space<vmem>>, %arg9: memref<32x128xf32, #tpu.memory_space<vmem>>, %arg10: memref<32x128xf32, #tpu.memory_space<vmem>>, %arg11: memref<1x128xf32, #tpu.memory_space<vmem>>, %arg12: memref<32x32xf32, #tpu.memory_space<vmem>>, %arg13: memref<32x32xf32, #tpu.memory_space<vmem>>, %arg14: memref<32x128xf32, #tpu.memory_space<vmem>>, %arg15: memref<2x8x128xf32, #tpu.memory_space<vmem>>, %arg16: memref<16x32xf32, #tpu.memory_space<vmem>>, %arg17: memref<16x32xf32, #tpu.memory_space<vmem>>) attributes {dimension_semantics = [], scalar_prefetch = 0 : i64, scratch_operands = 2 : i64, tpu.core_type = #tpu.core_type<tc>} {
    %c0 = arith.constant 0 : index
    %c0_0 = arith.constant 0 : index
    %0 = vector.load %arg7[%c0, %c0_0] : memref<32x128xf32, #tpu.memory_space<vmem>>, vector<32x128xf32>
    %c0_1 = arith.constant 0 : index
    %c0_2 = arith.constant 0 : index
    %1 = vector.load %arg10[%c0_1, %c0_2] : memref<32x128xf32, #tpu.memory_space<vmem>>, vector<32x128xf32>
    %c0_3 = arith.constant 0 : index
    %c0_4 = arith.constant 0 : index
    %2 = vector.load %arg13[%c0_3, %c0_4] : memref<32x32xf32, #tpu.memory_space<vmem>>, vector<32x32xf32>
    %3 = tpu.iota {dimensions = array<i32: 1>} : vector<16x128xi32>
    %c0_5 = arith.constant 0 : index
    %c0_6 = arith.constant 0 : index
    %4 = vector.load %arg0[%c0_5, %c0_6] : memref<16x1xi32, #tpu.memory_space<vmem>>, vector<16x1xi32>
    %5 = vector.broadcast %4 : vector<16x1xi32> to vector<16x128xi32>
    %6 = arith.cmpi eq, %5, %3 : vector<16x128xi32>
    %7 = arith.extui %6 : vector<16x128xi1> to vector<16x128xi32>
    %8 = arith.sitofp %7 : vector<16x128xi32> to vector<16x128xf32>
    %c0_7 = arith.constant 0 : index
    %c0_8 = arith.constant 0 : index
    %9 = vector.load %arg4[%c0_7, %c0_8] : memref<128x32xf32, #tpu.memory_space<vmem>>, vector<128x32xf32>
    %cst = arith.constant dense<0.000000e+00> : vector<16x32xf32>
    %10 = tpu.matmul %8, %9, %cst {dimension_numbers = #tpu.dot_dimension_numbers<[1], [0], [0], [1], [0, 0, 1, 1], [], []>} : vector<16x128xf32>, vector<128x32xf32>, vector<16x32xf32> -> vector<16x32xf32>
    %c0_9 = arith.constant 0 : index
    %c0_10 = arith.constant 0 : index
    %11 = vector.load %arg6[%c0_9, %c0_10] : memref<32x128xf32, #tpu.memory_space<vmem>>, vector<32x128xf32>
    %cst_11 = arith.constant dense<0.000000e+00> : vector<16x128xf32>
    %12 = tpu.matmul %10, %11, %cst_11 {dimension_numbers = #tpu.dot_dimension_numbers<[1], [0], [0], [1], [0, 0, 1, 1], [], []>} : vector<16x32xf32>, vector<32x128xf32>, vector<16x128xf32> -> vector<16x128xf32>
    %c0_12 = arith.constant 0 : index
    %c0_13 = arith.constant 0 : index
    %13 = vector.load %arg8[%c0_12, %c0_13] : memref<1x128xf32, #tpu.memory_space<vmem>>, vector<1x128xf32>
    %14 = vector.broadcast %13 : vector<1x128xf32> to vector<16x128xf32>
    %15 = arith.addf %12, %14 : vector<16x128xf32>
    %16 = tpu.iota {dimensions = array<i32: 1>} : vector<16x128xi32>
    %c0_14 = arith.constant 0 : index
    %c0_15 = arith.constant 0 : index
    %17 = vector.load %arg1[%c0_14, %c0_15] : memref<16x1xi32, #tpu.memory_space<vmem>>, vector<16x1xi32>
    %18 = vector.broadcast %17 : vector<16x1xi32> to vector<16x128xi32>
    %19 = arith.cmpi eq, %18, %16 : vector<16x128xi32>
    %20 = arith.extui %19 : vector<16x128xi1> to vector<16x128xi32>
    %21 = arith.sitofp %20 : vector<16x128xi32> to vector<16x128xf32>
    %c0_16 = arith.constant 0 : index
    %c0_17 = arith.constant 0 : index
    %22 = vector.load %arg5[%c0_16, %c0_17] : memref<128x32xf32, #tpu.memory_space<vmem>>, vector<128x32xf32>
    %cst_18 = arith.constant dense<0.000000e+00> : vector<16x32xf32>
    %23 = tpu.matmul %21, %22, %cst_18 {dimension_numbers = #tpu.dot_dimension_numbers<[1], [0], [0], [1], [0, 0, 1, 1], [], []>} : vector<16x128xf32>, vector<128x32xf32>, vector<16x32xf32> -> vector<16x32xf32>
    %c0_19 = arith.constant 0 : index
    %c0_20 = arith.constant 0 : index
    %24 = vector.load %arg9[%c0_19, %c0_20] : memref<32x128xf32, #tpu.memory_space<vmem>>, vector<32x128xf32>
    %cst_21 = arith.constant dense<0.000000e+00> : vector<16x128xf32>
    %25 = tpu.matmul %23, %24, %cst_21 {dimension_numbers = #tpu.dot_dimension_numbers<[1], [0], [0], [1], [0, 0, 1, 1], [], []>} : vector<16x32xf32>, vector<32x128xf32>, vector<16x128xf32> -> vector<16x128xf32>
    %c0_22 = arith.constant 0 : index
    %c0_23 = arith.constant 0 : index
    %26 = vector.load %arg11[%c0_22, %c0_23] : memref<1x128xf32, #tpu.memory_space<vmem>>, vector<1x128xf32>
    %27 = vector.broadcast %26 : vector<1x128xf32> to vector<16x128xf32>
    %28 = arith.addf %25, %27 : vector<16x128xf32>
    %c0_24 = arith.constant 0 : index
    %c0_25 = arith.constant 0 : index
    %29 = vector.load %arg2[%c0_24, %c0_25] : memref<2x32xf32, #tpu.memory_space<vmem>>, vector<2x32xf32>
    %c0_26 = arith.constant 0 : index
    %c0_27 = arith.constant 0 : index
    %30 = vector.load %arg3[%c0_26, %c0_27] : memref<2x32xf32, #tpu.memory_space<vmem>>, vector<2x32xf32>
    %31 = vector.extract_strided_slice %15 {offsets = [0, 0], sizes = [2, 128], strides = [1, 1]} : vector<16x128xf32> to vector<2x128xf32>
    %cst_28 = arith.constant dense<0.000000e+00> : vector<2x128xf32>
    %32 = tpu.matmul %29, %0, %cst_28 {dimension_numbers = #tpu.dot_dimension_numbers<[1], [0], [0], [1], [0, 0, 1, 1], [], []>} : vector<2x32xf32>, vector<32x128xf32>, vector<2x128xf32> -> vector<2x128xf32>
    %33 = arith.addf %31, %32 : vector<2x128xf32>
    %34 = vector.extract_strided_slice %33 {offsets = [0, 0], sizes = [2, 32], strides = [1, 1]} : vector<2x128xf32> to vector<2x32xf32>
    %35 = arith.negf %34 : vector<2x32xf32>
    %36 = math.exp %35 : vector<2x32xf32>
    %cst_29 = arith.constant 1.000000e+00 : f32
    %37 = vector.broadcast %cst_29 : f32 to vector<2x32xf32>
    %38 = arith.addf %37, %36 : vector<2x32xf32>
    %39 = arith.divf %37, %38 : vector<2x32xf32>
    %40 = vector.extract_strided_slice %33 {offsets = [0, 32], sizes = [2, 32], strides = [1, 1]} : vector<2x128xf32> to vector<2x32xf32>
    %41 = arith.negf %40 : vector<2x32xf32>
    %42 = math.exp %41 : vector<2x32xf32>
    %cst_30 = arith.constant 1.000000e+00 : f32
    %43 = vector.broadcast %cst_30 : f32 to vector<2x32xf32>
    %44 = arith.addf %43, %42 : vector<2x32xf32>
    %45 = arith.divf %43, %44 : vector<2x32xf32>
    %46 = vector.extract_strided_slice %33 {offsets = [0, 64], sizes = [2, 32], strides = [1, 1]} : vector<2x128xf32> to vector<2x32xf32>
    %47 = math.tanh %46 : vector<2x32xf32>
    %48 = vector.extract_strided_slice %33 {offsets = [0, 96], sizes = [2, 32], strides = [1, 1]} : vector<2x128xf32> to vector<2x32xf32>
    %49 = arith.negf %48 : vector<2x32xf32>
    %50 = math.exp %49 : vector<2x32xf32>
    %cst_31 = arith.constant 1.000000e+00 : f32
    %51 = vector.broadcast %cst_31 : f32 to vector<2x32xf32>
    %52 = arith.addf %51, %50 : vector<2x32xf32>
    %53 = arith.divf %51, %52 : vector<2x32xf32>
    %54 = arith.mulf %45, %30 : vector<2x32xf32>
    %55 = arith.mulf %39, %47 : vector<2x32xf32>
    %56 = arith.addf %54, %55 : vector<2x32xf32>
    %57 = math.tanh %56 : vector<2x32xf32>
    %58 = arith.mulf %53, %57 : vector<2x32xf32>
    %c0_32 = arith.constant 0 : index
    %c0_33 = arith.constant 0 : index
    %59 = vector.load %arg16[%c0_32, %c0_33] : memref<16x32xf32, #tpu.memory_space<vmem>>, vector<2x32xf32>
    tpu.vector_store %arg16[%c0_32, %c0_33], %58 {strides = array<i32>} : memref<16x32xf32, #tpu.memory_space<vmem>>, vector<2x32xf32>,
    %60 = vector.extract_strided_slice %15 {offsets = [2, 0], sizes = [2, 128], strides = [1, 1]} : vector<16x128xf32> to vector<2x128xf32>
    %cst_34 = arith.constant dense<0.000000e+00> : vector<2x128xf32>
    %61 = tpu.matmul %58, %0, %cst_34 {dimension_numbers = #tpu.dot_dimension_numbers<[1], [0], [0], [1], [0, 0, 1, 1], [], []>} : vector<2x32xf32>, vector<32x128xf32>, vector<2x128xf32> -> vector<2x128xf32>
    %62 = arith.addf %60, %61 : vector<2x128xf32>
    %63 = vector.extract_strided_slice %62 {offsets = [0, 0], sizes = [2, 32], strides = [1, 1]} : vector<2x128xf32> to vector<2x32xf32>
    %64 = arith.negf %63 : vector<2x32xf32>
    %65 = math.exp %64 : vector<2x32xf32>
    %cst_35 = arith.constant 1.000000e+00 : f32
    %66 = vector.broadcast %cst_35 : f32 to vector<2x32xf32>
    %67 = arith.addf %66, %65 : vector<2x32xf32>
    %68 = arith.divf %66, %67 : vector<2x32xf32>
    %69 = vector.extract_strided_slice %62 {offsets = [0, 32], sizes = [2, 32], strides = [1, 1]} : vector<2x128xf32> to vector<2x32xf32>
    %70 = arith.negf %69 : vector<2x32xf32>
    %71 = math.exp %70 : vector<2x32xf32>
    %cst_36 = arith.constant 1.000000e+00 : f32
    %72 = vector.broadcast %cst_36 : f32 to vector<2x32xf32>
    %73 = arith.addf %72, %71 : vector<2x32xf32>
    %74 = arith.divf %72, %73 : vector<2x32xf32>
    %75 = vector.extract_strided_slice %62 {offsets = [0, 64], sizes = [2, 32], strides = [1, 1]} : vector<2x128xf32> to vector<2x32xf32>
    %76 = math.tanh %75 : vector<2x32xf32>
    %77 = vector.extract_strided_slice %62 {offsets = [0, 96], sizes = [2, 32], strides = [1, 1]} : vector<2x128xf32> to vector<2x32xf32>
    %78 = arith.negf %77 : vector<2x32xf32>
    %79 = math.exp %78 : vector<2x32xf32>
    %cst_37 = arith.constant 1.000000e+00 : f32
    %80 = vector.broadcast %cst_37 : f32 to vector<2x32xf32>
    %81 = arith.addf %80, %79 : vector<2x32xf32>
    %82 = arith.divf %80, %81 : vector<2x32xf32>
    %83 = arith.mulf %74, %56 : vector<2x32xf32>
    %84 = arith.mulf %68, %76 : vector<2x32xf32>
    %85 = arith.addf %83, %84 : vector<2x32xf32>
    %86 = math.tanh %85 : vector<2x32xf32>
    %87 = arith.mulf %82, %86 : vector<2x32xf32>
    %c2 = arith.constant 2 : index
    %c0_38 = arith.constant 0 : index
    %88 = vector.load %arg16[%c2, %c0_38] : memref<16x32xf32, #tpu.memory_space<vmem>>, vector<2x32xf32>
    tpu.vector_store %arg16[%c2, %c0_38], %87 {strides = array<i32>} : memref<16x32xf32, #tpu.memory_space<vmem>>, vector<2x32xf32>,
    %89 = vector.extract_strided_slice %15 {offsets = [4, 0], sizes = [2, 128], strides = [1, 1]} : vector<16x128xf32> to vector<2x128xf32>
    %cst_39 = arith.constant dense<0.000000e+00> : vector<2x128xf32>
    %90 = tpu.matmul %87, %0, %cst_39 {dimension_numbers = #tpu.dot_dimension_numbers<[1], [0], [0], [1], [0, 0, 1, 1], [], []>} : vector<2x32xf32>, vector<32x128xf32>, vector<2x128xf32> -> vector<2x128xf32>
    %91 = arith.addf %89, %90 : vector<2x128xf32>
    %92 = vector.extract_strided_slice %91 {offsets = [0, 0], sizes = [2, 32], strides = [1, 1]} : vector<2x128xf32> to vector<2x32xf32>
    %93 = arith.negf %92 : vector<2x32xf32>
    %94 = math.exp %93 : vector<2x32xf32>
    %cst_40 = arith.constant 1.000000e+00 : f32
    %95 = vector.broadcast %cst_40 : f32 to vector<2x32xf32>
    %96 = arith.addf %95, %94 : vector<2x32xf32>
    %97 = arith.divf %95, %96 : vector<2x32xf32>
    %98 = vector.extract_strided_slice %91 {offsets = [0, 32], sizes = [2, 32], strides = [1, 1]} : vector<2x128xf32> to vector<2x32xf32>
    %99 = arith.negf %98 : vector<2x32xf32>
    %100 = math.exp %99 : vector<2x32xf32>
    %cst_41 = arith.constant 1.000000e+00 : f32
    %101 = vector.broadcast %cst_41 : f32 to vector<2x32xf32>
    %102 = arith.addf %101, %100 : vector<2x32xf32>
    %103 = arith.divf %101, %102 : vector<2x32xf32>
    %104 = vector.extract_strided_slice %91 {offsets = [0, 64], sizes = [2, 32], strides = [1, 1]} : vector<2x128xf32> to vector<2x32xf32>
    %105 = math.tanh %104 : vector<2x32xf32>
    %106 = vector.extract_strided_slice %91 {offsets = [0, 96], sizes = [2, 32], strides = [1, 1]} : vector<2x128xf32> to vector<2x32xf32>
    %107 = arith.negf %106 : vector<2x32xf32>
    %108 = math.exp %107 : vector<2x32xf32>
    %cst_42 = arith.constant 1.000000e+00 : f32
    %109 = vector.broadcast %cst_42 : f32 to vector<2x32xf32>
    %110 = arith.addf %109, %108 : vector<2x32xf32>
    %111 = arith.divf %109, %110 : vector<2x32xf32>
    %112 = arith.mulf %103, %85 : vector<2x32xf32>
    %113 = arith.mulf %97, %105 : vector<2x32xf32>
    %114 = arith.addf %112, %113 : vector<2x32xf32>
    %115 = math.tanh %114 : vector<2x32xf32>
    %116 = arith.mulf %111, %115 : vector<2x32xf32>
    %c4 = arith.constant 4 : index
    %c0_43 = arith.constant 0 : index
    %117 = vector.load %arg16[%c4, %c0_43] : memref<16x32xf32, #tpu.memory_space<vmem>>, vector<2x32xf32>
    tpu.vector_store %arg16[%c4, %c0_43], %116 {strides = array<i32>} : memref<16x32xf32, #tpu.memory_space<vmem>>, vector<2x32xf32>,
    %118 = vector.extract_strided_slice %15 {offsets = [6, 0], sizes = [2, 128], strides = [1, 1]} : vector<16x128xf32> to vector<2x128xf32>
    %cst_44 = arith.constant dense<0.000000e+00> : vector<2x128xf32>
    %119 = tpu.matmul %116, %0, %cst_44 {dimension_numbers = #tpu.dot_dimension_numbers<[1], [0], [0], [1], [0, 0, 1, 1], [], []>} : vector<2x32xf32>, vector<32x128xf32>, vector<2x128xf32> -> vector<2x128xf32>
    %120 = arith.addf %118, %119 : vector<2x128xf32>
    %121 = vector.extract_strided_slice %120 {offsets = [0, 0], sizes = [2, 32], strides = [1, 1]} : vector<2x128xf32> to vector<2x32xf32>
    %122 = arith.negf %121 : vector<2x32xf32>
    %123 = math.exp %122 : vector<2x32xf32>
    %cst_45 = arith.constant 1.000000e+00 : f32
    %124 = vector.broadcast %cst_45 : f32 to vector<2x32xf32>
    %125 = arith.addf %124, %123 : vector<2x32xf32>
    %126 = arith.divf %124, %125 : vector<2x32xf32>
    %127 = vector.extract_strided_slice %120 {offsets = [0, 32], sizes = [2, 32], strides = [1, 1]} : vector<2x128xf32> to vector<2x32xf32>
    %128 = arith.negf %127 : vector<2x32xf32>
    %129 = math.exp %128 : vector<2x32xf32>
    %cst_46 = arith.constant 1.000000e+00 : f32
    %130 = vector.broadcast %cst_46 : f32 to vector<2x32xf32>
    %131 = arith.addf %130, %129 : vector<2x32xf32>
    %132 = arith.divf %130, %131 : vector<2x32xf32>
    %133 = vector.extract_strided_slice %120 {offsets = [0, 64], sizes = [2, 32], strides = [1, 1]} : vector<2x128xf32> to vector<2x32xf32>
    %134 = math.tanh %133 : vector<2x32xf32>
    %135 = vector.extract_strided_slice %120 {offsets = [0, 96], sizes = [2, 32], strides = [1, 1]} : vector<2x128xf32> to vector<2x32xf32>
    %136 = arith.negf %135 : vector<2x32xf32>
    %137 = math.exp %136 : vector<2x32xf32>
    %cst_47 = arith.constant 1.000000e+00 : f32
    %138 = vector.broadcast %cst_47 : f32 to vector<2x32xf32>
    %139 = arith.addf %138, %137 : vector<2x32xf32>
    %140 = arith.divf %138, %139 : vector<2x32xf32>
    %141 = arith.mulf %132, %114 : vector<2x32xf32>
    %142 = arith.mulf %126, %134 : vector<2x32xf32>
    %143 = arith.addf %141, %142 : vector<2x32xf32>
    %144 = math.tanh %143 : vector<2x32xf32>
    %145 = arith.mulf %140, %144 : vector<2x32xf32>
    %c6 = arith.constant 6 : index
    %c0_48 = arith.constant 0 : index
    %146 = vector.load %arg16[%c6, %c0_48] : memref<16x32xf32, #tpu.memory_space<vmem>>, vector<2x32xf32>
    tpu.vector_store %arg16[%c6, %c0_48], %145 {strides = array<i32>} : memref<16x32xf32, #tpu.memory_space<vmem>>, vector<2x32xf32>,
    %147 = vector.extract_strided_slice %15 {offsets = [8, 0], sizes = [2, 128], strides = [1, 1]} : vector<16x128xf32> to vector<2x128xf32>
    %cst_49 = arith.constant dense<0.000000e+00> : vector<2x128xf32>
    %148 = tpu.matmul %145, %0, %cst_49 {dimension_numbers = #tpu.dot_dimension_numbers<[1], [0], [0], [1], [0, 0, 1, 1], [], []>} : vector<2x32xf32>, vector<32x128xf32>, vector<2x128xf32> -> vector<2x128xf32>
    %149 = arith.addf %147, %148 : vector<2x128xf32>
    %150 = vector.extract_strided_slice %149 {offsets = [0, 0], sizes = [2, 32], strides = [1, 1]} : vector<2x128xf32> to vector<2x32xf32>
    %151 = arith.negf %150 : vector<2x32xf32>
    %152 = math.exp %151 : vector<2x32xf32>
    %cst_50 = arith.constant 1.000000e+00 : f32
    %153 = vector.broadcast %cst_50 : f32 to vector<2x32xf32>
    %154 = arith.addf %153, %152 : vector<2x32xf32>
    %155 = arith.divf %153, %154 : vector<2x32xf32>
    %156 = vector.extract_strided_slice %149 {offsets = [0, 32], sizes = [2, 32], strides = [1, 1]} : vector<2x128xf32> to vector<2x32xf32>
    %157 = arith.negf %156 : vector<2x32xf32>
    %158 = math.exp %157 : vector<2x32xf32>
    %cst_51 = arith.constant 1.000000e+00 : f32
    %159 = vector.broadcast %cst_51 : f32 to vector<2x32xf32>
    %160 = arith.addf %159, %158 : vector<2x32xf32>
    %161 = arith.divf %159, %160 : vector<2x32xf32>
    %162 = vector.extract_strided_slice %149 {offsets = [0, 64], sizes = [2, 32], strides = [1, 1]} : vector<2x128xf32> to vector<2x32xf32>
    %163 = math.tanh %162 : vector<2x32xf32>
    %164 = vector.extract_strided_slice %149 {offsets = [0, 96], sizes = [2, 32], strides = [1, 1]} : vector<2x128xf32> to vector<2x32xf32>
    %165 = arith.negf %164 : vector<2x32xf32>
    %166 = math.exp %165 : vector<2x32xf32>
    %cst_52 = arith.constant 1.000000e+00 : f32
    %167 = vector.broadcast %cst_52 : f32 to vector<2x32xf32>
    %168 = arith.addf %167, %166 : vector<2x32xf32>
    %169 = arith.divf %167, %168 : vector<2x32xf32>
    %170 = arith.mulf %161, %143 : vector<2x32xf32>
    %171 = arith.mulf %155, %163 : vector<2x32xf32>
    %172 = arith.addf %170, %171 : vector<2x32xf32>
    %173 = math.tanh %172 : vector<2x32xf32>
    %174 = arith.mulf %169, %173 : vector<2x32xf32>
    %c8 = arith.constant 8 : index
    %c0_53 = arith.constant 0 : index
    %175 = vector.load %arg16[%c8, %c0_53] : memref<16x32xf32, #tpu.memory_space<vmem>>, vector<2x32xf32>
    tpu.vector_store %arg16[%c8, %c0_53], %174 {strides = array<i32>} : memref<16x32xf32, #tpu.memory_space<vmem>>, vector<2x32xf32>,
    %176 = vector.extract_strided_slice %15 {offsets = [10, 0], sizes = [2, 128], strides = [1, 1]} : vector<16x128xf32> to vector<2x128xf32>
    %cst_54 = arith.constant dense<0.000000e+00> : vector<2x128xf32>
    %177 = tpu.matmul %174, %0, %cst_54 {dimension_numbers = #tpu.dot_dimension_numbers<[1], [0], [0], [1], [0, 0, 1, 1], [], []>} : vector<2x32xf32>, vector<32x128xf32>, vector<2x128xf32> -> vector<2x128xf32>
    %178 = arith.addf %176, %177 : vector<2x128xf32>
    %179 = vector.extract_strided_slice %178 {offsets = [0, 0], sizes = [2, 32], strides = [1, 1]} : vector<2x128xf32> to vector<2x32xf32>
    %180 = arith.negf %179 : vector<2x32xf32>
    %181 = math.exp %180 : vector<2x32xf32>
    %cst_55 = arith.constant 1.000000e+00 : f32
    %182 = vector.broadcast %cst_55 : f32 to vector<2x32xf32>
    %183 = arith.addf %182, %181 : vector<2x32xf32>
    %184 = arith.divf %182, %183 : vector<2x32xf32>
    %185 = vector.extract_strided_slice %178 {offsets = [0, 32], sizes = [2, 32], strides = [1, 1]} : vector<2x128xf32> to vector<2x32xf32>
    %186 = arith.negf %185 : vector<2x32xf32>
    %187 = math.exp %186 : vector<2x32xf32>
    %cst_56 = arith.constant 1.000000e+00 : f32
    %188 = vector.broadcast %cst_56 : f32 to vector<2x32xf32>
    %189 = arith.addf %188, %187 : vector<2x32xf32>
    %190 = arith.divf %188, %189 : vector<2x32xf32>
    %191 = vector.extract_strided_slice %178 {offsets = [0, 64], sizes = [2, 32], strides = [1, 1]} : vector<2x128xf32> to vector<2x32xf32>
    %192 = math.tanh %191 : vector<2x32xf32>
    %193 = vector.extract_strided_slice %178 {offsets = [0, 96], sizes = [2, 32], strides = [1, 1]} : vector<2x128xf32> to vector<2x32xf32>
    %194 = arith.negf %193 : vector<2x32xf32>
    %195 = math.exp %194 : vector<2x32xf32>
    %cst_57 = arith.constant 1.000000e+00 : f32
    %196 = vector.broadcast %cst_57 : f32 to vector<2x32xf32>
    %197 = arith.addf %196, %195 : vector<2x32xf32>
    %198 = arith.divf %196, %197 : vector<2x32xf32>
    %199 = arith.mulf %190, %172 : vector<2x32xf32>
    %200 = arith.mulf %184, %192 : vector<2x32xf32>
    %201 = arith.addf %199, %200 : vector<2x32xf32>
    %202 = math.tanh %201 : vector<2x32xf32>
    %203 = arith.mulf %198, %202 : vector<2x32xf32>
    %c10 = arith.constant 10 : index
    %c0_58 = arith.constant 0 : index
    %204 = vector.load %arg16[%c10, %c0_58] : memref<16x32xf32, #tpu.memory_space<vmem>>, vector<2x32xf32>
    tpu.vector_store %arg16[%c10, %c0_58], %203 {strides = array<i32>} : memref<16x32xf32, #tpu.memory_space<vmem>>, vector<2x32xf32>,
    %205 = vector.extract_strided_slice %15 {offsets = [12, 0], sizes = [2, 128], strides = [1, 1]} : vector<16x128xf32> to vector<2x128xf32>
    %cst_59 = arith.constant dense<0.000000e+00> : vector<2x128xf32>
    %206 = tpu.matmul %203, %0, %cst_59 {dimension_numbers = #tpu.dot_dimension_numbers<[1], [0], [0], [1], [0, 0, 1, 1], [], []>} : vector<2x32xf32>, vector<32x128xf32>, vector<2x128xf32> -> vector<2x128xf32>
    %207 = arith.addf %205, %206 : vector<2x128xf32>
    %208 = vector.extract_strided_slice %207 {offsets = [0, 0], sizes = [2, 32], strides = [1, 1]} : vector<2x128xf32> to vector<2x32xf32>
    %209 = arith.negf %208 : vector<2x32xf32>
    %210 = math.exp %209 : vector<2x32xf32>
    %cst_60 = arith.constant 1.000000e+00 : f32
    %211 = vector.broadcast %cst_60 : f32 to vector<2x32xf32>
    %212 = arith.addf %211, %210 : vector<2x32xf32>
    %213 = arith.divf %211, %212 : vector<2x32xf32>
    %214 = vector.extract_strided_slice %207 {offsets = [0, 32], sizes = [2, 32], strides = [1, 1]} : vector<2x128xf32> to vector<2x32xf32>
    %215 = arith.negf %214 : vector<2x32xf32>
    %216 = math.exp %215 : vector<2x32xf32>
    %cst_61 = arith.constant 1.000000e+00 : f32
    %217 = vector.broadcast %cst_61 : f32 to vector<2x32xf32>
    %218 = arith.addf %217, %216 : vector<2x32xf32>
    %219 = arith.divf %217, %218 : vector<2x32xf32>
    %220 = vector.extract_strided_slice %207 {offsets = [0, 64], sizes = [2, 32], strides = [1, 1]} : vector<2x128xf32> to vector<2x32xf32>
    %221 = math.tanh %220 : vector<2x32xf32>
    %222 = vector.extract_strided_slice %207 {offsets = [0, 96], sizes = [2, 32], strides = [1, 1]} : vector<2x128xf32> to vector<2x32xf32>
    %223 = arith.negf %222 : vector<2x32xf32>
    %224 = math.exp %223 : vector<2x32xf32>
    %cst_62 = arith.constant 1.000000e+00 : f32
    %225 = vector.broadcast %cst_62 : f32 to vector<2x32xf32>
    %226 = arith.addf %225, %224 : vector<2x32xf32>
    %227 = arith.divf %225, %226 : vector<2x32xf32>
    %228 = arith.mulf %219, %201 : vector<2x32xf32>
    %229 = arith.mulf %213, %221 : vector<2x32xf32>
    %230 = arith.addf %228, %229 : vector<2x32xf32>
    %231 = math.tanh %230 : vector<2x32xf32>
    %232 = arith.mulf %227, %231 : vector<2x32xf32>
    %c12 = arith.constant 12 : index
    %c0_63 = arith.constant 0 : index
    %233 = vector.load %arg16[%c12, %c0_63] : memref<16x32xf32, #tpu.memory_space<vmem>>, vector<2x32xf32>
    tpu.vector_store %arg16[%c12, %c0_63], %232 {strides = array<i32>} : memref<16x32xf32, #tpu.memory_space<vmem>>, vector<2x32xf32>,
    %234 = vector.extract_strided_slice %15 {offsets = [14, 0], sizes = [2, 128], strides = [1, 1]} : vector<16x128xf32> to vector<2x128xf32>
    %cst_64 = arith.constant dense<0.000000e+00> : vector<2x128xf32>
    %235 = tpu.matmul %232, %0, %cst_64 {dimension_numbers = #tpu.dot_dimension_numbers<[1], [0], [0], [1], [0, 0, 1, 1], [], []>} : vector<2x32xf32>, vector<32x128xf32>, vector<2x128xf32> -> vector<2x128xf32>
    %236 = arith.addf %234, %235 : vector<2x128xf32>
    %237 = vector.extract_strided_slice %236 {offsets = [0, 0], sizes = [2, 32], strides = [1, 1]} : vector<2x128xf32> to vector<2x32xf32>
    %238 = arith.negf %237 : vector<2x32xf32>
    %239 = math.exp %238 : vector<2x32xf32>
    %cst_65 = arith.constant 1.000000e+00 : f32
    %240 = vector.broadcast %cst_65 : f32 to vector<2x32xf32>
    %241 = arith.addf %240, %239 : vector<2x32xf32>
    %242 = arith.divf %240, %241 : vector<2x32xf32>
    %243 = vector.extract_strided_slice %236 {offsets = [0, 32], sizes = [2, 32], strides = [1, 1]} : vector<2x128xf32> to vector<2x32xf32>
    %244 = arith.negf %243 : vector<2x32xf32>
    %245 = math.exp %244 : vector<2x32xf32>
    %cst_66 = arith.constant 1.000000e+00 : f32
    %246 = vector.broadcast %cst_66 : f32 to vector<2x32xf32>
    %247 = arith.addf %246, %245 : vector<2x32xf32>
    %248 = arith.divf %246, %247 : vector<2x32xf32>
    %249 = vector.extract_strided_slice %236 {offsets = [0, 64], sizes = [2, 32], strides = [1, 1]} : vector<2x128xf32> to vector<2x32xf32>
    %250 = math.tanh %249 : vector<2x32xf32>
    %251 = vector.extract_strided_slice %236 {offsets = [0, 96], sizes = [2, 32], strides = [1, 1]} : vector<2x128xf32> to vector<2x32xf32>
    %252 = arith.negf %251 : vector<2x32xf32>
    %253 = math.exp %252 : vector<2x32xf32>
    %cst_67 = arith.constant 1.000000e+00 : f32
    %254 = vector.broadcast %cst_67 : f32 to vector<2x32xf32>
    %255 = arith.addf %254, %253 : vector<2x32xf32>
    %256 = arith.divf %254, %255 : vector<2x32xf32>
    %257 = arith.mulf %248, %230 : vector<2x32xf32>
    %258 = arith.mulf %242, %250 : vector<2x32xf32>
    %259 = arith.addf %257, %258 : vector<2x32xf32>
    %260 = math.tanh %259 : vector<2x32xf32>
    %261 = arith.mulf %256, %260 : vector<2x32xf32>
    %c14 = arith.constant 14 : index
    %c0_68 = arith.constant 0 : index
    %262 = vector.load %arg16[%c14, %c0_68] : memref<16x32xf32, #tpu.memory_space<vmem>>, vector<2x32xf32>
    tpu.vector_store %arg16[%c14, %c0_68], %261 {strides = array<i32>} : memref<16x32xf32, #tpu.memory_space<vmem>>, vector<2x32xf32>,
    %c0_69 = arith.constant 0 : index
    %c0_70 = arith.constant 0 : index
    %263 = vector.load %arg16[%c0_69, %c0_70] : memref<16x32xf32, #tpu.memory_space<vmem>>, vector<16x32xf32>
    %c0_71 = arith.constant 0 : index
    %c0_72 = arith.constant 0 : index
    %264 = vector.load %arg12[%c0_71, %c0_72] : memref<32x32xf32, #tpu.memory_space<vmem>>, vector<32x32xf32>
    %cst_73 = arith.constant dense<0.000000e+00> : vector<16x32xf32>
    %265 = tpu.matmul %263, %264, %cst_73 {dimension_numbers = #tpu.dot_dimension_numbers<[1], [0], [0], [1], [0, 0, 1, 1], [], []>} : vector<16x32xf32>, vector<32x32xf32>, vector<16x32xf32> -> vector<16x32xf32>
    %266 = tpu.iota {dimensions = array<i32: 0>} : vector<16x2xi32>
    %c2_i32 = arith.constant 2 : i32
    %c0_i32 = arith.constant 0 : i32
    %267 = arith.cmpi eq, %c2_i32, %c0_i32 : i32
    %c1_i32 = arith.constant 1 : i32
    %268 = arith.select %267, %c1_i32, %c2_i32 : i32
    %269 = vector.broadcast %268 : i32 to vector<16x2xi32>
    %270 = arith.remsi %266, %269 : vector<16x2xi32>
    %c0_i32_74 = arith.constant 0 : i32
    %271 = vector.broadcast %c0_i32_74 : i32 to vector<16x2xi32>
    %272 = arith.cmpi ne, %270, %271 : vector<16x2xi32>
    %c0_i32_75 = arith.constant 0 : i32
    %273 = vector.broadcast %c0_i32_75 : i32 to vector<16x2xi32>
    %274 = arith.cmpi slt, %270, %273 : vector<16x2xi32>
    %c0_i32_76 = arith.constant 0 : i32
    %275 = arith.cmpi slt, %268, %c0_i32_76 : i32
    %276 = vector.broadcast %275 : i1 to vector<16x2xi1>
    %277 = vector.broadcast %276 : vector<16x2xi1> to vector<16x2xi1>
    %278 = arith.xori %274, %277 : vector<16x2xi1>
    %279 = arith.andi %278, %272 : vector<16x2xi1>
    %280 = vector.broadcast %268 : i32 to vector<16x2xi32>
    %281 = arith.addi %270, %280 : vector<16x2xi32>
    %282 = arith.select %279, %281, %270 : vector<16x2xi1>, vector<16x2xi32>
    %283 = tpu.iota {dimensions = array<i32: 1>} : vector<16x2xi32>
    %284 = arith.cmpi eq, %282, %283 : vector<16x2xi32>
    %285 = vector.extract_strided_slice %28 {offsets = [0, 0], sizes = [2, 128], strides = [1, 1]} : vector<16x128xf32> to vector<2x128xf32>
    %cst_77 = arith.constant dense<0.000000e+00> : vector<2x128xf32>
    %286 = tpu.matmul %261, %1, %cst_77 {dimension_numbers = #tpu.dot_dimension_numbers<[1], [0], [0], [1], [0, 0, 1, 1], [], []>} : vector<2x32xf32>, vector<32x128xf32>, vector<2x128xf32> -> vector<2x128xf32>
    %287 = arith.addf %285, %286 : vector<2x128xf32>
    %288 = vector.extract_strided_slice %287 {offsets = [0, 0], sizes = [2, 32], strides = [1, 1]} : vector<2x128xf32> to vector<2x32xf32>
    %289 = arith.negf %288 : vector<2x32xf32>
    %290 = math.exp %289 : vector<2x32xf32>
    %cst_78 = arith.constant 1.000000e+00 : f32
    %291 = vector.broadcast %cst_78 : f32 to vector<2x32xf32>
    %292 = arith.addf %291, %290 : vector<2x32xf32>
    %293 = arith.divf %291, %292 : vector<2x32xf32>
    %294 = vector.extract_strided_slice %287 {offsets = [0, 32], sizes = [2, 32], strides = [1, 1]} : vector<2x128xf32> to vector<2x32xf32>
    %295 = arith.negf %294 : vector<2x32xf32>
    %296 = math.exp %295 : vector<2x32xf32>
    %cst_79 = arith.constant 1.000000e+00 : f32
    %297 = vector.broadcast %cst_79 : f32 to vector<2x32xf32>
    %298 = arith.addf %297, %296 : vector<2x32xf32>
    %299 = arith.divf %297, %298 : vector<2x32xf32>
    %300 = vector.extract_strided_slice %287 {offsets = [0, 64], sizes = [2, 32], strides = [1, 1]} : vector<2x128xf32> to vector<2x32xf32>
    %301 = math.tanh %300 : vector<2x32xf32>
    %302 = vector.extract_strided_slice %287 {offsets = [0, 96], sizes = [2, 32], strides = [1, 1]} : vector<2x128xf32> to vector<2x32xf32>
    %303 = arith.negf %302 : vector<2x32xf32>
    %304 = math.exp %303 : vector<2x32xf32>
    %cst_80 = arith.constant 1.000000e+00 : f32
    %305 = vector.broadcast %cst_80 : f32 to vector<2x32xf32>
    %306 = arith.addf %305, %304 : vector<2x32xf32>
    %307 = arith.divf %305, %306 : vector<2x32xf32>
    %308 = arith.mulf %299, %259 : vector<2x32xf32>
    %309 = arith.mulf %293, %301 : vector<2x32xf32>
    %310 = arith.addf %308, %309 : vector<2x32xf32>
    %311 = math.tanh %310 : vector<2x32xf32>
    %312 = arith.mulf %307, %311 : vector<2x32xf32>
    %cst_81 = arith.constant dense<0.000000e+00> : vector<2x32xf32>
    %313 = tpu.matmul %312, %2, %cst_81 {dimension_numbers = #tpu.dot_dimension_numbers<[1], [0], [0], [1], [0, 0, 1, 1], [], []>} : vector<2x32xf32>, vector<32x32xf32>, vector<2x32xf32> -> vector<2x32xf32>
    %314 = vector.extract_strided_slice %312 {offsets = [0, 0], sizes = [1, 32], strides = [1, 1]} : vector<2x32xf32> to vector<1x32xf32>
    %315 = vector.broadcast %314 : vector<1x32xf32> to vector<16x32xf32>
    %316 = arith.mulf %263, %315 : vector<16x32xf32>
    %cst_82 = arith.constant dense<0.000000e+00> : vector<16xf32>
    %317 = vector.multi_reduction <add>, %316, %cst_82 [1] : vector<16x32xf32> to vector<16xf32>
    %318 = vector.shape_cast %317 : vector<16xf32> to vector<16x1xf32>
    %319 = vector.extract_strided_slice %284 {offsets = [0, 0], sizes = [16, 1], strides = [1, 1]} : vector<16x2xi1> to vector<16x1xi1>
    %cst_83 = arith.constant -1.000000e+30 : f32
    %320 = vector.broadcast %cst_83 : f32 to vector<16x1xf32>
    %321 = arith.select %319, %318, %320 : vector<16x1xi1>, vector<16x1xf32>
    %cst_84 = arith.constant dense<0xFF800000> : vector<1xf32>
    %322 = vector.multi_reduction <maximumf>, %321, %cst_84 [0] : vector<16x1xf32> to vector<1xf32>
    %323 = vector.shape_cast %322 : vector<1xf32> to vector<1x1xf32>
    %324 = vector.broadcast %323 : vector<1x1xf32> to vector<16x1xf32>
    %325 = arith.subf %321, %324 : vector<16x1xf32>
    %326 = math.exp %325 : vector<16x1xf32>
    %cst_85 = arith.constant dense<0.000000e+00> : vector<1xf32>
    %327 = vector.multi_reduction <add>, %326, %cst_85 [0] : vector<16x1xf32> to vector<1xf32>
    %328 = vector.shape_cast %327 : vector<1xf32> to vector<1x1xf32>
    %329 = tpu.reciprocal %328 {approx = true} : vector<1x1xf32> -> vector<1x1xf32>
    %330 = vector.broadcast %329 : vector<1x1xf32> to vector<16x1xf32>
    %331 = arith.mulf %326, %330 : vector<16x1xf32>
    %332 = vector.broadcast %331 : vector<16x1xf32> to vector<16x32xf32>
    %333 = arith.mulf %332, %265 : vector<16x32xf32>
    %cst_86 = arith.constant dense<0.000000e+00> : vector<32xf32>
    %334 = vector.multi_reduction <add>, %333, %cst_86 [0] : vector<16x32xf32> to vector<32xf32>
    %335 = vector.shape_cast %334 : vector<32xf32> to vector<1x32xf32>
    %336 = vector.extract_strided_slice %313 {offsets = [0, 0], sizes = [1, 32], strides = [1, 1]} : vector<2x32xf32> to vector<1x32xf32>
    %337 = arith.addf %335, %336 : vector<1x32xf32>
    %338 = math.tanh %337 : vector<1x32xf32>
    %c0_87 = arith.constant 0 : index
    %c0_88 = arith.constant 0 : index
    %339 = vector.load %arg17[%c0_87, %c0_88] : memref<16x32xf32, #tpu.memory_space<vmem>>, vector<1x32xf32>
    tpu.vector_store %arg17[%c0_87, %c0_88], %338 {strides = array<i32>} : memref<16x32xf32, #tpu.memory_space<vmem>>, vector<1x32xf32>,
    %340 = vector.extract_strided_slice %312 {offsets = [1, 0], sizes = [1, 32], strides = [1, 1]} : vector<2x32xf32> to vector<1x32xf32>
    %341 = vector.broadcast %340 : vector<1x32xf32> to vector<16x32xf32>
    %342 = arith.mulf %263, %341 : vector<16x32xf32>
    %cst_89 = arith.constant dense<0.000000e+00> : vector<16xf32>
    %343 = vector.multi_reduction <add>, %342, %cst_89 [1] : vector<16x32xf32> to vector<16xf32>
    %344 = vector.shape_cast %343 : vector<16xf32> to vector<16x1xf32>
    %345 = vector.extract_strided_slice %284 {offsets = [0, 1], sizes = [16, 1], strides = [1, 1]} : vector<16x2xi1> to vector<16x1xi1>
    %cst_90 = arith.constant -1.000000e+30 : f32
    %346 = vector.broadcast %cst_90 : f32 to vector<16x1xf32>
    %347 = arith.select %345, %344, %346 : vector<16x1xi1>, vector<16x1xf32>
    %cst_91 = arith.constant dense<0xFF800000> : vector<1xf32>
    %348 = vector.multi_reduction <maximumf>, %347, %cst_91 [0] : vector<16x1xf32> to vector<1xf32>
    %349 = vector.shape_cast %348 : vector<1xf32> to vector<1x1xf32>
    %350 = vector.broadcast %349 : vector<1x1xf32> to vector<16x1xf32>
    %351 = arith.subf %347, %350 : vector<16x1xf32>
    %352 = math.exp %351 : vector<16x1xf32>
    %cst_92 = arith.constant dense<0.000000e+00> : vector<1xf32>
    %353 = vector.multi_reduction <add>, %352, %cst_92 [0] : vector<16x1xf32> to vector<1xf32>
    %354 = vector.shape_cast %353 : vector<1xf32> to vector<1x1xf32>
    %355 = tpu.reciprocal %354 {approx = true} : vector<1x1xf32> -> vector<1x1xf32>
    %356 = vector.broadcast %355 : vector<1x1xf32> to vector<16x1xf32>
    %357 = arith.mulf %352, %356 : vector<16x1xf32>
    %358 = vector.broadcast %357 : vector<16x1xf32> to vector<16x32xf32>
    %359 = arith.mulf %358, %265 : vector<16x32xf32>
    %cst_93 = arith.constant dense<0.000000e+00> : vector<32xf32>
    %360 = vector.multi_reduction <add>, %359, %cst_93 [0] : vector<16x32xf32> to vector<32xf32>
    %361 = vector.shape_cast %360 : vector<32xf32> to vector<1x32xf32>
    %362 = vector.extract_strided_slice %313 {offsets = [1, 0], sizes = [1, 32], strides = [1, 1]} : vector<2x32xf32> to vector<1x32xf32>
    %363 = arith.addf %361, %362 : vector<1x32xf32>
    %364 = math.tanh %363 : vector<1x32xf32>
    %c8_94 = arith.constant 8 : index
    %c0_95 = arith.constant 0 : index
    %365 = vector.load %arg17[%c8_94, %c0_95] : memref<16x32xf32, #tpu.memory_space<vmem>>, vector<1x32xf32>
    tpu.vector_store %arg17[%c8_94, %c0_95], %364 {strides = array<i32>} : memref<16x32xf32, #tpu.memory_space<vmem>>, vector<1x32xf32>,
    %366 = vector.extract_strided_slice %28 {offsets = [2, 0], sizes = [2, 128], strides = [1, 1]} : vector<16x128xf32> to vector<2x128xf32>
    %cst_96 = arith.constant dense<0.000000e+00> : vector<2x128xf32>
    %367 = tpu.matmul %312, %1, %cst_96 {dimension_numbers = #tpu.dot_dimension_numbers<[1], [0], [0], [1], [0, 0, 1, 1], [], []>} : vector<2x32xf32>, vector<32x128xf32>, vector<2x128xf32> -> vector<2x128xf32>
    %368 = arith.addf %366, %367 : vector<2x128xf32>
    %369 = vector.extract_strided_slice %368 {offsets = [0, 0], sizes = [2, 32], strides = [1, 1]} : vector<2x128xf32> to vector<2x32xf32>
    %370 = arith.negf %369 : vector<2x32xf32>
    %371 = math.exp %370 : vector<2x32xf32>
    %cst_97 = arith.constant 1.000000e+00 : f32
    %372 = vector.broadcast %cst_97 : f32 to vector<2x32xf32>
    %373 = arith.addf %372, %371 : vector<2x32xf32>
    %374 = arith.divf %372, %373 : vector<2x32xf32>
    %375 = vector.extract_strided_slice %368 {offsets = [0, 32], sizes = [2, 32], strides = [1, 1]} : vector<2x128xf32> to vector<2x32xf32>
    %376 = arith.negf %375 : vector<2x32xf32>
    %377 = math.exp %376 : vector<2x32xf32>
    %cst_98 = arith.constant 1.000000e+00 : f32
    %378 = vector.broadcast %cst_98 : f32 to vector<2x32xf32>
    %379 = arith.addf %378, %377 : vector<2x32xf32>
    %380 = arith.divf %378, %379 : vector<2x32xf32>
    %381 = vector.extract_strided_slice %368 {offsets = [0, 64], sizes = [2, 32], strides = [1, 1]} : vector<2x128xf32> to vector<2x32xf32>
    %382 = math.tanh %381 : vector<2x32xf32>
    %383 = vector.extract_strided_slice %368 {offsets = [0, 96], sizes = [2, 32], strides = [1, 1]} : vector<2x128xf32> to vector<2x32xf32>
    %384 = arith.negf %383 : vector<2x32xf32>
    %385 = math.exp %384 : vector<2x32xf32>
    %cst_99 = arith.constant 1.000000e+00 : f32
    %386 = vector.broadcast %cst_99 : f32 to vector<2x32xf32>
    %387 = arith.addf %386, %385 : vector<2x32xf32>
    %388 = arith.divf %386, %387 : vector<2x32xf32>
    %389 = arith.mulf %380, %310 : vector<2x32xf32>
    %390 = arith.mulf %374, %382 : vector<2x32xf32>
    %391 = arith.addf %389, %390 : vector<2x32xf32>
    %392 = math.tanh %391 : vector<2x32xf32>
    %393 = arith.mulf %388, %392 : vector<2x32xf32>
    %cst_100 = arith.constant dense<0.000000e+00> : vector<2x32xf32>
    %394 = tpu.matmul %393, %2, %cst_100 {dimension_numbers = #tpu.dot_dimension_numbers<[1], [0], [0], [1], [0, 0, 1, 1], [], []>} : vector<2x32xf32>, vector<32x32xf32>, vector<2x32xf32> -> vector<2x32xf32>
    %395 = vector.extract_strided_slice %393 {offsets = [0, 0], sizes = [1, 32], strides = [1, 1]} : vector<2x32xf32> to vector<1x32xf32>
    %396 = vector.broadcast %395 : vector<1x32xf32> to vector<16x32xf32>
    %397 = arith.mulf %263, %396 : vector<16x32xf32>
    %cst_101 = arith.constant dense<0.000000e+00> : vector<16xf32>
    %398 = vector.multi_reduction <add>, %397, %cst_101 [1] : vector<16x32xf32> to vector<16xf32>
    %399 = vector.shape_cast %398 : vector<16xf32> to vector<16x1xf32>
    %400 = vector.extract_strided_slice %284 {offsets = [0, 0], sizes = [16, 1], strides = [1, 1]} : vector<16x2xi1> to vector<16x1xi1>
    %cst_102 = arith.constant -1.000000e+30 : f32
    %401 = vector.broadcast %cst_102 : f32 to vector<16x1xf32>
    %402 = arith.select %400, %399, %401 : vector<16x1xi1>, vector<16x1xf32>
    %cst_103 = arith.constant dense<0xFF800000> : vector<1xf32>
    %403 = vector.multi_reduction <maximumf>, %402, %cst_103 [0] : vector<16x1xf32> to vector<1xf32>
    %404 = vector.shape_cast %403 : vector<1xf32> to vector<1x1xf32>
    %405 = vector.broadcast %404 : vector<1x1xf32> to vector<16x1xf32>
    %406 = arith.subf %402, %405 : vector<16x1xf32>
    %407 = math.exp %406 : vector<16x1xf32>
    %cst_104 = arith.constant dense<0.000000e+00> : vector<1xf32>
    %408 = vector.multi_reduction <add>, %407, %cst_104 [0] : vector<16x1xf32> to vector<1xf32>
    %409 = vector.shape_cast %408 : vector<1xf32> to vector<1x1xf32>
    %410 = tpu.reciprocal %409 {approx = true} : vector<1x1xf32> -> vector<1x1xf32>
    %411 = vector.broadcast %410 : vector<1x1xf32> to vector<16x1xf32>
    %412 = arith.mulf %407, %411 : vector<16x1xf32>
    %413 = vector.broadcast %412 : vector<16x1xf32> to vector<16x32xf32>
    %414 = arith.mulf %413, %265 : vector<16x32xf32>
    %cst_105 = arith.constant dense<0.000000e+00> : vector<32xf32>
    %415 = vector.multi_reduction <add>, %414, %cst_105 [0] : vector<16x32xf32> to vector<32xf32>
    %416 = vector.shape_cast %415 : vector<32xf32> to vector<1x32xf32>
    %417 = vector.extract_strided_slice %394 {offsets = [0, 0], sizes = [1, 32], strides = [1, 1]} : vector<2x32xf32> to vector<1x32xf32>
    %418 = arith.addf %416, %417 : vector<1x32xf32>
    %419 = math.tanh %418 : vector<1x32xf32>
    %c1 = arith.constant 1 : index
    %c0_106 = arith.constant 0 : index
    %420 = vector.load %arg17[%c1, %c0_106] : memref<16x32xf32, #tpu.memory_space<vmem>>, vector<1x32xf32>
    tpu.vector_store %arg17[%c1, %c0_106], %419 {strides = array<i32>} : memref<16x32xf32, #tpu.memory_space<vmem>>, vector<1x32xf32>,
    %421 = vector.extract_strided_slice %393 {offsets = [1, 0], sizes = [1, 32], strides = [1, 1]} : vector<2x32xf32> to vector<1x32xf32>
    %422 = vector.broadcast %421 : vector<1x32xf32> to vector<16x32xf32>
    %423 = arith.mulf %263, %422 : vector<16x32xf32>
    %cst_107 = arith.constant dense<0.000000e+00> : vector<16xf32>
    %424 = vector.multi_reduction <add>, %423, %cst_107 [1] : vector<16x32xf32> to vector<16xf32>
    %425 = vector.shape_cast %424 : vector<16xf32> to vector<16x1xf32>
    %426 = vector.extract_strided_slice %284 {offsets = [0, 1], sizes = [16, 1], strides = [1, 1]} : vector<16x2xi1> to vector<16x1xi1>
    %cst_108 = arith.constant -1.000000e+30 : f32
    %427 = vector.broadcast %cst_108 : f32 to vector<16x1xf32>
    %428 = arith.select %426, %425, %427 : vector<16x1xi1>, vector<16x1xf32>
    %cst_109 = arith.constant dense<0xFF800000> : vector<1xf32>
    %429 = vector.multi_reduction <maximumf>, %428, %cst_109 [0] : vector<16x1xf32> to vector<1xf32>
    %430 = vector.shape_cast %429 : vector<1xf32> to vector<1x1xf32>
    %431 = vector.broadcast %430 : vector<1x1xf32> to vector<16x1xf32>
    %432 = arith.subf %428, %431 : vector<16x1xf32>
    %433 = math.exp %432 : vector<16x1xf32>
    %cst_110 = arith.constant dense<0.000000e+00> : vector<1xf32>
    %434 = vector.multi_reduction <add>, %433, %cst_110 [0] : vector<16x1xf32> to vector<1xf32>
    %435 = vector.shape_cast %434 : vector<1xf32> to vector<1x1xf32>
    %436 = tpu.reciprocal %435 {approx = true} : vector<1x1xf32> -> vector<1x1xf32>
    %437 = vector.broadcast %436 : vector<1x1xf32> to vector<16x1xf32>
    %438 = arith.mulf %433, %437 : vector<16x1xf32>
    %439 = vector.broadcast %438 : vector<16x1xf32> to vector<16x32xf32>
    %440 = arith.mulf %439, %265 : vector<16x32xf32>
    %cst_111 = arith.constant dense<0.000000e+00> : vector<32xf32>
    %441 = vector.multi_reduction <add>, %440, %cst_111 [0] : vector<16x32xf32> to vector<32xf32>
    %442 = vector.shape_cast %441 : vector<32xf32> to vector<1x32xf32>
    %443 = vector.extract_strided_slice %394 {offsets = [1, 0], sizes = [1, 32], strides = [1, 1]} : vector<2x32xf32> to vector<1x32xf32>
    %444 = arith.addf %442, %443 : vector<1x32xf32>
    %445 = math.tanh %444 : vector<1x32xf32>
    %c9 = arith.constant 9 : index
    %c0_112 = arith.constant 0 : index
    %446 = vector.load %arg17[%c9, %c0_112] : memref<16x32xf32, #tpu.memory_space<vmem>>, vector<1x32xf32>
    tpu.vector_store %arg17[%c9, %c0_112], %445 {strides = array<i32>} : memref<16x32xf32, #tpu.memory_space<vmem>>, vector<1x32xf32>,
    %447 = vector.extract_strided_slice %28 {offsets = [4, 0], sizes = [2, 128], strides = [1, 1]} : vector<16x128xf32> to vector<2x128xf32>
    %cst_113 = arith.constant dense<0.000000e+00> : vector<2x128xf32>
    %448 = tpu.matmul %393, %1, %cst_113 {dimension_numbers = #tpu.dot_dimension_numbers<[1], [0], [0], [1], [0, 0, 1, 1], [], []>} : vector<2x32xf32>, vector<32x128xf32>, vector<2x128xf32> -> vector<2x128xf32>
    %449 = arith.addf %447, %448 : vector<2x128xf32>
    %450 = vector.extract_strided_slice %449 {offsets = [0, 0], sizes = [2, 32], strides = [1, 1]} : vector<2x128xf32> to vector<2x32xf32>
    %451 = arith.negf %450 : vector<2x32xf32>
    %452 = math.exp %451 : vector<2x32xf32>
    %cst_114 = arith.constant 1.000000e+00 : f32
    %453 = vector.broadcast %cst_114 : f32 to vector<2x32xf32>
    %454 = arith.addf %453, %452 : vector<2x32xf32>
    %455 = arith.divf %453, %454 : vector<2x32xf32>
    %456 = vector.extract_strided_slice %449 {offsets = [0, 32], sizes = [2, 32], strides = [1, 1]} : vector<2x128xf32> to vector<2x32xf32>
    %457 = arith.negf %456 : vector<2x32xf32>
    %458 = math.exp %457 : vector<2x32xf32>
    %cst_115 = arith.constant 1.000000e+00 : f32
    %459 = vector.broadcast %cst_115 : f32 to vector<2x32xf32>
    %460 = arith.addf %459, %458 : vector<2x32xf32>
    %461 = arith.divf %459, %460 : vector<2x32xf32>
    %462 = vector.extract_strided_slice %449 {offsets = [0, 64], sizes = [2, 32], strides = [1, 1]} : vector<2x128xf32> to vector<2x32xf32>
    %463 = math.tanh %462 : vector<2x32xf32>
    %464 = vector.extract_strided_slice %449 {offsets = [0, 96], sizes = [2, 32], strides = [1, 1]} : vector<2x128xf32> to vector<2x32xf32>
    %465 = arith.negf %464 : vector<2x32xf32>
    %466 = math.exp %465 : vector<2x32xf32>
    %cst_116 = arith.constant 1.000000e+00 : f32
    %467 = vector.broadcast %cst_116 : f32 to vector<2x32xf32>
    %468 = arith.addf %467, %466 : vector<2x32xf32>
    %469 = arith.divf %467, %468 : vector<2x32xf32>
    %470 = arith.mulf %461, %391 : vector<2x32xf32>
    %471 = arith.mulf %455, %463 : vector<2x32xf32>
    %472 = arith.addf %470, %471 : vector<2x32xf32>
    %473 = math.tanh %472 : vector<2x32xf32>
    %474 = arith.mulf %469, %473 : vector<2x32xf32>
    %cst_117 = arith.constant dense<0.000000e+00> : vector<2x32xf32>
    %475 = tpu.matmul %474, %2, %cst_117 {dimension_numbers = #tpu.dot_dimension_numbers<[1], [0], [0], [1], [0, 0, 1, 1], [], []>} : vector<2x32xf32>, vector<32x32xf32>, vector<2x32xf32> -> vector<2x32xf32>
    %476 = vector.extract_strided_slice %474 {offsets = [0, 0], sizes = [1, 32], strides = [1, 1]} : vector<2x32xf32> to vector<1x32xf32>
    %477 = vector.broadcast %476 : vector<1x32xf32> to vector<16x32xf32>
    %478 = arith.mulf %263, %477 : vector<16x32xf32>
    %cst_118 = arith.constant dense<0.000000e+00> : vector<16xf32>
    %479 = vector.multi_reduction <add>, %478, %cst_118 [1] : vector<16x32xf32> to vector<16xf32>
    %480 = vector.shape_cast %479 : vector<16xf32> to vector<16x1xf32>
    %481 = vector.extract_strided_slice %284 {offsets = [0, 0], sizes = [16, 1], strides = [1, 1]} : vector<16x2xi1> to vector<16x1xi1>
    %cst_119 = arith.constant -1.000000e+30 : f32
    %482 = vector.broadcast %cst_119 : f32 to vector<16x1xf32>
    %483 = arith.select %481, %480, %482 : vector<16x1xi1>, vector<16x1xf32>
    %cst_120 = arith.constant dense<0xFF800000> : vector<1xf32>
    %484 = vector.multi_reduction <maximumf>, %483, %cst_120 [0] : vector<16x1xf32> to vector<1xf32>
    %485 = vector.shape_cast %484 : vector<1xf32> to vector<1x1xf32>
    %486 = vector.broadcast %485 : vector<1x1xf32> to vector<16x1xf32>
    %487 = arith.subf %483, %486 : vector<16x1xf32>
    %488 = math.exp %487 : vector<16x1xf32>
    %cst_121 = arith.constant dense<0.000000e+00> : vector<1xf32>
    %489 = vector.multi_reduction <add>, %488, %cst_121 [0] : vector<16x1xf32> to vector<1xf32>
    %490 = vector.shape_cast %489 : vector<1xf32> to vector<1x1xf32>
    %491 = tpu.reciprocal %490 {approx = true} : vector<1x1xf32> -> vector<1x1xf32>
    %492 = vector.broadcast %491 : vector<1x1xf32> to vector<16x1xf32>
    %493 = arith.mulf %488, %492 : vector<16x1xf32>
    %494 = vector.broadcast %493 : vector<16x1xf32> to vector<16x32xf32>
    %495 = arith.mulf %494, %265 : vector<16x32xf32>
    %cst_122 = arith.constant dense<0.000000e+00> : vector<32xf32>
    %496 = vector.multi_reduction <add>, %495, %cst_122 [0] : vector<16x32xf32> to vector<32xf32>
    %497 = vector.shape_cast %496 : vector<32xf32> to vector<1x32xf32>
    %498 = vector.extract_strided_slice %475 {offsets = [0, 0], sizes = [1, 32], strides = [1, 1]} : vector<2x32xf32> to vector<1x32xf32>
    %499 = arith.addf %497, %498 : vector<1x32xf32>
    %500 = math.tanh %499 : vector<1x32xf32>
    %c2_123 = arith.constant 2 : index
    %c0_124 = arith.constant 0 : index
    %501 = vector.load %arg17[%c2_123, %c0_124] : memref<16x32xf32, #tpu.memory_space<vmem>>, vector<1x32xf32>
    tpu.vector_store %arg17[%c2_123, %c0_124], %500 {strides = array<i32>} : memref<16x32xf32, #tpu.memory_space<vmem>>, vector<1x32xf32>,
    %502 = vector.extract_strided_slice %474 {offsets = [1, 0], sizes = [1, 32], strides = [1, 1]} : vector<2x32xf32> to vector<1x32xf32>
    %503 = vector.broadcast %502 : vector<1x32xf32> to vector<16x32xf32>
    %504 = arith.mulf %263, %503 : vector<16x32xf32>
    %cst_125 = arith.constant dense<0.000000e+00> : vector<16xf32>
    %505 = vector.multi_reduction <add>, %504, %cst_125 [1] : vector<16x32xf32> to vector<16xf32>
    %506 = vector.shape_cast %505 : vector<16xf32> to vector<16x1xf32>
    %507 = vector.extract_strided_slice %284 {offsets = [0, 1], sizes = [16, 1], strides = [1, 1]} : vector<16x2xi1> to vector<16x1xi1>
    %cst_126 = arith.constant -1.000000e+30 : f32
    %508 = vector.broadcast %cst_126 : f32 to vector<16x1xf32>
    %509 = arith.select %507, %506, %508 : vector<16x1xi1>, vector<16x1xf32>
    %cst_127 = arith.constant dense<0xFF800000> : vector<1xf32>
    %510 = vector.multi_reduction <maximumf>, %509, %cst_127 [0] : vector<16x1xf32> to vector<1xf32>
    %511 = vector.shape_cast %510 : vector<1xf32> to vector<1x1xf32>
    %512 = vector.broadcast %511 : vector<1x1xf32> to vector<16x1xf32>
    %513 = arith.subf %509, %512 : vector<16x1xf32>
    %514 = math.exp %513 : vector<16x1xf32>
    %cst_128 = arith.constant dense<0.000000e+00> : vector<1xf32>
    %515 = vector.multi_reduction <add>, %514, %cst_128 [0] : vector<16x1xf32> to vector<1xf32>
    %516 = vector.shape_cast %515 : vector<1xf32> to vector<1x1xf32>
    %517 = tpu.reciprocal %516 {approx = true} : vector<1x1xf32> -> vector<1x1xf32>
    %518 = vector.broadcast %517 : vector<1x1xf32> to vector<16x1xf32>
    %519 = arith.mulf %514, %518 : vector<16x1xf32>
    %520 = vector.broadcast %519 : vector<16x1xf32> to vector<16x32xf32>
    %521 = arith.mulf %520, %265 : vector<16x32xf32>
    %cst_129 = arith.constant dense<0.000000e+00> : vector<32xf32>
    %522 = vector.multi_reduction <add>, %521, %cst_129 [0] : vector<16x32xf32> to vector<32xf32>
    %523 = vector.shape_cast %522 : vector<32xf32> to vector<1x32xf32>
    %524 = vector.extract_strided_slice %475 {offsets = [1, 0], sizes = [1, 32], strides = [1, 1]} : vector<2x32xf32> to vector<1x32xf32>
    %525 = arith.addf %523, %524 : vector<1x32xf32>
    %526 = math.tanh %525 : vector<1x32xf32>
    %c10_130 = arith.constant 10 : index
    %c0_131 = arith.constant 0 : index
    %527 = vector.load %arg17[%c10_130, %c0_131] : memref<16x32xf32, #tpu.memory_space<vmem>>, vector<1x32xf32>
    tpu.vector_store %arg17[%c10_130, %c0_131], %526 {strides = array<i32>} : memref<16x32xf32, #tpu.memory_space<vmem>>, vector<1x32xf32>,
    %528 = vector.extract_strided_slice %28 {offsets = [6, 0], sizes = [2, 128], strides = [1, 1]} : vector<16x128xf32> to vector<2x128xf32>
    %cst_132 = arith.constant dense<0.000000e+00> : vector<2x128xf32>
    %529 = tpu.matmul %474, %1, %cst_132 {dimension_numbers = #tpu.dot_dimension_numbers<[1], [0], [0], [1], [0, 0, 1, 1], [], []>} : vector<2x32xf32>, vector<32x128xf32>, vector<2x128xf32> -> vector<2x128xf32>
    %530 = arith.addf %528, %529 : vector<2x128xf32>
    %531 = vector.extract_strided_slice %530 {offsets = [0, 0], sizes = [2, 32], strides = [1, 1]} : vector<2x128xf32> to vector<2x32xf32>
    %532 = arith.negf %531 : vector<2x32xf32>
    %533 = math.exp %532 : vector<2x32xf32>
    %cst_133 = arith.constant 1.000000e+00 : f32
    %534 = vector.broadcast %cst_133 : f32 to vector<2x32xf32>
    %535 = arith.addf %534, %533 : vector<2x32xf32>
    %536 = arith.divf %534, %535 : vector<2x32xf32>
    %537 = vector.extract_strided_slice %530 {offsets = [0, 32], sizes = [2, 32], strides = [1, 1]} : vector<2x128xf32> to vector<2x32xf32>
    %538 = arith.negf %537 : vector<2x32xf32>
    %539 = math.exp %538 : vector<2x32xf32>
    %cst_134 = arith.constant 1.000000e+00 : f32
    %540 = vector.broadcast %cst_134 : f32 to vector<2x32xf32>
    %541 = arith.addf %540, %539 : vector<2x32xf32>
    %542 = arith.divf %540, %541 : vector<2x32xf32>
    %543 = vector.extract_strided_slice %530 {offsets = [0, 64], sizes = [2, 32], strides = [1, 1]} : vector<2x128xf32> to vector<2x32xf32>
    %544 = math.tanh %543 : vector<2x32xf32>
    %545 = vector.extract_strided_slice %530 {offsets = [0, 96], sizes = [2, 32], strides = [1, 1]} : vector<2x128xf32> to vector<2x32xf32>
    %546 = arith.negf %545 : vector<2x32xf32>
    %547 = math.exp %546 : vector<2x32xf32>
    %cst_135 = arith.constant 1.000000e+00 : f32
    %548 = vector.broadcast %cst_135 : f32 to vector<2x32xf32>
    %549 = arith.addf %548, %547 : vector<2x32xf32>
    %550 = arith.divf %548, %549 : vector<2x32xf32>
    %551 = arith.mulf %542, %472 : vector<2x32xf32>
    %552 = arith.mulf %536, %544 : vector<2x32xf32>
    %553 = arith.addf %551, %552 : vector<2x32xf32>
    %554 = math.tanh %553 : vector<2x32xf32>
    %555 = arith.mulf %550, %554 : vector<2x32xf32>
    %cst_136 = arith.constant dense<0.000000e+00> : vector<2x32xf32>
    %556 = tpu.matmul %555, %2, %cst_136 {dimension_numbers = #tpu.dot_dimension_numbers<[1], [0], [0], [1], [0, 0, 1, 1], [], []>} : vector<2x32xf32>, vector<32x32xf32>, vector<2x32xf32> -> vector<2x32xf32>
    %557 = vector.extract_strided_slice %555 {offsets = [0, 0], sizes = [1, 32], strides = [1, 1]} : vector<2x32xf32> to vector<1x32xf32>
    %558 = vector.broadcast %557 : vector<1x32xf32> to vector<16x32xf32>
    %559 = arith.mulf %263, %558 : vector<16x32xf32>
    %cst_137 = arith.constant dense<0.000000e+00> : vector<16xf32>
    %560 = vector.multi_reduction <add>, %559, %cst_137 [1] : vector<16x32xf32> to vector<16xf32>
    %561 = vector.shape_cast %560 : vector<16xf32> to vector<16x1xf32>
    %562 = vector.extract_strided_slice %284 {offsets = [0, 0], sizes = [16, 1], strides = [1, 1]} : vector<16x2xi1> to vector<16x1xi1>
    %cst_138 = arith.constant -1.000000e+30 : f32
    %563 = vector.broadcast %cst_138 : f32 to vector<16x1xf32>
    %564 = arith.select %562, %561, %563 : vector<16x1xi1>, vector<16x1xf32>
    %cst_139 = arith.constant dense<0xFF800000> : vector<1xf32>
    %565 = vector.multi_reduction <maximumf>, %564, %cst_139 [0] : vector<16x1xf32> to vector<1xf32>
    %566 = vector.shape_cast %565 : vector<1xf32> to vector<1x1xf32>
    %567 = vector.broadcast %566 : vector<1x1xf32> to vector<16x1xf32>
    %568 = arith.subf %564, %567 : vector<16x1xf32>
    %569 = math.exp %568 : vector<16x1xf32>
    %cst_140 = arith.constant dense<0.000000e+00> : vector<1xf32>
    %570 = vector.multi_reduction <add>, %569, %cst_140 [0] : vector<16x1xf32> to vector<1xf32>
    %571 = vector.shape_cast %570 : vector<1xf32> to vector<1x1xf32>
    %572 = tpu.reciprocal %571 {approx = true} : vector<1x1xf32> -> vector<1x1xf32>
    %573 = vector.broadcast %572 : vector<1x1xf32> to vector<16x1xf32>
    %574 = arith.mulf %569, %573 : vector<16x1xf32>
    %575 = vector.broadcast %574 : vector<16x1xf32> to vector<16x32xf32>
    %576 = arith.mulf %575, %265 : vector<16x32xf32>
    %cst_141 = arith.constant dense<0.000000e+00> : vector<32xf32>
    %577 = vector.multi_reduction <add>, %576, %cst_141 [0] : vector<16x32xf32> to vector<32xf32>
    %578 = vector.shape_cast %577 : vector<32xf32> to vector<1x32xf32>
    %579 = vector.extract_strided_slice %556 {offsets = [0, 0], sizes = [1, 32], strides = [1, 1]} : vector<2x32xf32> to vector<1x32xf32>
    %580 = arith.addf %578, %579 : vector<1x32xf32>
    %581 = math.tanh %580 : vector<1x32xf32>
    %c3 = arith.constant 3 : index
    %c0_142 = arith.constant 0 : index
    %582 = vector.load %arg17[%c3, %c0_142] : memref<16x32xf32, #tpu.memory_space<vmem>>, vector<1x32xf32>
    tpu.vector_store %arg17[%c3, %c0_142], %581 {strides = array<i32>} : memref<16x32xf32, #tpu.memory_space<vmem>>, vector<1x32xf32>,
    %583 = vector.extract_strided_slice %555 {offsets = [1, 0], sizes = [1, 32], strides = [1, 1]} : vector<2x32xf32> to vector<1x32xf32>
    %584 = vector.broadcast %583 : vector<1x32xf32> to vector<16x32xf32>
    %585 = arith.mulf %263, %584 : vector<16x32xf32>
    %cst_143 = arith.constant dense<0.000000e+00> : vector<16xf32>
    %586 = vector.multi_reduction <add>, %585, %cst_143 [1] : vector<16x32xf32> to vector<16xf32>
    %587 = vector.shape_cast %586 : vector<16xf32> to vector<16x1xf32>
    %588 = vector.extract_strided_slice %284 {offsets = [0, 1], sizes = [16, 1], strides = [1, 1]} : vector<16x2xi1> to vector<16x1xi1>
    %cst_144 = arith.constant -1.000000e+30 : f32
    %589 = vector.broadcast %cst_144 : f32 to vector<16x1xf32>
    %590 = arith.select %588, %587, %589 : vector<16x1xi1>, vector<16x1xf32>
    %cst_145 = arith.constant dense<0xFF800000> : vector<1xf32>
    %591 = vector.multi_reduction <maximumf>, %590, %cst_145 [0] : vector<16x1xf32> to vector<1xf32>
    %592 = vector.shape_cast %591 : vector<1xf32> to vector<1x1xf32>
    %593 = vector.broadcast %592 : vector<1x1xf32> to vector<16x1xf32>
    %594 = arith.subf %590, %593 : vector<16x1xf32>
    %595 = math.exp %594 : vector<16x1xf32>
    %cst_146 = arith.constant dense<0.000000e+00> : vector<1xf32>
    %596 = vector.multi_reduction <add>, %595, %cst_146 [0] : vector<16x1xf32> to vector<1xf32>
    %597 = vector.shape_cast %596 : vector<1xf32> to vector<1x1xf32>
    %598 = tpu.reciprocal %597 {approx = true} : vector<1x1xf32> -> vector<1x1xf32>
    %599 = vector.broadcast %598 : vector<1x1xf32> to vector<16x1xf32>
    %600 = arith.mulf %595, %599 : vector<16x1xf32>
    %601 = vector.broadcast %600 : vector<16x1xf32> to vector<16x32xf32>
    %602 = arith.mulf %601, %265 : vector<16x32xf32>
    %cst_147 = arith.constant dense<0.000000e+00> : vector<32xf32>
    %603 = vector.multi_reduction <add>, %602, %cst_147 [0] : vector<16x32xf32> to vector<32xf32>
    %604 = vector.shape_cast %603 : vector<32xf32> to vector<1x32xf32>
    %605 = vector.extract_strided_slice %556 {offsets = [1, 0], sizes = [1, 32], strides = [1, 1]} : vector<2x32xf32> to vector<1x32xf32>
    %606 = arith.addf %604, %605 : vector<1x32xf32>
    %607 = math.tanh %606 : vector<1x32xf32>
    %c11 = arith.constant 11 : index
    %c0_148 = arith.constant 0 : index
    %608 = vector.load %arg17[%c11, %c0_148] : memref<16x32xf32, #tpu.memory_space<vmem>>, vector<1x32xf32>
    tpu.vector_store %arg17[%c11, %c0_148], %607 {strides = array<i32>} : memref<16x32xf32, #tpu.memory_space<vmem>>, vector<1x32xf32>,
    %609 = vector.extract_strided_slice %28 {offsets = [8, 0], sizes = [2, 128], strides = [1, 1]} : vector<16x128xf32> to vector<2x128xf32>
    %cst_149 = arith.constant dense<0.000000e+00> : vector<2x128xf32>
    %610 = tpu.matmul %555, %1, %cst_149 {dimension_numbers = #tpu.dot_dimension_numbers<[1], [0], [0], [1], [0, 0, 1, 1], [], []>} : vector<2x32xf32>, vector<32x128xf32>, vector<2x128xf32> -> vector<2x128xf32>
    %611 = arith.addf %609, %610 : vector<2x128xf32>
    %612 = vector.extract_strided_slice %611 {offsets = [0, 0], sizes = [2, 32], strides = [1, 1]} : vector<2x128xf32> to vector<2x32xf32>
    %613 = arith.negf %612 : vector<2x32xf32>
    %614 = math.exp %613 : vector<2x32xf32>
    %cst_150 = arith.constant 1.000000e+00 : f32
    %615 = vector.broadcast %cst_150 : f32 to vector<2x32xf32>
    %616 = arith.addf %615, %614 : vector<2x32xf32>
    %617 = arith.divf %615, %616 : vector<2x32xf32>
    %618 = vector.extract_strided_slice %611 {offsets = [0, 32], sizes = [2, 32], strides = [1, 1]} : vector<2x128xf32> to vector<2x32xf32>
    %619 = arith.negf %618 : vector<2x32xf32>
    %620 = math.exp %619 : vector<2x32xf32>
    %cst_151 = arith.constant 1.000000e+00 : f32
    %621 = vector.broadcast %cst_151 : f32 to vector<2x32xf32>
    %622 = arith.addf %621, %620 : vector<2x32xf32>
    %623 = arith.divf %621, %622 : vector<2x32xf32>
    %624 = vector.extract_strided_slice %611 {offsets = [0, 64], sizes = [2, 32], strides = [1, 1]} : vector<2x128xf32> to vector<2x32xf32>
    %625 = math.tanh %624 : vector<2x32xf32>
    %626 = vector.extract_strided_slice %611 {offsets = [0, 96], sizes = [2, 32], strides = [1, 1]} : vector<2x128xf32> to vector<2x32xf32>
    %627 = arith.negf %626 : vector<2x32xf32>
    %628 = math.exp %627 : vector<2x32xf32>
    %cst_152 = arith.constant 1.000000e+00 : f32
    %629 = vector.broadcast %cst_152 : f32 to vector<2x32xf32>
    %630 = arith.addf %629, %628 : vector<2x32xf32>
    %631 = arith.divf %629, %630 : vector<2x32xf32>
    %632 = arith.mulf %623, %553 : vector<2x32xf32>
    %633 = arith.mulf %617, %625 : vector<2x32xf32>
    %634 = arith.addf %632, %633 : vector<2x32xf32>
    %635 = math.tanh %634 : vector<2x32xf32>
    %636 = arith.mulf %631, %635 : vector<2x32xf32>
    %cst_153 = arith.constant dense<0.000000e+00> : vector<2x32xf32>
    %637 = tpu.matmul %636, %2, %cst_153 {dimension_numbers = #tpu.dot_dimension_numbers<[1], [0], [0], [1], [0, 0, 1, 1], [], []>} : vector<2x32xf32>, vector<32x32xf32>, vector<2x32xf32> -> vector<2x32xf32>
    %638 = vector.extract_strided_slice %636 {offsets = [0, 0], sizes = [1, 32], strides = [1, 1]} : vector<2x32xf32> to vector<1x32xf32>
    %639 = vector.broadcast %638 : vector<1x32xf32> to vector<16x32xf32>
    %640 = arith.mulf %263, %639 : vector<16x32xf32>
    %cst_154 = arith.constant dense<0.000000e+00> : vector<16xf32>
    %641 = vector.multi_reduction <add>, %640, %cst_154 [1] : vector<16x32xf32> to vector<16xf32>
    %642 = vector.shape_cast %641 : vector<16xf32> to vector<16x1xf32>
    %643 = vector.extract_strided_slice %284 {offsets = [0, 0], sizes = [16, 1], strides = [1, 1]} : vector<16x2xi1> to vector<16x1xi1>
    %cst_155 = arith.constant -1.000000e+30 : f32
    %644 = vector.broadcast %cst_155 : f32 to vector<16x1xf32>
    %645 = arith.select %643, %642, %644 : vector<16x1xi1>, vector<16x1xf32>
    %cst_156 = arith.constant dense<0xFF800000> : vector<1xf32>
    %646 = vector.multi_reduction <maximumf>, %645, %cst_156 [0] : vector<16x1xf32> to vector<1xf32>
    %647 = vector.shape_cast %646 : vector<1xf32> to vector<1x1xf32>
    %648 = vector.broadcast %647 : vector<1x1xf32> to vector<16x1xf32>
    %649 = arith.subf %645, %648 : vector<16x1xf32>
    %650 = math.exp %649 : vector<16x1xf32>
    %cst_157 = arith.constant dense<0.000000e+00> : vector<1xf32>
    %651 = vector.multi_reduction <add>, %650, %cst_157 [0] : vector<16x1xf32> to vector<1xf32>
    %652 = vector.shape_cast %651 : vector<1xf32> to vector<1x1xf32>
    %653 = tpu.reciprocal %652 {approx = true} : vector<1x1xf32> -> vector<1x1xf32>
    %654 = vector.broadcast %653 : vector<1x1xf32> to vector<16x1xf32>
    %655 = arith.mulf %650, %654 : vector<16x1xf32>
    %656 = vector.broadcast %655 : vector<16x1xf32> to vector<16x32xf32>
    %657 = arith.mulf %656, %265 : vector<16x32xf32>
    %cst_158 = arith.constant dense<0.000000e+00> : vector<32xf32>
    %658 = vector.multi_reduction <add>, %657, %cst_158 [0] : vector<16x32xf32> to vector<32xf32>
    %659 = vector.shape_cast %658 : vector<32xf32> to vector<1x32xf32>
    %660 = vector.extract_strided_slice %637 {offsets = [0, 0], sizes = [1, 32], strides = [1, 1]} : vector<2x32xf32> to vector<1x32xf32>
    %661 = arith.addf %659, %660 : vector<1x32xf32>
    %662 = math.tanh %661 : vector<1x32xf32>
    %c4_159 = arith.constant 4 : index
    %c0_160 = arith.constant 0 : index
    %663 = vector.load %arg17[%c4_159, %c0_160] : memref<16x32xf32, #tpu.memory_space<vmem>>, vector<1x32xf32>
    tpu.vector_store %arg17[%c4_159, %c0_160], %662 {strides = array<i32>} : memref<16x32xf32, #tpu.memory_space<vmem>>, vector<1x32xf32>,
    %664 = vector.extract_strided_slice %636 {offsets = [1, 0], sizes = [1, 32], strides = [1, 1]} : vector<2x32xf32> to vector<1x32xf32>
    %665 = vector.broadcast %664 : vector<1x32xf32> to vector<16x32xf32>
    %666 = arith.mulf %263, %665 : vector<16x32xf32>
    %cst_161 = arith.constant dense<0.000000e+00> : vector<16xf32>
    %667 = vector.multi_reduction <add>, %666, %cst_161 [1] : vector<16x32xf32> to vector<16xf32>
    %668 = vector.shape_cast %667 : vector<16xf32> to vector<16x1xf32>
    %669 = vector.extract_strided_slice %284 {offsets = [0, 1], sizes = [16, 1], strides = [1, 1]} : vector<16x2xi1> to vector<16x1xi1>
    %cst_162 = arith.constant -1.000000e+30 : f32
    %670 = vector.broadcast %cst_162 : f32 to vector<16x1xf32>
    %671 = arith.select %669, %668, %670 : vector<16x1xi1>, vector<16x1xf32>
    %cst_163 = arith.constant dense<0xFF800000> : vector<1xf32>
    %672 = vector.multi_reduction <maximumf>, %671, %cst_163 [0] : vector<16x1xf32> to vector<1xf32>
    %673 = vector.shape_cast %672 : vector<1xf32> to vector<1x1xf32>
    %674 = vector.broadcast %673 : vector<1x1xf32> to vector<16x1xf32>
    %675 = arith.subf %671, %674 : vector<16x1xf32>
    %676 = math.exp %675 : vector<16x1xf32>
    %cst_164 = arith.constant dense<0.000000e+00> : vector<1xf32>
    %677 = vector.multi_reduction <add>, %676, %cst_164 [0] : vector<16x1xf32> to vector<1xf32>
    %678 = vector.shape_cast %677 : vector<1xf32> to vector<1x1xf32>
    %679 = tpu.reciprocal %678 {approx = true} : vector<1x1xf32> -> vector<1x1xf32>
    %680 = vector.broadcast %679 : vector<1x1xf32> to vector<16x1xf32>
    %681 = arith.mulf %676, %680 : vector<16x1xf32>
    %682 = vector.broadcast %681 : vector<16x1xf32> to vector<16x32xf32>
    %683 = arith.mulf %682, %265 : vector<16x32xf32>
    %cst_165 = arith.constant dense<0.000000e+00> : vector<32xf32>
    %684 = vector.multi_reduction <add>, %683, %cst_165 [0] : vector<16x32xf32> to vector<32xf32>
    %685 = vector.shape_cast %684 : vector<32xf32> to vector<1x32xf32>
    %686 = vector.extract_strided_slice %637 {offsets = [1, 0], sizes = [1, 32], strides = [1, 1]} : vector<2x32xf32> to vector<1x32xf32>
    %687 = arith.addf %685, %686 : vector<1x32xf32>
    %688 = math.tanh %687 : vector<1x32xf32>
    %c12_166 = arith.constant 12 : index
    %c0_167 = arith.constant 0 : index
    %689 = vector.load %arg17[%c12_166, %c0_167] : memref<16x32xf32, #tpu.memory_space<vmem>>, vector<1x32xf32>
    tpu.vector_store %arg17[%c12_166, %c0_167], %688 {strides = array<i32>} : memref<16x32xf32, #tpu.memory_space<vmem>>, vector<1x32xf32>,
    %690 = vector.extract_strided_slice %28 {offsets = [10, 0], sizes = [2, 128], strides = [1, 1]} : vector<16x128xf32> to vector<2x128xf32>
    %cst_168 = arith.constant dense<0.000000e+00> : vector<2x128xf32>
    %691 = tpu.matmul %636, %1, %cst_168 {dimension_numbers = #tpu.dot_dimension_numbers<[1], [0], [0], [1], [0, 0, 1, 1], [], []>} : vector<2x32xf32>, vector<32x128xf32>, vector<2x128xf32> -> vector<2x128xf32>
    %692 = arith.addf %690, %691 : vector<2x128xf32>
    %693 = vector.extract_strided_slice %692 {offsets = [0, 0], sizes = [2, 32], strides = [1, 1]} : vector<2x128xf32> to vector<2x32xf32>
    %694 = arith.negf %693 : vector<2x32xf32>
    %695 = math.exp %694 : vector<2x32xf32>
    %cst_169 = arith.constant 1.000000e+00 : f32
    %696 = vector.broadcast %cst_169 : f32 to vector<2x32xf32>
    %697 = arith.addf %696, %695 : vector<2x32xf32>
    %698 = arith.divf %696, %697 : vector<2x32xf32>
    %699 = vector.extract_strided_slice %692 {offsets = [0, 32], sizes = [2, 32], strides = [1, 1]} : vector<2x128xf32> to vector<2x32xf32>
    %700 = arith.negf %699 : vector<2x32xf32>
    %701 = math.exp %700 : vector<2x32xf32>
    %cst_170 = arith.constant 1.000000e+00 : f32
    %702 = vector.broadcast %cst_170 : f32 to vector<2x32xf32>
    %703 = arith.addf %702, %701 : vector<2x32xf32>
    %704 = arith.divf %702, %703 : vector<2x32xf32>
    %705 = vector.extract_strided_slice %692 {offsets = [0, 64], sizes = [2, 32], strides = [1, 1]} : vector<2x128xf32> to vector<2x32xf32>
    %706 = math.tanh %705 : vector<2x32xf32>
    %707 = vector.extract_strided_slice %692 {offsets = [0, 96], sizes = [2, 32], strides = [1, 1]} : vector<2x128xf32> to vector<2x32xf32>
    %708 = arith.negf %707 : vector<2x32xf32>
    %709 = math.exp %708 : vector<2x32xf32>
    %cst_171 = arith.constant 1.000000e+00 : f32
    %710 = vector.broadcast %cst_171 : f32 to vector<2x32xf32>
    %711 = arith.addf %710, %709 : vector<2x32xf32>
    %712 = arith.divf %710, %711 : vector<2x32xf32>
    %713 = arith.mulf %704, %634 : vector<2x32xf32>
    %714 = arith.mulf %698, %706 : vector<2x32xf32>
    %715 = arith.addf %713, %714 : vector<2x32xf32>
    %716 = math.tanh %715 : vector<2x32xf32>
    %717 = arith.mulf %712, %716 : vector<2x32xf32>
    %cst_172 = arith.constant dense<0.000000e+00> : vector<2x32xf32>
    %718 = tpu.matmul %717, %2, %cst_172 {dimension_numbers = #tpu.dot_dimension_numbers<[1], [0], [0], [1], [0, 0, 1, 1], [], []>} : vector<2x32xf32>, vector<32x32xf32>, vector<2x32xf32> -> vector<2x32xf32>
    %719 = vector.extract_strided_slice %717 {offsets = [0, 0], sizes = [1, 32], strides = [1, 1]} : vector<2x32xf32> to vector<1x32xf32>
    %720 = vector.broadcast %719 : vector<1x32xf32> to vector<16x32xf32>
    %721 = arith.mulf %263, %720 : vector<16x32xf32>
    %cst_173 = arith.constant dense<0.000000e+00> : vector<16xf32>
    %722 = vector.multi_reduction <add>, %721, %cst_173 [1] : vector<16x32xf32> to vector<16xf32>
    %723 = vector.shape_cast %722 : vector<16xf32> to vector<16x1xf32>
    %724 = vector.extract_strided_slice %284 {offsets = [0, 0], sizes = [16, 1], strides = [1, 1]} : vector<16x2xi1> to vector<16x1xi1>
    %cst_174 = arith.constant -1.000000e+30 : f32
    %725 = vector.broadcast %cst_174 : f32 to vector<16x1xf32>
    %726 = arith.select %724, %723, %725 : vector<16x1xi1>, vector<16x1xf32>
    %cst_175 = arith.constant dense<0xFF800000> : vector<1xf32>
    %727 = vector.multi_reduction <maximumf>, %726, %cst_175 [0] : vector<16x1xf32> to vector<1xf32>
    %728 = vector.shape_cast %727 : vector<1xf32> to vector<1x1xf32>
    %729 = vector.broadcast %728 : vector<1x1xf32> to vector<16x1xf32>
    %730 = arith.subf %726, %729 : vector<16x1xf32>
    %731 = math.exp %730 : vector<16x1xf32>
    %cst_176 = arith.constant dense<0.000000e+00> : vector<1xf32>
    %732 = vector.multi_reduction <add>, %731, %cst_176 [0] : vector<16x1xf32> to vector<1xf32>
    %733 = vector.shape_cast %732 : vector<1xf32> to vector<1x1xf32>
    %734 = tpu.reciprocal %733 {approx = true} : vector<1x1xf32> -> vector<1x1xf32>
    %735 = vector.broadcast %734 : vector<1x1xf32> to vector<16x1xf32>
    %736 = arith.mulf %731, %735 : vector<16x1xf32>
    %737 = vector.broadcast %736 : vector<16x1xf32> to vector<16x32xf32>
    %738 = arith.mulf %737, %265 : vector<16x32xf32>
    %cst_177 = arith.constant dense<0.000000e+00> : vector<32xf32>
    %739 = vector.multi_reduction <add>, %738, %cst_177 [0] : vector<16x32xf32> to vector<32xf32>
    %740 = vector.shape_cast %739 : vector<32xf32> to vector<1x32xf32>
    %741 = vector.extract_strided_slice %718 {offsets = [0, 0], sizes = [1, 32], strides = [1, 1]} : vector<2x32xf32> to vector<1x32xf32>
    %742 = arith.addf %740, %741 : vector<1x32xf32>
    %743 = math.tanh %742 : vector<1x32xf32>
    %c5 = arith.constant 5 : index
    %c0_178 = arith.constant 0 : index
    %744 = vector.load %arg17[%c5, %c0_178] : memref<16x32xf32, #tpu.memory_space<vmem>>, vector<1x32xf32>
    tpu.vector_store %arg17[%c5, %c0_178], %743 {strides = array<i32>} : memref<16x32xf32, #tpu.memory_space<vmem>>, vector<1x32xf32>,
    %745 = vector.extract_strided_slice %717 {offsets = [1, 0], sizes = [1, 32], strides = [1, 1]} : vector<2x32xf32> to vector<1x32xf32>
    %746 = vector.broadcast %745 : vector<1x32xf32> to vector<16x32xf32>
    %747 = arith.mulf %263, %746 : vector<16x32xf32>
    %cst_179 = arith.constant dense<0.000000e+00> : vector<16xf32>
    %748 = vector.multi_reduction <add>, %747, %cst_179 [1] : vector<16x32xf32> to vector<16xf32>
    %749 = vector.shape_cast %748 : vector<16xf32> to vector<16x1xf32>
    %750 = vector.extract_strided_slice %284 {offsets = [0, 1], sizes = [16, 1], strides = [1, 1]} : vector<16x2xi1> to vector<16x1xi1>
    %cst_180 = arith.constant -1.000000e+30 : f32
    %751 = vector.broadcast %cst_180 : f32 to vector<16x1xf32>
    %752 = arith.select %750, %749, %751 : vector<16x1xi1>, vector<16x1xf32>
    %cst_181 = arith.constant dense<0xFF800000> : vector<1xf32>
    %753 = vector.multi_reduction <maximumf>, %752, %cst_181 [0] : vector<16x1xf32> to vector<1xf32>
    %754 = vector.shape_cast %753 : vector<1xf32> to vector<1x1xf32>
    %755 = vector.broadcast %754 : vector<1x1xf32> to vector<16x1xf32>
    %756 = arith.subf %752, %755 : vector<16x1xf32>
    %757 = math.exp %756 : vector<16x1xf32>
    %cst_182 = arith.constant dense<0.000000e+00> : vector<1xf32>
    %758 = vector.multi_reduction <add>, %757, %cst_182 [0] : vector<16x1xf32> to vector<1xf32>
    %759 = vector.shape_cast %758 : vector<1xf32> to vector<1x1xf32>
    %760 = tpu.reciprocal %759 {approx = true} : vector<1x1xf32> -> vector<1x1xf32>
    %761 = vector.broadcast %760 : vector<1x1xf32> to vector<16x1xf32>
    %762 = arith.mulf %757, %761 : vector<16x1xf32>
    %763 = vector.broadcast %762 : vector<16x1xf32> to vector<16x32xf32>
    %764 = arith.mulf %763, %265 : vector<16x32xf32>
    %cst_183 = arith.constant dense<0.000000e+00> : vector<32xf32>
    %765 = vector.multi_reduction <add>, %764, %cst_183 [0] : vector<16x32xf32> to vector<32xf32>
    %766 = vector.shape_cast %765 : vector<32xf32> to vector<1x32xf32>
    %767 = vector.extract_strided_slice %718 {offsets = [1, 0], sizes = [1, 32], strides = [1, 1]} : vector<2x32xf32> to vector<1x32xf32>
    %768 = arith.addf %766, %767 : vector<1x32xf32>
    %769 = math.tanh %768 : vector<1x32xf32>
    %c13 = arith.constant 13 : index
    %c0_184 = arith.constant 0 : index
    %770 = vector.load %arg17[%c13, %c0_184] : memref<16x32xf32, #tpu.memory_space<vmem>>, vector<1x32xf32>
    tpu.vector_store %arg17[%c13, %c0_184], %769 {strides = array<i32>} : memref<16x32xf32, #tpu.memory_space<vmem>>, vector<1x32xf32>,
    %771 = vector.extract_strided_slice %28 {offsets = [12, 0], sizes = [2, 128], strides = [1, 1]} : vector<16x128xf32> to vector<2x128xf32>
    %cst_185 = arith.constant dense<0.000000e+00> : vector<2x128xf32>
    %772 = tpu.matmul %717, %1, %cst_185 {dimension_numbers = #tpu.dot_dimension_numbers<[1], [0], [0], [1], [0, 0, 1, 1], [], []>} : vector<2x32xf32>, vector<32x128xf32>, vector<2x128xf32> -> vector<2x128xf32>
    %773 = arith.addf %771, %772 : vector<2x128xf32>
    %774 = vector.extract_strided_slice %773 {offsets = [0, 0], sizes = [2, 32], strides = [1, 1]} : vector<2x128xf32> to vector<2x32xf32>
    %775 = arith.negf %774 : vector<2x32xf32>
    %776 = math.exp %775 : vector<2x32xf32>
    %cst_186 = arith.constant 1.000000e+00 : f32
    %777 = vector.broadcast %cst_186 : f32 to vector<2x32xf32>
    %778 = arith.addf %777, %776 : vector<2x32xf32>
    %779 = arith.divf %777, %778 : vector<2x32xf32>
    %780 = vector.extract_strided_slice %773 {offsets = [0, 32], sizes = [2, 32], strides = [1, 1]} : vector<2x128xf32> to vector<2x32xf32>
    %781 = arith.negf %780 : vector<2x32xf32>
    %782 = math.exp %781 : vector<2x32xf32>
    %cst_187 = arith.constant 1.000000e+00 : f32
    %783 = vector.broadcast %cst_187 : f32 to vector<2x32xf32>
    %784 = arith.addf %783, %782 : vector<2x32xf32>
    %785 = arith.divf %783, %784 : vector<2x32xf32>
    %786 = vector.extract_strided_slice %773 {offsets = [0, 64], sizes = [2, 32], strides = [1, 1]} : vector<2x128xf32> to vector<2x32xf32>
    %787 = math.tanh %786 : vector<2x32xf32>
    %788 = vector.extract_strided_slice %773 {offsets = [0, 96], sizes = [2, 32], strides = [1, 1]} : vector<2x128xf32> to vector<2x32xf32>
    %789 = arith.negf %788 : vector<2x32xf32>
    %790 = math.exp %789 : vector<2x32xf32>
    %cst_188 = arith.constant 1.000000e+00 : f32
    %791 = vector.broadcast %cst_188 : f32 to vector<2x32xf32>
    %792 = arith.addf %791, %790 : vector<2x32xf32>
    %793 = arith.divf %791, %792 : vector<2x32xf32>
    %794 = arith.mulf %785, %715 : vector<2x32xf32>
    %795 = arith.mulf %779, %787 : vector<2x32xf32>
    %796 = arith.addf %794, %795 : vector<2x32xf32>
    %797 = math.tanh %796 : vector<2x32xf32>
    %798 = arith.mulf %793, %797 : vector<2x32xf32>
    %cst_189 = arith.constant dense<0.000000e+00> : vector<2x32xf32>
    %799 = tpu.matmul %798, %2, %cst_189 {dimension_numbers = #tpu.dot_dimension_numbers<[1], [0], [0], [1], [0, 0, 1, 1], [], []>} : vector<2x32xf32>, vector<32x32xf32>, vector<2x32xf32> -> vector<2x32xf32>
    %800 = vector.extract_strided_slice %798 {offsets = [0, 0], sizes = [1, 32], strides = [1, 1]} : vector<2x32xf32> to vector<1x32xf32>
    %801 = vector.broadcast %800 : vector<1x32xf32> to vector<16x32xf32>
    %802 = arith.mulf %263, %801 : vector<16x32xf32>
    %cst_190 = arith.constant dense<0.000000e+00> : vector<16xf32>
    %803 = vector.multi_reduction <add>, %802, %cst_190 [1] : vector<16x32xf32> to vector<16xf32>
    %804 = vector.shape_cast %803 : vector<16xf32> to vector<16x1xf32>
    %805 = vector.extract_strided_slice %284 {offsets = [0, 0], sizes = [16, 1], strides = [1, 1]} : vector<16x2xi1> to vector<16x1xi1>
    %cst_191 = arith.constant -1.000000e+30 : f32
    %806 = vector.broadcast %cst_191 : f32 to vector<16x1xf32>
    %807 = arith.select %805, %804, %806 : vector<16x1xi1>, vector<16x1xf32>
    %cst_192 = arith.constant dense<0xFF800000> : vector<1xf32>
    %808 = vector.multi_reduction <maximumf>, %807, %cst_192 [0] : vector<16x1xf32> to vector<1xf32>
    %809 = vector.shape_cast %808 : vector<1xf32> to vector<1x1xf32>
    %810 = vector.broadcast %809 : vector<1x1xf32> to vector<16x1xf32>
    %811 = arith.subf %807, %810 : vector<16x1xf32>
    %812 = math.exp %811 : vector<16x1xf32>
    %cst_193 = arith.constant dense<0.000000e+00> : vector<1xf32>
    %813 = vector.multi_reduction <add>, %812, %cst_193 [0] : vector<16x1xf32> to vector<1xf32>
    %814 = vector.shape_cast %813 : vector<1xf32> to vector<1x1xf32>
    %815 = tpu.reciprocal %814 {approx = true} : vector<1x1xf32> -> vector<1x1xf32>
    %816 = vector.broadcast %815 : vector<1x1xf32> to vector<16x1xf32>
    %817 = arith.mulf %812, %816 : vector<16x1xf32>
    %818 = vector.broadcast %817 : vector<16x1xf32> to vector<16x32xf32>
    %819 = arith.mulf %818, %265 : vector<16x32xf32>
    %cst_194 = arith.constant dense<0.000000e+00> : vector<32xf32>
    %820 = vector.multi_reduction <add>, %819, %cst_194 [0] : vector<16x32xf32> to vector<32xf32>
    %821 = vector.shape_cast %820 : vector<32xf32> to vector<1x32xf32>
    %822 = vector.extract_strided_slice %799 {offsets = [0, 0], sizes = [1, 32], strides = [1, 1]} : vector<2x32xf32> to vector<1x32xf32>
    %823 = arith.addf %821, %822 : vector<1x32xf32>
    %824 = math.tanh %823 : vector<1x32xf32>
    %c6_195 = arith.constant 6 : index
    %c0_196 = arith.constant 0 : index
    %825 = vector.load %arg17[%c6_195, %c0_196] : memref<16x32xf32, #tpu.memory_space<vmem>>, vector<1x32xf32>
    tpu.vector_store %arg17[%c6_195, %c0_196], %824 {strides = array<i32>} : memref<16x32xf32, #tpu.memory_space<vmem>>, vector<1x32xf32>,
    %826 = vector.extract_strided_slice %798 {offsets = [1, 0], sizes = [1, 32], strides = [1, 1]} : vector<2x32xf32> to vector<1x32xf32>
    %827 = vector.broadcast %826 : vector<1x32xf32> to vector<16x32xf32>
    %828 = arith.mulf %263, %827 : vector<16x32xf32>
    %cst_197 = arith.constant dense<0.000000e+00> : vector<16xf32>
    %829 = vector.multi_reduction <add>, %828, %cst_197 [1] : vector<16x32xf32> to vector<16xf32>
    %830 = vector.shape_cast %829 : vector<16xf32> to vector<16x1xf32>
    %831 = vector.extract_strided_slice %284 {offsets = [0, 1], sizes = [16, 1], strides = [1, 1]} : vector<16x2xi1> to vector<16x1xi1>
    %cst_198 = arith.constant -1.000000e+30 : f32
    %832 = vector.broadcast %cst_198 : f32 to vector<16x1xf32>
    %833 = arith.select %831, %830, %832 : vector<16x1xi1>, vector<16x1xf32>
    %cst_199 = arith.constant dense<0xFF800000> : vector<1xf32>
    %834 = vector.multi_reduction <maximumf>, %833, %cst_199 [0] : vector<16x1xf32> to vector<1xf32>
    %835 = vector.shape_cast %834 : vector<1xf32> to vector<1x1xf32>
    %836 = vector.broadcast %835 : vector<1x1xf32> to vector<16x1xf32>
    %837 = arith.subf %833, %836 : vector<16x1xf32>
    %838 = math.exp %837 : vector<16x1xf32>
    %cst_200 = arith.constant dense<0.000000e+00> : vector<1xf32>
    %839 = vector.multi_reduction <add>, %838, %cst_200 [0] : vector<16x1xf32> to vector<1xf32>
    %840 = vector.shape_cast %839 : vector<1xf32> to vector<1x1xf32>
    %841 = tpu.reciprocal %840 {approx = true} : vector<1x1xf32> -> vector<1x1xf32>
    %842 = vector.broadcast %841 : vector<1x1xf32> to vector<16x1xf32>
    %843 = arith.mulf %838, %842 : vector<16x1xf32>
    %844 = vector.broadcast %843 : vector<16x1xf32> to vector<16x32xf32>
    %845 = arith.mulf %844, %265 : vector<16x32xf32>
    %cst_201 = arith.constant dense<0.000000e+00> : vector<32xf32>
    %846 = vector.multi_reduction <add>, %845, %cst_201 [0] : vector<16x32xf32> to vector<32xf32>
    %847 = vector.shape_cast %846 : vector<32xf32> to vector<1x32xf32>
    %848 = vector.extract_strided_slice %799 {offsets = [1, 0], sizes = [1, 32], strides = [1, 1]} : vector<2x32xf32> to vector<1x32xf32>
    %849 = arith.addf %847, %848 : vector<1x32xf32>
    %850 = math.tanh %849 : vector<1x32xf32>
    %c14_202 = arith.constant 14 : index
    %c0_203 = arith.constant 0 : index
    %851 = vector.load %arg17[%c14_202, %c0_203] : memref<16x32xf32, #tpu.memory_space<vmem>>, vector<1x32xf32>
    tpu.vector_store %arg17[%c14_202, %c0_203], %850 {strides = array<i32>} : memref<16x32xf32, #tpu.memory_space<vmem>>, vector<1x32xf32>,
    %852 = vector.extract_strided_slice %28 {offsets = [14, 0], sizes = [2, 128], strides = [1, 1]} : vector<16x128xf32> to vector<2x128xf32>
    %cst_204 = arith.constant dense<0.000000e+00> : vector<2x128xf32>
    %853 = tpu.matmul %798, %1, %cst_204 {dimension_numbers = #tpu.dot_dimension_numbers<[1], [0], [0], [1], [0, 0, 1, 1], [], []>} : vector<2x32xf32>, vector<32x128xf32>, vector<2x128xf32> -> vector<2x128xf32>
    %854 = arith.addf %852, %853 : vector<2x128xf32>
    %855 = vector.extract_strided_slice %854 {offsets = [0, 0], sizes = [2, 32], strides = [1, 1]} : vector<2x128xf32> to vector<2x32xf32>
    %856 = arith.negf %855 : vector<2x32xf32>
    %857 = math.exp %856 : vector<2x32xf32>
    %cst_205 = arith.constant 1.000000e+00 : f32
    %858 = vector.broadcast %cst_205 : f32 to vector<2x32xf32>
    %859 = arith.addf %858, %857 : vector<2x32xf32>
    %860 = arith.divf %858, %859 : vector<2x32xf32>
    %861 = vector.extract_strided_slice %854 {offsets = [0, 32], sizes = [2, 32], strides = [1, 1]} : vector<2x128xf32> to vector<2x32xf32>
    %862 = arith.negf %861 : vector<2x32xf32>
    %863 = math.exp %862 : vector<2x32xf32>
    %cst_206 = arith.constant 1.000000e+00 : f32
    %864 = vector.broadcast %cst_206 : f32 to vector<2x32xf32>
    %865 = arith.addf %864, %863 : vector<2x32xf32>
    %866 = arith.divf %864, %865 : vector<2x32xf32>
    %867 = vector.extract_strided_slice %854 {offsets = [0, 64], sizes = [2, 32], strides = [1, 1]} : vector<2x128xf32> to vector<2x32xf32>
    %868 = math.tanh %867 : vector<2x32xf32>
    %869 = vector.extract_strided_slice %854 {offsets = [0, 96], sizes = [2, 32], strides = [1, 1]} : vector<2x128xf32> to vector<2x32xf32>
    %870 = arith.negf %869 : vector<2x32xf32>
    %871 = math.exp %870 : vector<2x32xf32>
    %cst_207 = arith.constant 1.000000e+00 : f32
    %872 = vector.broadcast %cst_207 : f32 to vector<2x32xf32>
    %873 = arith.addf %872, %871 : vector<2x32xf32>
    %874 = arith.divf %872, %873 : vector<2x32xf32>
    %875 = arith.mulf %866, %796 : vector<2x32xf32>
    %876 = arith.mulf %860, %868 : vector<2x32xf32>
    %877 = arith.addf %875, %876 : vector<2x32xf32>
    %878 = math.tanh %877 : vector<2x32xf32>
    %879 = arith.mulf %874, %878 : vector<2x32xf32>
    %cst_208 = arith.constant dense<0.000000e+00> : vector<2x32xf32>
    %880 = tpu.matmul %879, %2, %cst_208 {dimension_numbers = #tpu.dot_dimension_numbers<[1], [0], [0], [1], [0, 0, 1, 1], [], []>} : vector<2x32xf32>, vector<32x32xf32>, vector<2x32xf32> -> vector<2x32xf32>
    %881 = vector.extract_strided_slice %879 {offsets = [0, 0], sizes = [1, 32], strides = [1, 1]} : vector<2x32xf32> to vector<1x32xf32>
    %882 = vector.broadcast %881 : vector<1x32xf32> to vector<16x32xf32>
    %883 = arith.mulf %263, %882 : vector<16x32xf32>
    %cst_209 = arith.constant dense<0.000000e+00> : vector<16xf32>
    %884 = vector.multi_reduction <add>, %883, %cst_209 [1] : vector<16x32xf32> to vector<16xf32>
    %885 = vector.shape_cast %884 : vector<16xf32> to vector<16x1xf32>
    %886 = vector.extract_strided_slice %284 {offsets = [0, 0], sizes = [16, 1], strides = [1, 1]} : vector<16x2xi1> to vector<16x1xi1>
    %cst_210 = arith.constant -1.000000e+30 : f32
    %887 = vector.broadcast %cst_210 : f32 to vector<16x1xf32>
    %888 = arith.select %886, %885, %887 : vector<16x1xi1>, vector<16x1xf32>
    %cst_211 = arith.constant dense<0xFF800000> : vector<1xf32>
    %889 = vector.multi_reduction <maximumf>, %888, %cst_211 [0] : vector<16x1xf32> to vector<1xf32>
    %890 = vector.shape_cast %889 : vector<1xf32> to vector<1x1xf32>
    %891 = vector.broadcast %890 : vector<1x1xf32> to vector<16x1xf32>
    %892 = arith.subf %888, %891 : vector<16x1xf32>
    %893 = math.exp %892 : vector<16x1xf32>
    %cst_212 = arith.constant dense<0.000000e+00> : vector<1xf32>
    %894 = vector.multi_reduction <add>, %893, %cst_212 [0] : vector<16x1xf32> to vector<1xf32>
    %895 = vector.shape_cast %894 : vector<1xf32> to vector<1x1xf32>
    %896 = tpu.reciprocal %895 {approx = true} : vector<1x1xf32> -> vector<1x1xf32>
    %897 = vector.broadcast %896 : vector<1x1xf32> to vector<16x1xf32>
    %898 = arith.mulf %893, %897 : vector<16x1xf32>
    %899 = vector.broadcast %898 : vector<16x1xf32> to vector<16x32xf32>
    %900 = arith.mulf %899, %265 : vector<16x32xf32>
    %cst_213 = arith.constant dense<0.000000e+00> : vector<32xf32>
    %901 = vector.multi_reduction <add>, %900, %cst_213 [0] : vector<16x32xf32> to vector<32xf32>
    %902 = vector.shape_cast %901 : vector<32xf32> to vector<1x32xf32>
    %903 = vector.extract_strided_slice %880 {offsets = [0, 0], sizes = [1, 32], strides = [1, 1]} : vector<2x32xf32> to vector<1x32xf32>
    %904 = arith.addf %902, %903 : vector<1x32xf32>
    %905 = math.tanh %904 : vector<1x32xf32>
    %c7 = arith.constant 7 : index
    %c0_214 = arith.constant 0 : index
    %906 = vector.load %arg17[%c7, %c0_214] : memref<16x32xf32, #tpu.memory_space<vmem>>, vector<1x32xf32>
    tpu.vector_store %arg17[%c7, %c0_214], %905 {strides = array<i32>} : memref<16x32xf32, #tpu.memory_space<vmem>>, vector<1x32xf32>,
    %907 = vector.extract_strided_slice %879 {offsets = [1, 0], sizes = [1, 32], strides = [1, 1]} : vector<2x32xf32> to vector<1x32xf32>
    %908 = vector.broadcast %907 : vector<1x32xf32> to vector<16x32xf32>
    %909 = arith.mulf %263, %908 : vector<16x32xf32>
    %cst_215 = arith.constant dense<0.000000e+00> : vector<16xf32>
    %910 = vector.multi_reduction <add>, %909, %cst_215 [1] : vector<16x32xf32> to vector<16xf32>
    %911 = vector.shape_cast %910 : vector<16xf32> to vector<16x1xf32>
    %912 = vector.extract_strided_slice %284 {offsets = [0, 1], sizes = [16, 1], strides = [1, 1]} : vector<16x2xi1> to vector<16x1xi1>
    %cst_216 = arith.constant -1.000000e+30 : f32
    %913 = vector.broadcast %cst_216 : f32 to vector<16x1xf32>
    %914 = arith.select %912, %911, %913 : vector<16x1xi1>, vector<16x1xf32>
    %cst_217 = arith.constant dense<0xFF800000> : vector<1xf32>
    %915 = vector.multi_reduction <maximumf>, %914, %cst_217 [0] : vector<16x1xf32> to vector<1xf32>
    %916 = vector.shape_cast %915 : vector<1xf32> to vector<1x1xf32>
    %917 = vector.broadcast %916 : vector<1x1xf32> to vector<16x1xf32>
    %918 = arith.subf %914, %917 : vector<16x1xf32>
    %919 = math.exp %918 : vector<16x1xf32>
    %cst_218 = arith.constant dense<0.000000e+00> : vector<1xf32>
    %920 = vector.multi_reduction <add>, %919, %cst_218 [0] : vector<16x1xf32> to vector<1xf32>
    %921 = vector.shape_cast %920 : vector<1xf32> to vector<1x1xf32>
    %922 = tpu.reciprocal %921 {approx = true} : vector<1x1xf32> -> vector<1x1xf32>
    %923 = vector.broadcast %922 : vector<1x1xf32> to vector<16x1xf32>
    %924 = arith.mulf %919, %923 : vector<16x1xf32>
    %925 = vector.broadcast %924 : vector<16x1xf32> to vector<16x32xf32>
    %926 = arith.mulf %925, %265 : vector<16x32xf32>
    %cst_219 = arith.constant dense<0.000000e+00> : vector<32xf32>
    %927 = vector.multi_reduction <add>, %926, %cst_219 [0] : vector<16x32xf32> to vector<32xf32>
    %928 = vector.shape_cast %927 : vector<32xf32> to vector<1x32xf32>
    %929 = vector.extract_strided_slice %880 {offsets = [1, 0], sizes = [1, 32], strides = [1, 1]} : vector<2x32xf32> to vector<1x32xf32>
    %930 = arith.addf %928, %929 : vector<1x32xf32>
    %931 = math.tanh %930 : vector<1x32xf32>
    %c15 = arith.constant 15 : index
    %c0_220 = arith.constant 0 : index
    %932 = vector.load %arg17[%c15, %c0_220] : memref<16x32xf32, #tpu.memory_space<vmem>>, vector<1x32xf32>
    tpu.vector_store %arg17[%c15, %c0_220], %931 {strides = array<i32>} : memref<16x32xf32, #tpu.memory_space<vmem>>, vector<1x32xf32>,
    %c0_221 = arith.constant 0 : index
    %c0_222 = arith.constant 0 : index
    %933 = vector.load %arg17[%c0_221, %c0_222] : memref<16x32xf32, #tpu.memory_space<vmem>>, vector<16x32xf32>
    %c0_223 = arith.constant 0 : index
    %c0_224 = arith.constant 0 : index
    %934 = vector.load %arg14[%c0_223, %c0_224] : memref<32x128xf32, #tpu.memory_space<vmem>>, vector<32x128xf32>
    %cst_225 = arith.constant dense<0.000000e+00> : vector<16x128xf32>
    %935 = tpu.matmul %933, %934, %cst_225 {dimension_numbers = #tpu.dot_dimension_numbers<[1], [0], [0], [1], [0, 0, 1, 1], [], []>} : vector<16x32xf32>, vector<32x128xf32>, vector<16x128xf32> -> vector<16x128xf32>
    %936 = vector.extract_strided_slice %935 {offsets = [0, 0], sizes = [8, 128], strides = [1, 1]} : vector<16x128xf32> to vector<8x128xf32>
    %c0_226 = arith.constant 0 : index
    %c0_227 = arith.constant 0 : index
    %c0_228 = arith.constant 0 : index
    %937 = vector.load %arg15[%c0_226, %c0_227, %c0_228] : memref<2x8x128xf32, #tpu.memory_space<vmem>>, vector<1x8x128xf32>
    %938 = vector.shape_cast %937 : vector<1x8x128xf32> to vector<8x128xf32>
    %939 = vector.shape_cast %936 : vector<8x128xf32> to vector<1x8x128xf32>
    tpu.vector_store %arg15[%c0_226, %c0_227, %c0_228], %939 {strides = array<i32>} : memref<2x8x128xf32, #tpu.memory_space<vmem>>, vector<1x8x128xf32>,
    %940 = vector.extract_strided_slice %935 {offsets = [8, 0], sizes = [8, 128], strides = [1, 1]} : vector<16x128xf32> to vector<8x128xf32>
    %c1_229 = arith.constant 1 : index
    %c0_230 = arith.constant 0 : index
    %c0_231 = arith.constant 0 : index
    %941 = vector.load %arg15[%c1_229, %c0_230, %c0_231] : memref<2x8x128xf32, #tpu.memory_space<vmem>>, vector<1x8x128xf32>
    %942 = vector.shape_cast %941 : vector<1x8x128xf32> to vector<8x128xf32>
    %943 = vector.shape_cast %940 : vector<8x128xf32> to vector<1x8x128xf32>
    tpu.vector_store %arg15[%c1_229, %c0_230, %c0_231], %943 {strides = array<i32>} : memref<2x8x128xf32, #tpu.memory_space<vmem>>, vector<1x8x128xf32>,
    return
  }
}

</mosaic_0001>

<llo_original>
// kernel: seq2seq_forward.1
$region0: #{seq2seq_forward.1}
  #allocation0 [shape = 'u32[]', space=smem, size = 0x4, offset = 0x4, fixed_abs, tag = 'smem constant byte address 0x4 - core index']
  #allocation1 [shape = 'u32[144,128]{1,0:T(1,128)}', space=vmem, size = 0x12000, scoped, tag = 'internal scratch']
  #allocation2 [shape = 'f32[16,32]{1,0:T(8,128)}', space=vmem, size = 0x2000, scoped, tag = 'scratch operand']
  #allocation3 [shape = 'f32[16,32]{1,0:T(8,128)}', space=vmem, size = 0x2000, scoped, tag = 'scratch operand']
  %s0 = inlined_call_operand.vmem [shape: s32[16,1], index: 0, kind: input, shape index: {}]
  %s1 = inlined_call_operand.vmem [shape: s32[16,1], index: 1, kind: input, shape index: {}]
  %s2 = inlined_call_operand.vmem [shape: f32[2,32], index: 2, kind: input, shape index: {}]
  %s3 = inlined_call_operand.vmem [shape: f32[2,32], index: 3, kind: input, shape index: {}]
  %s4 = inlined_call_operand.vmem [shape: f32[128,32], index: 4, kind: input, shape index: {}]
  %s5 = inlined_call_operand.vmem [shape: f32[128,32], index: 5, kind: input, shape index: {}]
  %s6 = inlined_call_operand.vmem [shape: f32[32,128], index: 6, kind: input, shape index: {}]
  %s7 = inlined_call_operand.vmem [shape: f32[32,128], index: 7, kind: input, shape index: {}]
  %s8 = inlined_call_operand.vmem [shape: f32[1,128], index: 8, kind: input, shape index: {}]
  %s9 = inlined_call_operand.vmem [shape: f32[32,128], index: 9, kind: input, shape index: {}]
  %s10 = inlined_call_operand.vmem [shape: f32[32,128], index: 10, kind: input, shape index: {}]
  %s11 = inlined_call_operand.vmem [shape: f32[1,128], index: 11, kind: input, shape index: {}]
  %s12 = inlined_call_operand.vmem [shape: f32[32,32], index: 12, kind: input, shape index: {}]
  %s13 = inlined_call_operand.vmem [shape: f32[32,32], index: 13, kind: input, shape index: {}]
  %s14 = inlined_call_operand.vmem [shape: f32[32,128], index: 14, kind: input, shape index: {}]
  %s15 = inlined_call_operand.hbm [shape: f32[2,8,128], index: 15, kind: output, shape index: {}]
  %s16 = sld [smem:[#allocation0]]
  $region70: #{seq2seq_forward.1} parent=0
    _
  %s18 = ssub.s32 1, %s16
  %s19 = scalar_select 0, %s18, %s16
  $region1: #{seq2seq_forward.1} parent=0
    #allocation4 [shape = 'u8[8192]{0}', space=vmem, size = 0x2000, scoped, tag = 'output window, operand 0, single buffered']
    #allocation5 [shape = 's32[1]{0}', space=sflag, size = 0x4, scoped, tag = 'scoped memory for seq2seq_forward.1']
    %20 = vsyncpa [#allocation5], 0
    // Predicated region
    $region2: #{seq2seq_forward.1} parent=1 // pred_check
      _
    $region3: #{seq2seq_forward.1} parent=1 // pred_check_branch
      %22 = sbr.rel (0) target = $region5
    $region4: #{seq2seq_forward.1} parent=1 // pred_region
      _
    $region5: #{seq2seq_forward.1} parent=1 // pred_fallthru
      _
    // Predicated region
    $region6: #{seq2seq_forward.1} parent=1 // pred_check
      _
    $region7: #{seq2seq_forward.1} parent=1 // pred_check_branch
      %24 = sbr.rel (0) target = $region9
    $region8: #{seq2seq_forward.1} parent=1 // pred_region
      _
    $region9: #{seq2seq_forward.1} parent=1 // pred_fallthru
      _
    // Predicated region
    $region10: #{seq2seq_forward.1} parent=1 // pred_check
      _
    $region11: #{seq2seq_forward.1} parent=1 // pred_check_branch
      %26 = sbr.rel (0) target = $region13
    $region12: #{seq2seq_forward.1} parent=1 // pred_region
      _
    $region13: #{seq2seq_forward.1} parent=1 // pred_fallthru
      _
    // Predicated region
    $region14: #{seq2seq_forward.1} parent=1 // pred_check
      _
    $region15: #{seq2seq_forward.1} parent=1 // pred_check_branch
      %28 = sbr.rel (0) target = $region17
    $region16: #{seq2seq_forward.1} parent=1 // pred_region
      _
    $region17: #{seq2seq_forward.1} parent=1 // pred_fallthru
      _
    // Predicated region
    $region18: #{seq2seq_forward.1} parent=1 // pred_check
      _
    $region19: #{seq2seq_forward.1} parent=1 // pred_check_branch
      %30 = sbr.rel (0) target = $region21
    $region20: #{seq2seq_forward.1} parent=1 // pred_region
      _
    $region21: #{seq2seq_forward.1} parent=1 // pred_fallthru
      _
    // Predicated region
    $region22: #{seq2seq_forward.1} parent=1 // pred_check
      _
    $region23: #{seq2seq_forward.1} parent=1 // pred_check_branch
      %32 = sbr.rel (0) target = $region25
    $region24: #{seq2seq_forward.1} parent=1 // pred_region
      _
    $region25: #{seq2seq_forward.1} parent=1 // pred_fallthru
      _
    // Predicated region
    $region26: #{seq2seq_forward.1} parent=1 // pred_check
      _
    $region27: #{seq2seq_forward.1} parent=1 // pred_check_branch
      %34 = sbr.rel (0) target = $region29
    $region28: #{seq2seq_forward.1} parent=1 // pred_region
      _
    $region29: #{seq2seq_forward.1} parent=1 // pred_fallthru
      _
    // Predicated region
    $region30: #{seq2seq_forward.1} parent=1 // pred_check
      _
    $region31: #{seq2seq_forward.1} parent=1 // pred_check_branch
      %36 = sbr.rel (0) target = $region33
    $region32: #{seq2seq_forward.1} parent=1 // pred_region
      _
    $region33: #{seq2seq_forward.1} parent=1 // pred_fallthru
      _
    // Predicated region
    $region34: #{seq2seq_forward.1} parent=1 // pred_check
      _
    $region35: #{seq2seq_forward.1} parent=1 // pred_check_branch
      %38 = sbr.rel (0) target = $region37
    $region36: #{seq2seq_forward.1} parent=1 // pred_region
      _
    $region37: #{seq2seq_forward.1} parent=1 // pred_fallthru
      _
    // Predicated region
    $region38: #{seq2seq_forward.1} parent=1 // pred_check
      _
    $region39: #{seq2seq_forward.1} parent=1 // pred_check_branch
      %40 = sbr.rel (0) target = $region41
    $region40: #{seq2seq_forward.1} parent=1 // pred_region
      _
    $region41: #{seq2seq_forward.1} parent=1 // pred_fallthru
      _
    // Predicated region
    $region42: #{seq2seq_forward.1} parent=1 // pred_check
      _
    $region43: #{seq2seq_forward.1} parent=1 // pred_check_branch
      %42 = sbr.rel (0) target = $region45
    $region44: #{seq2seq_forward.1} parent=1 // pred_region
      _
    $region45: #{seq2seq_forward.1} parent=1 // pred_fallthru
      _
    // Predicated region
    $region46: #{seq2seq_forward.1} parent=1 // pred_check
      _
    $region47: #{seq2seq_forward.1} parent=1 // pred_check_branch
      %44 = sbr.rel (0) target = $region49
    $region48: #{seq2seq_forward.1} parent=1 // pred_region
      _
    $region49: #{seq2seq_forward.1} parent=1 // pred_fallthru
      _
    // Predicated region
    $region50: #{seq2seq_forward.1} parent=1 // pred_check
      _
    $region51: #{seq2seq_forward.1} parent=1 // pred_check_branch
      %46 = sbr.rel (0) target = $region53
    $region52: #{seq2seq_forward.1} parent=1 // pred_region
      _
    $region53: #{seq2seq_forward.1} parent=1 // pred_fallthru
      _
    // Predicated region
    $region54: #{seq2seq_forward.1} parent=1 // pred_check
      _
    $region55: #{seq2seq_forward.1} parent=1 // pred_check_branch
      %48 = sbr.rel (0) target = $region57
    $region56: #{seq2seq_forward.1} parent=1 // pred_region
      _
    $region57: #{seq2seq_forward.1} parent=1 // pred_fallthru
      _
    // Predicated region
    $region58: #{seq2seq_forward.1} parent=1 // pred_check
      _
    $region59: #{seq2seq_forward.1} parent=1 // pred_check_branch
      %50 = sbr.rel (0) target = $region61
    $region60: #{seq2seq_forward.1} parent=1 // pred_region
      _
    $region61: #{seq2seq_forward.1} parent=1 // pred_fallthru
      _
    %v51 = vld [vmem:[%s7] sm:$0xff]
    %v52 = vld [vmem:[%s7 + $0x8] sm:$0xff]
    %v53 = vld [vmem:[%s7 + $0x10] sm:$0xff]
    %v54 = vld [vmem:[%s7 + $0x18] sm:$0xff]
    %v55 = vld [vmem:[%s10] sm:$0xff]
    %v56 = vld [vmem:[%s10 + $0x8] sm:$0xff]
    %v57 = vld [vmem:[%s10 + $0x10] sm:$0xff]
    %v58 = vld [vmem:[%s10 + $0x18] sm:$0xff]
    %v59 = vld [vmem:[%s13] sm:$0xff]
    %v60 = vld [vmem:[%s13 + $0x8] sm:$0xff]
    %v61 = vld [vmem:[%s13 + $0x10] sm:$0xff]
    %v62 = vld [vmem:[%s13 + $0x18] sm:$0xff]
    %v63 = vlaneseq
    %v64 = vand.u32 %v63, 127
    %v65 = vld [vmem:[%s0] sm:$0xff]
    %v66 = vld [vmem:[%s0 + $0x8] sm:$0xff]
    %67 = vset.pattern.permute.xlu0 0
    %68 = vperm.xlu0 %67, %v65
    %v69 = vpop.permute.xlu0 %68
    %70 = vset.pattern.permute.xlu0 0
    %71 = vperm.xlu0 %70, %v66
    %v72 = vpop.permute.xlu0 %71
    %vm73 = vcmp.eq.s32.totalorder %v69, %v64
    %vm74 = vcmp.eq.s32.totalorder %v72, %v64
    %v75 = vsel %vm73, 1, 0
    %v76 = vsel %vm74, 1, 0
    %v77 = vcvt.s32.f32 %v75
    %v78 = vcvt.s32.f32 %v76
    %v79 = vld [vmem:[%s4] sm:$0xff]
    %v80 = vld [vmem:[%s4 + $0x8] sm:$0xff]
    %v81 = vld [vmem:[%s4 + $0x10] sm:$0xff]
    %v82 = vld [vmem:[%s4 + $0x18] sm:$0xff]
    %v83 = vld [vmem:[%s4 + $0x20] sm:$0xff]
    %v84 = vld [vmem:[%s4 + $0x28] sm:$0xff]
    %v85 = vld [vmem:[%s4 + $0x30] sm:$0xff]
    %v86 = vld [vmem:[%s4 + $0x38] sm:$0xff]
    %v87 = vld [vmem:[%s4 + $0x40] sm:$0xff]
    %v88 = vld [vmem:[%s4 + $0x48] sm:$0xff]
    %v89 = vld [vmem:[%s4 + $0x50] sm:$0xff]
    %v90 = vld [vmem:[%s4 + $0x58] sm:$0xff]
    %v91 = vld [vmem:[%s4 + $0x60] sm:$0xff]
    %v92 = vld [vmem:[%s4 + $0x68] sm:$0xff]
    %v93 = vld [vmem:[%s4 + $0x70] sm:$0xff]
    %v94 = vld [vmem:[%s4 + $0x78] sm:$0xff]
    %95 = vmatprep.subr.mxu0 0.0
    %96 = vmatpush1.msra.mxu0 %v94
    %97 = vmatprep.subr.mxu0 0.0
    %98 = vmatpush1.msra.mxu0 %v93
    %99 = vmatprep.subr.mxu0 0.0
    %100 = vmatpush1.msra.mxu0 %v92
    %101 = vmatprep.subr.mxu0 0.0
    %102 = vmatpush1.msra.mxu0 %v91
    %103 = vmatprep.subr.mxu0 0.0
    %104 = vmatpush1.msra.mxu0 %v90
    %105 = vmatprep.subr.mxu0 0.0
    %106 = vmatpush1.msra.mxu0 %v89
    %107 = vmatprep.subr.mxu0 0.0
    %108 = vmatpush1.msra.mxu0 %v88
    %109 = vmatprep.subr.mxu0 0.0
    %110 = vmatpush1.msra.mxu0 %v87
    %111 = vmatprep.subr.mxu0 0.0
    %112 = vmatpush1.msra.mxu0 %v86
    %113 = vmatprep.subr.mxu0 0.0
    %114 = vmatpush1.msra.mxu0 %v85
    %115 = vmatprep.subr.mxu0 0.0
    %116 = vmatpush1.msra.mxu0 %v84
    %117 = vmatprep.subr.mxu0 0.0
    %118 = vmatpush1.msra.mxu0 %v83
    %119 = vmatprep.subr.mxu0 0.0
    %120 = vmatpush1.msra.mxu0 %v82
    %121 = vmatprep.subr.mxu0 0.0
    %122 = vmatpush1.msra.mxu0 %v81
    %123 = vmatprep.subr.mxu0 0.0
    %124 = vmatpush1.msra.mxu0 %v80
    %125 = vmatprep.subr.mxu0 0.0
    %126 = vmatpush1.msra.mxu0 %v79
    %127 = vmatprep.subr.mxu0 0.0
    %128 = vmatpush2.msra.mxu0 0.0
    %129 = vmatprep.subr.mxu0 0.0
    %130 = vmatpush2.msra.mxu0 0.0
    %131 = vmatprep.subr.mxu0 0.0
    %132 = vmatpush2.msra.mxu0 0.0
    %133 = vmatprep.subr.mxu0 0.0
    %134 = vmatpush2.msra.mxu0 0.0
    %135 = vmatprep.subr.mxu0 0.0
    %136 = vmatpush2.msra.mxu0 0.0
    %137 = vmatprep.subr.mxu0 0.0
    %138 = vmatpush2.msra.mxu0 0.0
    %139 = vmatprep.subr.mxu0 0.0
    %140 = vmatpush2.msra.mxu0 0.0
    %141 = vmatprep.subr.mxu0 0.0
    %142 = vmatpush2.msra.mxu0 0.0
    %143 = vmatprep.subr.mxu0 0.0
    %144 = vmatpush2.msra.mxu0 0.0
    %145 = vmatprep.subr.mxu0 0.0
    %146 = vmatpush2.msra.mxu0 0.0
    %147 = vmatprep.subr.mxu0 0.0
    %148 = vmatpush2.msra.mxu0 0.0
    %149 = vmatprep.subr.mxu0 0.0
    %150 = vmatpush2.msra.mxu0 0.0
    %151 = vmatprep.subr.mxu0 0.0
    %152 = vmatpush2.msra.mxu0 0.0
    %153 = vmatprep.subr.mxu0 0.0
    %154 = vmatpush2.msra.mxu0 0.0
    %155 = vmatprep.subr.mxu0 0.0
    %156 = vmatpush2.msra.mxu0 0.0
    %157 = vmatprep.subr.mxu0 0.0
    %158 = vmatpush2.msra.mxu0 0.0
    %159 = vmatprep.mubr.f32.mxu0 0.0
    %160 = vmatmul.mubr.f32.gmra.mxu0 %v77
    %v161 = vpop.f32.mrf.mxu0
    %v162 = vadd.f32 0.0, %v161
    %v163 = vpop.f32.mrf.mxu0
    %164 = vmatprep.mubr.f32.mxu0 0.0
    %165 = vmatmul.mubr.f32.gmra.mxu0 %v78
    %v166 = vpop.f32.mrf.mxu0
    %v167 = vadd.f32 0.0, %v166
    %v168 = vpop.f32.mrf.mxu0
    %169 = vdwg.mxu0
    %v170 = vld [vmem:[%s6] sm:$0xff]
    %v171 = vld [vmem:[%s6 + $0x8] sm:$0xff]
    %v172 = vld [vmem:[%s6 + $0x10] sm:$0xff]
    %v173 = vld [vmem:[%s6 + $0x18] sm:$0xff]
    %v174 = vld [vmem:[%s8] sm:$0x1]
    %v176 = vlaneseq
    %v177 = vshrl.u32 %v176, 7
    %v178 = vsub.s32 0, %v177
    %v179 = vrot.slane %v174, %v178
    %vm181 = vcmask 261120
    %v183 = vsel %vm181, %v162, 0
    %v186 = vsel %vm181, %v167, 0
    %188 = vmatprep.subr.mxu0 0.0
    %189 = vmatpush1.msra.mxu0 0.0
    %190 = vmatprep.subr.mxu0 0.0
    %191 = vmatpush1.msra.mxu0 0.0
    %192 = vmatprep.subr.mxu0 0.0
    %193 = vmatpush1.msra.mxu0 0.0
    %194 = vmatprep.subr.mxu0 0.0
    %195 = vmatpush1.msra.mxu0 0.0
    %196 = vmatprep.subr.mxu0 0.0
    %197 = vmatpush1.msra.mxu0 0.0
    %198 = vmatprep.subr.mxu0 0.0
    %199 = vmatpush1.msra.mxu0 0.0
    %200 = vmatprep.subr.mxu0 0.0
    %201 = vmatpush1.msra.mxu0 0.0
    %202 = vmatprep.subr.mxu0 0.0
    %203 = vmatpush1.msra.mxu0 0.0
    %204 = vmatprep.subr.mxu0 0.0
    %205 = vmatpush1.msra.mxu0 0.0
    %206 = vmatprep.subr.mxu0 0.0
    %207 = vmatpush1.msra.mxu0 0.0
    %208 = vmatprep.subr.mxu0 0.0
    %209 = vmatpush1.msra.mxu0 0.0
    %210 = vmatprep.subr.mxu0 0.0
    %211 = vmatpush1.msra.mxu0 0.0
    %212 = vmatprep.subr.mxu0 0.0
    %213 = vmatpush1.msra.mxu0 %v173
    %214 = vmatprep.subr.mxu0 0.0
    %215 = vmatpush1.msra.mxu0 %v172
    %216 = vmatprep.subr.mxu0 0.0
    %217 = vmatpush1.msra.mxu0 %v171
    %218 = vmatprep.subr.mxu0 0.0
    %219 = vmatpush1.msra.mxu0 %v170
    %220 = vmatprep.subr.mxu0 0.0
    %221 = vmatpush2.msra.mxu0 0.0
    %222 = vmatprep.subr.mxu0 0.0
    %223 = vmatpush2.msra.mxu0 0.0
    %224 = vmatprep.subr.mxu0 0.0
    %225 = vmatpush2.msra.mxu0 0.0
    %226 = vmatprep.subr.mxu0 0.0
    %227 = vmatpush2.msra.mxu0 0.0
    %228 = vmatprep.subr.mxu0 0.0
    %229 = vmatpush2.msra.mxu0 0.0
    %230 = vmatprep.subr.mxu0 0.0
    %231 = vmatpush2.msra.mxu0 0.0
    %232 = vmatprep.subr.mxu0 0.0
    %233 = vmatpush2.msra.mxu0 0.0
    %234 = vmatprep.subr.mxu0 0.0
    %235 = vmatpush2.msra.mxu0 0.0
    %236 = vmatprep.subr.mxu0 0.0
    %237 = vmatpush2.msra.mxu0 0.0
    %238 = vmatprep.subr.mxu0 0.0
    %239 = vmatpush2.msra.mxu0 0.0
    %240 = vmatprep.subr.mxu0 0.0
    %241 = vmatpush2.msra.mxu0 0.0
    %242 = vmatprep.subr.mxu0 0.0
    %243 = vmatpush2.msra.mxu0 0.0
    %244 = vmatprep.subr.mxu0 0.0
    %245 = vmatpush2.msra.mxu0 0.0
    %246 = vmatprep.subr.mxu0 0.0
    %247 = vmatpush2.msra.mxu0 0.0
    %248 = vmatprep.subr.mxu0 0.0
    %249 = vmatpush2.msra.mxu0 0.0
    %250 = vmatprep.subr.mxu0 0.0
    %251 = vmatpush2.msra.mxu0 0.0
    %252 = vmatprep.mubr.f32.mxu0 0.0
    %253 = vmatmul.mubr.f32.gmra.mxu0 %v183
    %v254 = vpop.f32.mrf.mxu0
    %v255 = vadd.f32 %v179, %v254
    %v256 = vpop.f32.mrf.mxu0
    %257 = vmatprep.mubr.f32.mxu0 0.0
    %258 = vmatmul.mubr.f32.gmra.mxu0 %v186
    %v259 = vpop.f32.mrf.mxu0
    %v260 = vadd.f32 %v179, %v259
    %v261 = vpop.f32.mrf.mxu0
    %262 = vdwg.mxu0
    %v263 = vld [vmem:[%s1] sm:$0xff]
    %v264 = vld [vmem:[%s1 + $0x8] sm:$0xff]
    %265 = vset.pattern.permute.xlu0 0
    %266 = vperm.xlu0 %265, %v263
    %v267 = vpop.permute.xlu0 %266
    %268 = vset.pattern.permute.xlu0 0
    %269 = vperm.xlu0 %268, %v264
    %v270 = vpop.permute.xlu0 %269
    %vm271 = vcmp.eq.s32.totalorder %v267, %v64
    %vm272 = vcmp.eq.s32.totalorder %v270, %v64
    %v273 = vsel %vm271, 1, 0
    %v274 = vsel %vm272, 1, 0
    %v275 = vcvt.s32.f32 %v273
    %v276 = vcvt.s32.f32 %v274
    %v277 = vld [vmem:[%s5] sm:$0xff]
    %v278 = vld [vmem:[%s5 + $0x8] sm:$0xff]
    %v279 = vld [vmem:[%s5 + $0x10] sm:$0xff]
    %v280 = vld [vmem:[%s5 + $0x18] sm:$0xff]
    %v281 = vld [vmem:[%s5 + $0x20] sm:$0xff]
    %v282 = vld [vmem:[%s5 + $0x28] sm:$0xff]
    %v283 = vld [vmem:[%s5 + $0x30] sm:$0xff]
    %v284 = vld [vmem:[%s5 + $0x38] sm:$0xff]
    %v285 = vld [vmem:[%s5 + $0x40] sm:$0xff]
    %v286 = vld [vmem:[%s5 + $0x48] sm:$0xff]
    %v287 = vld [vmem:[%s5 + $0x50] sm:$0xff]
    %v288 = vld [vmem:[%s5 + $0x58] sm:$0xff]
    %v289 = vld [vmem:[%s5 + $0x60] sm:$0xff]
    %v290 = vld [vmem:[%s5 + $0x68] sm:$0xff]
    %v291 = vld [vmem:[%s5 + $0x70] sm:$0xff]
    %v292 = vld [vmem:[%s5 + $0x78] sm:$0xff]
    %293 = vmatprep.subr.mxu0 0.0
    %294 = vmatpush1.msra.mxu0 %v292
    %295 = vmatprep.subr.mxu0 0.0
    %296 = vmatpush1.msra.mxu0 %v291
    %297 = vmatprep.subr.mxu0 0.0
    %298 = vmatpush1.msra.mxu0 %v290
    %299 = vmatprep.subr.mxu0 0.0
    %300 = vmatpush1.msra.mxu0 %v289
    %301 = vmatprep.subr.mxu0 0.0
    %302 = vmatpush1.msra.mxu0 %v288
    %303 = vmatprep.subr.mxu0 0.0
    %304 = vmatpush1.msra.mxu0 %v287
    %305 = vmatprep.subr.mxu0 0.0
    %306 = vmatpush1.msra.mxu0 %v286
    %307 = vmatprep.subr.mxu0 0.0
    %308 = vmatpush1.msra.mxu0 %v285
    %309 = vmatprep.subr.mxu0 0.0
    %310 = vmatpush1.msra.mxu0 %v284
    %311 = vmatprep.subr.mxu0 0.0
    %312 = vmatpush1.msra.mxu0 %v283
    %313 = vmatprep.subr.mxu0 0.0
    %314 = vmatpush1.msra.mxu0 %v282
    %315 = vmatprep.subr.mxu0 0.0
    %316 = vmatpush1.msra.mxu0 %v281
    %317 = vmatprep.subr.mxu0 0.0
    %318 = vmatpush1.msra.mxu0 %v280
    %319 = vmatprep.subr.mxu0 0.0
    %320 = vmatpush1.msra.mxu0 %v279
    %321 = vmatprep.subr.mxu0 0.0
    %322 = vmatpush1.msra.mxu0 %v278
    %323 = vmatprep.subr.mxu0 0.0
    %324 = vmatpush1.msra.mxu0 %v277
    %325 = vmatprep.subr.mxu0 0.0
    %326 = vmatpush2.msra.mxu0 0.0
    %327 = vmatprep.subr.mxu0 0.0
    %328 = vmatpush2.msra.mxu0 0.0
    %329 = vmatprep.subr.mxu0 0.0
    %330 = vmatpush2.msra.mxu0 0.0
    %331 = vmatprep.subr.mxu0 0.0
    %332 = vmatpush2.msra.mxu0 0.0
    %333 = vmatprep.subr.mxu0 0.0
    %334 = vmatpush2.msra.mxu0 0.0
    %335 = vmatprep.subr.mxu0 0.0
    %336 = vmatpush2.msra.mxu0 0.0
    %337 = vmatprep.subr.mxu0 0.0
    %338 = vmatpush2.msra.mxu0 0.0
    %339 = vmatprep.subr.mxu0 0.0
    %340 = vmatpush2.msra.mxu0 0.0
    %341 = vmatprep.subr.mxu0 0.0
    %342 = vmatpush2.msra.mxu0 0.0
    %343 = vmatprep.subr.mxu0 0.0
    %344 = vmatpush2.msra.mxu0 0.0
    %345 = vmatprep.subr.mxu0 0.0
    %346 = vmatpush2.msra.mxu0 0.0
    %347 = vmatprep.subr.mxu0 0.0
    %348 = vmatpush2.msra.mxu0 0.0
    %349 = vmatprep.subr.mxu0 0.0
    %350 = vmatpush2.msra.mxu0 0.0
    %351 = vmatprep.subr.mxu0 0.0
    %352 = vmatpush2.msra.mxu0 0.0
    %353 = vmatprep.subr.mxu0 0.0
    %354 = vmatpush2.msra.mxu0 0.0
    %355 = vmatprep.subr.mxu0 0.0
    %356 = vmatpush2.msra.mxu0 0.0
    %357 = vmatprep.mubr.f32.mxu0 0.0
    %358 = vmatmul.mubr.f32.gmra.mxu0 %v275
    %v359 = vpop.f32.mrf.mxu0
    %v360 = vadd.f32 0.0, %v359
    %v361 = vpop.f32.mrf.mxu0
    %362 = vmatprep.mubr.f32.mxu0 0.0
    %363 = vmatmul.mubr.f32.gmra.mxu0 %v276
    %v364 = vpop.f32.mrf.mxu0
    %v365 = vadd.f32 0.0, %v364
    %v366 = vpop.f32.mrf.mxu0
    %367 = vdwg.mxu0
    %v368 = vld [vmem:[%s9] sm:$0xff]
    %v369 = vld [vmem:[%s9 + $0x8] sm:$0xff]
    %v370 = vld [vmem:[%s9 + $0x10] sm:$0xff]
    %v371 = vld [vmem:[%s9 + $0x18] sm:$0xff]
    %v372 = vld [vmem:[%s11] sm:$0x1]
    %v374 = vlaneseq
    %v375 = vshrl.u32 %v374, 7
    %v376 = vsub.s32 0, %v375
    %v377 = vrot.slane %v372, %v376
    %v380 = vsel %vm181, %v360, 0
    %v383 = vsel %vm181, %v365, 0
    %385 = vmatprep.subr.mxu0 0.0
    %386 = vmatpush1.msra.mxu0 0.0
    %387 = vmatprep.subr.mxu0 0.0
    %388 = vmatpush1.msra.mxu0 0.0
    %389 = vmatprep.subr.mxu0 0.0
    %390 = vmatpush1.msra.mxu0 0.0
    %391 = vmatprep.subr.mxu0 0.0
    %392 = vmatpush1.msra.mxu0 0.0
    %393 = vmatprep.subr.mxu0 0.0
    %394 = vmatpush1.msra.mxu0 0.0
    %395 = vmatprep.subr.mxu0 0.0
    %396 = vmatpush1.msra.mxu0 0.0
    %397 = vmatprep.subr.mxu0 0.0
    %398 = vmatpush1.msra.mxu0 0.0
    %399 = vmatprep.subr.mxu0 0.0
    %400 = vmatpush1.msra.mxu0 0.0
    %401 = vmatprep.subr.mxu0 0.0
    %402 = vmatpush1.msra.mxu0 0.0
    %403 = vmatprep.subr.mxu0 0.0
    %404 = vmatpush1.msra.mxu0 0.0
    %405 = vmatprep.subr.mxu0 0.0
    %406 = vmatpush1.msra.mxu0 0.0
    %407 = vmatprep.subr.mxu0 0.0
    %408 = vmatpush1.msra.mxu0 0.0
    %409 = vmatprep.subr.mxu0 0.0
    %410 = vmatpush1.msra.mxu0 %v371
    %411 = vmatprep.subr.mxu0 0.0
    %412 = vmatpush1.msra.mxu0 %v370
    %413 = vmatprep.subr.mxu0 0.0
    %414 = vmatpush1.msra.mxu0 %v369
    %415 = vmatprep.subr.mxu0 0.0
    %416 = vmatpush1.msra.mxu0 %v368
    %417 = vmatprep.subr.mxu0 0.0
    %418 = vmatpush2.msra.mxu0 0.0
    %419 = vmatprep.subr.mxu0 0.0
    %420 = vmatpush2.msra.mxu0 0.0
    %421 = vmatprep.subr.mxu0 0.0
    %422 = vmatpush2.msra.mxu0 0.0
    %423 = vmatprep.subr.mxu0 0.0
    %424 = vmatpush2.msra.mxu0 0.0
    %425 = vmatprep.subr.mxu0 0.0
    %426 = vmatpush2.msra.mxu0 0.0
    %427 = vmatprep.subr.mxu0 0.0
    %428 = vmatpush2.msra.mxu0 0.0
    %429 = vmatprep.subr.mxu0 0.0
    %430 = vmatpush2.msra.mxu0 0.0
    %431 = vmatprep.subr.mxu0 0.0
    %432 = vmatpush2.msra.mxu0 0.0
    %433 = vmatprep.subr.mxu0 0.0
    %434 = vmatpush2.msra.mxu0 0.0
    %435 = vmatprep.subr.mxu0 0.0
    %436 = vmatpush2.msra.mxu0 0.0
    %437 = vmatprep.subr.mxu0 0.0
    %438 = vmatpush2.msra.mxu0 0.0
    %439 = vmatprep.subr.mxu0 0.0
    %440 = vmatpush2.msra.mxu0 0.0
    %441 = vmatprep.subr.mxu0 0.0
    %442 = vmatpush2.msra.mxu0 0.0
    %443 = vmatprep.subr.mxu0 0.0
    %444 = vmatpush2.msra.mxu0 0.0
    %445 = vmatprep.subr.mxu0 0.0
    %446 = vmatpush2.msra.mxu0 0.0
    %447 = vmatprep.subr.mxu0 0.0
    %448 = vmatpush2.msra.mxu0 0.0
    %449 = vmatprep.mubr.f32.mxu0 0.0
    %450 = vmatmul.mubr.f32.gmra.mxu0 %v380
    %v451 = vpop.f32.mrf.mxu0
    %v452 = vadd.f32 %v377, %v451
    %v453 = vpop.f32.mrf.mxu0
    %454 = vmatprep.mubr.f32.mxu0 0.0
    %455 = vmatmul.mubr.f32.gmra.mxu0 %v383
    %v456 = vpop.f32.mrf.mxu0
    %v457 = vadd.f32 %v377, %v456
    %v458 = vpop.f32.mrf.mxu0
    %459 = vdwg.mxu0
    %v460 = vld [vmem:[%s2] sm:$0x3]
    %v461 = vld [vmem:[%s3] sm:$0x3]
    %v463 = vsel %vm181, %v460, 0
    %465 = vmatprep.subr.mxu0 0.0
    %466 = vmatpush1.msra.mxu0 0.0
    %467 = vmatprep.subr.mxu0 0.0
    %468 = vmatpush1.msra.mxu0 0.0
    %469 = vmatprep.subr.mxu0 0.0
    %470 = vmatpush1.msra.mxu0 0.0
    %471 = vmatprep.subr.mxu0 0.0
    %472 = vmatpush1.msra.mxu0 0.0
    %473 = vmatprep.subr.mxu0 0.0
    %474 = vmatpush1.msra.mxu0 0.0
    %475 = vmatprep.subr.mxu0 0.0
    %476 = vmatpush1.msra.mxu0 0.0
    %477 = vmatprep.subr.mxu0 0.0
    %478 = vmatpush1.msra.mxu0 0.0
    %479 = vmatprep.subr.mxu0 0.0
    %480 = vmatpush1.msra.mxu0 0.0
    %481 = vmatprep.subr.mxu0 0.0
    %482 = vmatpush1.msra.mxu0 0.0
    %483 = vmatprep.subr.mxu0 0.0
    %484 = vmatpush1.msra.mxu0 0.0
    %485 = vmatprep.subr.mxu0 0.0
    %486 = vmatpush1.msra.mxu0 0.0
    %487 = vmatprep.subr.mxu0 0.0
    %488 = vmatpush1.msra.mxu0 0.0
    %489 = vmatprep.subr.mxu0 0.0
    %490 = vmatpush1.msra.mxu0 %v54
    %491 = vmatprep.subr.mxu0 0.0
    %492 = vmatpush1.msra.mxu0 %v53
    %493 = vmatprep.subr.mxu0 0.0
    %494 = vmatpush1.msra.mxu0 %v52
    %495 = vmatprep.subr.mxu0 0.0
    %496 = vmatpush1.msra.mxu0 %v51
    %497 = vmatprep.subr.mxu0 0.0
    %498 = vmatpush2.msra.mxu0 0.0
    %499 = vmatprep.subr.mxu0 0.0
    %500 = vmatpush2.msra.mxu0 0.0
    %501 = vmatprep.subr.mxu0 0.0
    %502 = vmatpush2.msra.mxu0 0.0
    %503 = vmatprep.subr.mxu0 0.0
    %504 = vmatpush2.msra.mxu0 0.0
    %505 = vmatprep.subr.mxu0 0.0
    %506 = vmatpush2.msra.mxu0 0.0
    %507 = vmatprep.subr.mxu0 0.0
    %508 = vmatpush2.msra.mxu0 0.0
    %509 = vmatprep.subr.mxu0 0.0
    %510 = vmatpush2.msra.mxu0 0.0
    %511 = vmatprep.subr.mxu0 0.0
    %512 = vmatpush2.msra.mxu0 0.0
    %513 = vmatprep.subr.mxu0 0.0
    %514 = vmatpush2.msra.mxu0 0.0
    %515 = vmatprep.subr.mxu0 0.0
    %516 = vmatpush2.msra.mxu0 0.0
    %517 = vmatprep.subr.mxu0 0.0
    %518 = vmatpush2.msra.mxu0 0.0
    %519 = vmatprep.subr.mxu0 0.0
    %520 = vmatpush2.msra.mxu0 0.0
    %521 = vmatprep.subr.mxu0 0.0
    %522 = vmatpush2.msra.mxu0 0.0
    %523 = vmatprep.subr.mxu0 0.0
    %524 = vmatpush2.msra.mxu0 0.0
    %525 = vmatprep.subr.mxu0 0.0
    %526 = vmatpush2.msra.mxu0 0.0
    %527 = vmatprep.subr.mxu0 0.0
    %528 = vmatpush2.msra.mxu0 0.0
    %529 = vmatprep.mubr.f32.mxu0 0.0
    %530 = vmatmul.mubr.f32.gmra.mxu0 %v463
    %v531 = vpop.f32.mrf.mxu0
    %v532 = vadd.f32 0.0, %v531
    %v533 = vpop.f32.mrf.mxu0
    %534 = vdwg.mxu0
    %v535 = vadd.f32 %v255, %v532
    %v536 = vxor.u32 %v535, 2147483648
    %v537 = vmul.f32 %v536, 1.442695
    %v538 = vpow.pop %v537
    %v539 = vadd.f32 %v538, 1.0
    %v540 = vrcp.pop %v539
    %v541 = vmul.f32 1.0, %v540
    %v542 = vtanh.pop %v535
    %544 = vrot.lane.b32.xlu0 %v461, 32
    %v545 = vpop.permute.xlu0 %544
    %v547 = vmul.f32 %v541, %v545
    %549 = vrot.lane.b32.xlu0 %v542, 64
    %v550 = vpop.permute.xlu0 %549
    %v552 = vmul.f32 %v541, %v550
    %554 = vrot.lane.b32.xlu0 %v552, 32
    %v555 = vpop.permute.xlu0 %554
    %v557 = vadd.f32 %v547, %v555
    %v558 = vtanh.pop %v557
    %560 = vrot.lane.b32.xlu0 %v558, 64
    %v561 = vpop.permute.xlu0 %560
    %v563 = vmul.f32 %v541, %v561
    %565 = vrot.lane.b32.xlu0 %v563, 32
    %v566 = vpop.permute.xlu0 %565
    %vm568 = vcmask 254976
    %569 = vst.msk [vmem:[#allocation2] sm:$0x3] %vm568, %v566
    %v570 = vsel %vm181, %v566, 0
    %572 = vmatprep.subr.mxu0 0.0
    %573 = vmatpush1.msra.mxu0 0.0
    %574 = vmatprep.subr.mxu0 0.0
    %575 = vmatpush1.msra.mxu0 0.0
    %576 = vmatprep.subr.mxu0 0.0
    %577 = vmatpush1.msra.mxu0 0.0
    %578 = vmatprep.subr.mxu0 0.0
    %579 = vmatpush1.msra.mxu0 0.0
    %580 = vmatprep.subr.mxu0 0.0
    %581 = vmatpush1.msra.mxu0 0.0
    %582 = vmatprep.subr.mxu0 0.0
    %583 = vmatpush1.msra.mxu0 0.0
    %584 = vmatprep.subr.mxu0 0.0
    %585 = vmatpush1.msra.mxu0 0.0
    %586 = vmatprep.subr.mxu0 0.0
    %587 = vmatpush1.msra.mxu0 0.0
    %588 = vmatprep.subr.mxu0 0.0
    %589 = vmatpush1.msra.mxu0 0.0
    %590 = vmatprep.subr.mxu0 0.0
    %591 = vmatpush1.msra.mxu0 0.0
    %592 = vmatprep.subr.mxu0 0.0
    %593 = vmatpush1.msra.mxu0 0.0
    %594 = vmatprep.subr.mxu0 0.0
    %595 = vmatpush1.msra.mxu0 0.0
    %596 = vmatprep.subr.mxu0 0.0
    %597 = vmatpush1.msra.mxu0 %v54
    %598 = vmatprep.subr.mxu0 0.0
    %599 = vmatpush1.msra.mxu0 %v53
    %600 = vmatprep.subr.mxu0 0.0
    %601 = vmatpush1.msra.mxu0 %v52
    %602 = vmatprep.subr.mxu0 0.0
    %603 = vmatpush1.msra.mxu0 %v51
    %604 = vmatprep.subr.mxu0 0.0
    %605 = vmatpush2.msra.mxu0 0.0
    %606 = vmatprep.subr.mxu0 0.0
    %607 = vmatpush2.msra.mxu0 0.0
    %608 = vmatprep.subr.mxu0 0.0
    %609 = vmatpush2.msra.mxu0 0.0
    %610 = vmatprep.subr.mxu0 0.0
    %611 = vmatpush2.msra.mxu0 0.0
    %612 = vmatprep.subr.mxu0 0.0
    %613 = vmatpush2.msra.mxu0 0.0
    %614 = vmatprep.subr.mxu0 0.0
    %615 = vmatpush2.msra.mxu0 0.0
    %616 = vmatprep.subr.mxu0 0.0
    %617 = vmatpush2.msra.mxu0 0.0
    %618 = vmatprep.subr.mxu0 0.0
    %619 = vmatpush2.msra.mxu0 0.0
    %620 = vmatprep.subr.mxu0 0.0
    %621 = vmatpush2.msra.mxu0 0.0
    %622 = vmatprep.subr.mxu0 0.0
    %623 = vmatpush2.msra.mxu0 0.0
    %624 = vmatprep.subr.mxu0 0.0
    %625 = vmatpush2.msra.mxu0 0.0
    %626 = vmatprep.subr.mxu0 0.0
    %627 = vmatpush2.msra.mxu0 0.0
    %628 = vmatprep.subr.mxu0 0.0
    %629 = vmatpush2.msra.mxu0 0.0
    %630 = vmatprep.subr.mxu0 0.0
    %631 = vmatpush2.msra.mxu0 0.0
    %632 = vmatprep.subr.mxu0 0.0
    %633 = vmatpush2.msra.mxu0 0.0
    %634 = vmatprep.subr.mxu0 0.0
    %635 = vmatpush2.msra.mxu0 0.0
    %636 = vmatprep.mubr.f32.mxu0 0.0
    %637 = vmatmul.mubr.f32.gmra.mxu0 %v570
    %v638 = vpop.f32.mrf.mxu0
    %v639 = vadd.f32 0.0, %v638
    %v640 = vpop.f32.mrf.mxu0
    %641 = vdwg.mxu0
    %v643 = vrot.slane %v639, 6
    %v645 = vadd.f32 %v255, %v643
    %v646 = vxor.u32 %v645, 2147483648
    %v647 = vmul.f32 %v646, 1.442695
    %v648 = vpow.pop %v647
    %v649 = vadd.f32 %v648, 1.0
    %v650 = vrcp.pop %v649
    %v651 = vmul.f32 1.0, %v650
    %v652 = vtanh.pop %v645
    %v654 = vrot.slane %v557, 6
    %v656 = vmul.f32 %v651, %v654
    %658 = vrot.lane.b32.xlu0 %v652, 64
    %v659 = vpop.permute.xlu0 %658
    %v661 = vmul.f32 %v651, %v659
    %663 = vrot.lane.b32.xlu0 %v661, 32
    %v664 = vpop.permute.xlu0 %663
    %v666 = vadd.f32 %v656, %v664
    %v667 = vtanh.pop %v666
    %669 = vrot.lane.b32.xlu0 %v667, 64
    %v670 = vpop.permute.xlu0 %669
    %v672 = vmul.f32 %v651, %v670
    %674 = vrot.lane.b32.xlu0 %v672, 32
    %v675 = vpop.permute.xlu0 %674
    %vm677 = vcmask 257026
    %678 = vst.msk [vmem:[#allocation2] sm:$0xc] %vm677, %v675
    %v679 = vrot.slane %v672, 2
    %680 = vrot.lane.b32.xlu0 %v679, 32
    %v681 = vpop.permute.xlu0 %680
    %v682 = vsel %vm181, %v681, 0
    %684 = vmatprep.subr.mxu0 0.0
    %685 = vmatpush1.msra.mxu0 0.0
    %686 = vmatprep.subr.mxu0 0.0
    %687 = vmatpush1.msra.mxu0 0.0
    %688 = vmatprep.subr.mxu0 0.0
    %689 = vmatpush1.msra.mxu0 0.0
    %690 = vmatprep.subr.mxu0 0.0
    %691 = vmatpush1.msra.mxu0 0.0
    %692 = vmatprep.subr.mxu0 0.0
    %693 = vmatpush1.msra.mxu0 0.0
    %694 = vmatprep.subr.mxu0 0.0
    %695 = vmatpush1.msra.mxu0 0.0
    %696 = vmatprep.subr.mxu0 0.0
    %697 = vmatpush1.msra.mxu0 0.0
    %698 = vmatprep.subr.mxu0 0.0
    %699 = vmatpush1.msra.mxu0 0.0
    %700 = vmatprep.subr.mxu0 0.0
    %701 = vmatpush1.msra.mxu0 0.0
    %702 = vmatprep.subr.mxu0 0.0
    %703 = vmatpush1.msra.mxu0 0.0
    %704 = vmatprep.subr.mxu0 0.0
    %705 = vmatpush1.msra.mxu0 0.0
    %706 = vmatprep.subr.mxu0 0.0
    %707 = vmatpush1.msra.mxu0 0.0
    %708 = vmatprep.subr.mxu0 0.0
    %709 = vmatpush1.msra.mxu0 %v54
    %710 = vmatprep.subr.mxu0 0.0
    %711 = vmatpush1.msra.mxu0 %v53
    %712 = vmatprep.subr.mxu0 0.0
    %713 = vmatpush1.msra.mxu0 %v52
    %714 = vmatprep.subr.mxu0 0.0
    %715 = vmatpush1.msra.mxu0 %v51
    %716 = vmatprep.subr.mxu0 0.0
    %717 = vmatpush2.msra.mxu0 0.0
    %718 = vmatprep.subr.mxu0 0.0
    %719 = vmatpush2.msra.mxu0 0.0
    %720 = vmatprep.subr.mxu0 0.0
    %721 = vmatpush2.msra.mxu0 0.0
    %722 = vmatprep.subr.mxu0 0.0
    %723 = vmatpush2.msra.mxu0 0.0
    %724 = vmatprep.subr.mxu0 0.0
    %725 = vmatpush2.msra.mxu0 0.0
    %726 = vmatprep.subr.mxu0 0.0
    %727 = vmatpush2.msra.mxu0 0.0
    %728 = vmatprep.subr.mxu0 0.0
    %729 = vmatpush2.msra.mxu0 0.0
    %730 = vmatprep.subr.mxu0 0.0
    %731 = vmatpush2.msra.mxu0 0.0
    %732 = vmatprep.subr.mxu0 0.0
    %733 = vmatpush2.msra.mxu0 0.0
    %734 = vmatprep.subr.mxu0 0.0
    %735 = vmatpush2.msra.mxu0 0.0
    %736 = vmatprep.subr.mxu0 0.0
    %737 = vmatpush2.msra.mxu0 0.0
    %738 = vmatprep.subr.mxu0 0.0
    %739 = vmatpush2.msra.mxu0 0.0
    %740 = vmatprep.subr.mxu0 0.0
    %741 = vmatpush2.msra.mxu0 0.0
    %742 = vmatprep.subr.mxu0 0.0
    %743 = vmatpush2.msra.mxu0 0.0
    %744 = vmatprep.subr.mxu0 0.0
    %745 = vmatpush2.msra.mxu0 0.0
    %746 = vmatprep.subr.mxu0 0.0
    %747 = vmatpush2.msra.mxu0 0.0
    %748 = vmatprep.mubr.f32.mxu0 0.0
    %749 = vmatmul.mubr.f32.gmra.mxu0 %v682
    %v750 = vpop.f32.mrf.mxu0
    %v751 = vadd.f32 0.0, %v750
    %v752 = vpop.f32.mrf.mxu0
    %753 = vdwg.mxu0
    %v755 = vrot.slane %v751, 4
    %v757 = vadd.f32 %v255, %v755
    %v758 = vxor.u32 %v757, 2147483648
    %v759 = vmul.f32 %v758, 1.442695
    %v760 = vpow.pop %v759
    %v761 = vadd.f32 %v760, 1.0
    %v762 = vrcp.pop %v761
    %v763 = vmul.f32 1.0, %v762
    %v764 = vtanh.pop %v757
    %v766 = vrot.slane %v666, 6
    %v768 = vmul.f32 %v763, %v766
    %770 = vrot.lane.b32.xlu0 %v764, 64
    %v771 = vpop.permute.xlu0 %770
    %v773 = vmul.f32 %v763, %v771
    %775 = vrot.lane.b32.xlu0 %v773, 32
    %v776 = vpop.permute.xlu0 %775
    %v778 = vadd.f32 %v768, %v776
    %v779 = vtanh.pop %v778
    %781 = vrot.lane.b32.xlu0 %v779, 64
    %v782 = vpop.permute.xlu0 %781
    %v784 = vmul.f32 %v763, %v782
    %786 = vrot.lane.b32.xlu0 %v784, 32
    %v787 = vpop.permute.xlu0 %786
    %vm789 = vcmask 259076
    %790 = vst.msk [vmem:[#allocation2] sm:$0x30] %vm789, %v787
    %v791 = vrot.slane %v784, 4
    %792 = vrot.lane.b32.xlu0 %v791, 32
    %v793 = vpop.permute.xlu0 %792
    %v794 = vsel %vm181, %v793, 0
    %796 = vmatprep.subr.mxu0 0.0
    %797 = vmatpush1.msra.mxu0 0.0
    %798 = vmatprep.subr.mxu0 0.0
    %799 = vmatpush1.msra.mxu0 0.0
    %800 = vmatprep.subr.mxu0 0.0
    %801 = vmatpush1.msra.mxu0 0.0
    %802 = vmatprep.subr.mxu0 0.0
    %803 = vmatpush1.msra.mxu0 0.0
    %804 = vmatprep.subr.mxu0 0.0
    %805 = vmatpush1.msra.mxu0 0.0
    %806 = vmatprep.subr.mxu0 0.0
    %807 = vmatpush1.msra.mxu0 0.0
    %808 = vmatprep.subr.mxu0 0.0
    %809 = vmatpush1.msra.mxu0 0.0
    %810 = vmatprep.subr.mxu0 0.0
    %811 = vmatpush1.msra.mxu0 0.0
    %812 = vmatprep.subr.mxu0 0.0
    %813 = vmatpush1.msra.mxu0 0.0
    %814 = vmatprep.subr.mxu0 0.0
    %815 = vmatpush1.msra.mxu0 0.0
    %816 = vmatprep.subr.mxu0 0.0
    %817 = vmatpush1.msra.mxu0 0.0
    %818 = vmatprep.subr.mxu0 0.0
    %819 = vmatpush1.msra.mxu0 0.0
    %820 = vmatprep.subr.mxu0 0.0
    %821 = vmatpush1.msra.mxu0 %v54
    %822 = vmatprep.subr.mxu0 0.0
    %823 = vmatpush1.msra.mxu0 %v53
    %824 = vmatprep.subr.mxu0 0.0
    %825 = vmatpush1.msra.mxu0 %v52
    %826 = vmatprep.subr.mxu0 0.0
    %827 = vmatpush1.msra.mxu0 %v51
    %828 = vmatprep.subr.mxu0 0.0
    %829 = vmatpush2.msra.mxu0 0.0
    %830 = vmatprep.subr.mxu0 0.0
    %831 = vmatpush2.msra.mxu0 0.0
    %832 = vmatprep.subr.mxu0 0.0
    %833 = vmatpush2.msra.mxu0 0.0
    %834 = vmatprep.subr.mxu0 0.0
    %835 = vmatpush2.msra.mxu0 0.0
    %836 = vmatprep.subr.mxu0 0.0
    %837 = vmatpush2.msra.mxu0 0.0
    %838 = vmatprep.subr.mxu0 0.0
    %839 = vmatpush2.msra.mxu0 0.0
    %840 = vmatprep.subr.mxu0 0.0
    %841 = vmatpush2.msra.mxu0 0.0
    %842 = vmatprep.subr.mxu0 0.0
    %843 = vmatpush2.msra.mxu0 0.0
    %844 = vmatprep.subr.mxu0 0.0
    %845 = vmatpush2.msra.mxu0 0.0
    %846 = vmatprep.subr.mxu0 0.0
    %847 = vmatpush2.msra.mxu0 0.0
    %848 = vmatprep.subr.mxu0 0.0
    %849 = vmatpush2.msra.mxu0 0.0
    %850 = vmatprep.subr.mxu0 0.0
    %851 = vmatpush2.msra.mxu0 0.0
    %852 = vmatprep.subr.mxu0 0.0
    %853 = vmatpush2.msra.mxu0 0.0
    %854 = vmatprep.subr.mxu0 0.0
    %855 = vmatpush2.msra.mxu0 0.0
    %856 = vmatprep.subr.mxu0 0.0
    %857 = vmatpush2.msra.mxu0 0.0
    %858 = vmatprep.subr.mxu0 0.0
    %859 = vmatpush2.msra.mxu0 0.0
    %860 = vmatprep.mubr.f32.mxu0 0.0
    %861 = vmatmul.mubr.f32.gmra.mxu0 %v794
    %v862 = vpop.f32.mrf.mxu0
    %v863 = vadd.f32 0.0, %v862
    %v864 = vpop.f32.mrf.mxu0
    %865 = vdwg.mxu0
    %v867 = vrot.slane %v863, 2
    %v869 = vadd.f32 %v255, %v867
    %v870 = vxor.u32 %v869, 2147483648
    %v871 = vmul.f32 %v870, 1.442695
    %v872 = vpow.pop %v871
    %v873 = vadd.f32 %v872, 1.0
    %v874 = vrcp.pop %v873
    %v875 = vmul.f32 1.0, %v874
    %v876 = vtanh.pop %v869
    %v878 = vrot.slane %v778, 6
    %v880 = vmul.f32 %v875, %v878
    %882 = vrot.lane.b32.xlu0 %v876, 64
    %v883 = vpop.permute.xlu0 %882
    %v885 = vmul.f32 %v875, %v883
    %887 = vrot.lane.b32.xlu0 %v885, 32
    %v888 = vpop.permute.xlu0 %887
    %v890 = vadd.f32 %v880, %v888
    %v891 = vtanh.pop %v890
    %893 = vrot.lane.b32.xlu0 %v891, 64
    %v894 = vpop.permute.xlu0 %893
    %v896 = vmul.f32 %v875, %v894
    %898 = vrot.lane.b32.xlu0 %v896, 32
    %v899 = vpop.permute.xlu0 %898
    %vm901 = vcmask 261126
    %902 = vst.msk [vmem:[#allocation2] sm:$0xc0] %vm901, %v899
    %v903 = vrot.slane %v896, 6
    %904 = vrot.lane.b32.xlu0 %v903, 32
    %v905 = vpop.permute.xlu0 %904
    %v906 = vsel %vm181, %v905, 0
    %908 = vmatprep.subr.mxu0 0.0
    %909 = vmatpush1.msra.mxu0 0.0
    %910 = vmatprep.subr.mxu0 0.0
    %911 = vmatpush1.msra.mxu0 0.0
    %912 = vmatprep.subr.mxu0 0.0
    %913 = vmatpush1.msra.mxu0 0.0
    %914 = vmatprep.subr.mxu0 0.0
    %915 = vmatpush1.msra.mxu0 0.0
    %916 = vmatprep.subr.mxu0 0.0
    %917 = vmatpush1.msra.mxu0 0.0
    %918 = vmatprep.subr.mxu0 0.0
    %919 = vmatpush1.msra.mxu0 0.0
    %920 = vmatprep.subr.mxu0 0.0
    %921 = vmatpush1.msra.mxu0 0.0
    %922 = vmatprep.subr.mxu0 0.0
    %923 = vmatpush1.msra.mxu0 0.0
    %924 = vmatprep.subr.mxu0 0.0
    %925 = vmatpush1.msra.mxu0 0.0
    %926 = vmatprep.subr.mxu0 0.0
    %927 = vmatpush1.msra.mxu0 0.0
    %928 = vmatprep.subr.mxu0 0.0
    %929 = vmatpush1.msra.mxu0 0.0
    %930 = vmatprep.subr.mxu0 0.0
    %931 = vmatpush1.msra.mxu0 0.0
    %932 = vmatprep.subr.mxu0 0.0
    %933 = vmatpush1.msra.mxu0 %v54
    %934 = vmatprep.subr.mxu0 0.0
    %935 = vmatpush1.msra.mxu0 %v53
    %936 = vmatprep.subr.mxu0 0.0
    %937 = vmatpush1.msra.mxu0 %v52
    %938 = vmatprep.subr.mxu0 0.0
    %939 = vmatpush1.msra.mxu0 %v51
    %940 = vmatprep.subr.mxu0 0.0
    %941 = vmatpush2.msra.mxu0 0.0
    %942 = vmatprep.subr.mxu0 0.0
    %943 = vmatpush2.msra.mxu0 0.0
    %944 = vmatprep.subr.mxu0 0.0
    %945 = vmatpush2.msra.mxu0 0.0
    %946 = vmatprep.subr.mxu0 0.0
    %947 = vmatpush2.msra.mxu0 0.0
    %948 = vmatprep.subr.mxu0 0.0
    %949 = vmatpush2.msra.mxu0 0.0
    %950 = vmatprep.subr.mxu0 0.0
    %951 = vmatpush2.msra.mxu0 0.0
    %952 = vmatprep.subr.mxu0 0.0
    %953 = vmatpush2.msra.mxu0 0.0
    %954 = vmatprep.subr.mxu0 0.0
    %955 = vmatpush2.msra.mxu0 0.0
    %956 = vmatprep.subr.mxu0 0.0
    %957 = vmatpush2.msra.mxu0 0.0
    %958 = vmatprep.subr.mxu0 0.0
    %959 = vmatpush2.msra.mxu0 0.0
    %960 = vmatprep.subr.mxu0 0.0
    %961 = vmatpush2.msra.mxu0 0.0
    %962 = vmatprep.subr.mxu0 0.0
    %963 = vmatpush2.msra.mxu0 0.0
    %964 = vmatprep.subr.mxu0 0.0
    %965 = vmatpush2.msra.mxu0 0.0
    %966 = vmatprep.subr.mxu0 0.0
    %967 = vmatpush2.msra.mxu0 0.0
    %968 = vmatprep.subr.mxu0 0.0
    %969 = vmatpush2.msra.mxu0 0.0
    %970 = vmatprep.subr.mxu0 0.0
    %971 = vmatpush2.msra.mxu0 0.0
    %972 = vmatprep.mubr.f32.mxu0 0.0
    %973 = vmatmul.mubr.f32.gmra.mxu0 %v906
    %v974 = vpop.f32.mrf.mxu0
    %v975 = vadd.f32 0.0, %v974
    %v976 = vpop.f32.mrf.mxu0
    %977 = vdwg.mxu0
    %v978 = vadd.f32 %v260, %v975
    %v979 = vxor.u32 %v978, 2147483648
    %v980 = vmul.f32 %v979, 1.442695
    %v981 = vpow.pop %v980
    %v982 = vadd.f32 %v981, 1.0
    %v983 = vrcp.pop %v982
    %v984 = vmul.f32 1.0, %v983
    %v985 = vtanh.pop %v978
    %v987 = vrot.slane %v890, 6
    %v989 = vmul.f32 %v984, %v987
    %991 = vrot.lane.b32.xlu0 %v985, 64
    %v992 = vpop.permute.xlu0 %991
    %v994 = vmul.f32 %v984, %v992
    %996 = vrot.lane.b32.xlu0 %v994, 32
    %v997 = vpop.permute.xlu0 %996
    %v999 = vadd.f32 %v989, %v997
    %v1000 = vtanh.pop %v999
    %1002 = vrot.lane.b32.xlu0 %v1000, 64
    %v1003 = vpop.permute.xlu0 %1002
    %v1005 = vmul.f32 %v984, %v1003
    %1007 = vrot.lane.b32.xlu0 %v1005, 32
    %v1008 = vpop.permute.xlu0 %1007
    %1010 = vst.msk [vmem:[#allocation2 + $0x8] sm:$0x3] %vm568, %v1008
    %v1011 = vsel %vm181, %v1008, 0
    %1013 = vmatprep.subr.mxu0 0.0
    %1014 = vmatpush1.msra.mxu0 0.0
    %1015 = vmatprep.subr.mxu0 0.0
    %1016 = vmatpush1.msra.mxu0 0.0
    %1017 = vmatprep.subr.mxu0 0.0
    %1018 = vmatpush1.msra.mxu0 0.0
    %1019 = vmatprep.subr.mxu0 0.0
    %1020 = vmatpush1.msra.mxu0 0.0
    %1021 = vmatprep.subr.mxu0 0.0
    %1022 = vmatpush1.msra.mxu0 0.0
    %1023 = vmatprep.subr.mxu0 0.0
    %1024 = vmatpush1.msra.mxu0 0.0
    %1025 = vmatprep.subr.mxu0 0.0
    %1026 = vmatpush1.msra.mxu0 0.0
    %1027 = vmatprep.subr.mxu0 0.0
    %1028 = vmatpush1.msra.mxu0 0.0
    %1029 = vmatprep.subr.mxu0 0.0
    %1030 = vmatpush1.msra.mxu0 0.0
    %1031 = vmatprep.subr.mxu0 0.0
    %1032 = vmatpush1.msra.mxu0 0.0
    %1033 = vmatprep.subr.mxu0 0.0
    %1034 = vmatpush1.msra.mxu0 0.0
    %1035 = vmatprep.subr.mxu0 0.0
    %1036 = vmatpush1.msra.mxu0 0.0
    %1037 = vmatprep.subr.mxu0 0.0
    %1038 = vmatpush1.msra.mxu0 %v54
    %1039 = vmatprep.subr.mxu0 0.0
    %1040 = vmatpush1.msra.mxu0 %v53
    %1041 = vmatprep.subr.mxu0 0.0
    %1042 = vmatpush1.msra.mxu0 %v52
    %1043 = vmatprep.subr.mxu0 0.0
    %1044 = vmatpush1.msra.mxu0 %v51
    %1045 = vmatprep.subr.mxu0 0.0
    %1046 = vmatpush2.msra.mxu0 0.0
    %1047 = vmatprep.subr.mxu0 0.0
    %1048 = vmatpush2.msra.mxu0 0.0
    %1049 = vmatprep.subr.mxu0 0.0
    %1050 = vmatpush2.msra.mxu0 0.0
    %1051 = vmatprep.subr.mxu0 0.0
    %1052 = vmatpush2.msra.mxu0 0.0
    %1053 = vmatprep.subr.mxu0 0.0
    %1054 = vmatpush2.msra.mxu0 0.0
    %1055 = vmatprep.subr.mxu0 0.0
    %1056 = vmatpush2.msra.mxu0 0.0
    %1057 = vmatprep.subr.mxu0 0.0
    %1058 = vmatpush2.msra.mxu0 0.0
    %1059 = vmatprep.subr.mxu0 0.0
    %1060 = vmatpush2.msra.mxu0 0.0
    %1061 = vmatprep.subr.mxu0 0.0
    %1062 = vmatpush2.msra.mxu0 0.0
    %1063 = vmatprep.subr.mxu0 0.0
    %1064 = vmatpush2.msra.mxu0 0.0
    %1065 = vmatprep.subr.mxu0 0.0
    %1066 = vmatpush2.msra.mxu0 0.0
    %1067 = vmatprep.subr.mxu0 0.0
    %1068 = vmatpush2.msra.mxu0 0.0
    %1069 = vmatprep.subr.mxu0 0.0
    %1070 = vmatpush2.msra.mxu0 0.0
    %1071 = vmatprep.subr.mxu0 0.0
    %1072 = vmatpush2.msra.mxu0 0.0
    %1073 = vmatprep.subr.mxu0 0.0
    %1074 = vmatpush2.msra.mxu0 0.0
    %1075 = vmatprep.subr.mxu0 0.0
    %1076 = vmatpush2.msra.mxu0 0.0
    %1077 = vmatprep.mubr.f32.mxu0 0.0
    %1078 = vmatmul.mubr.f32.gmra.mxu0 %v1011
    %v1079 = vpop.f32.mrf.mxu0
    %v1080 = vadd.f32 0.0, %v1079
    %v1081 = vpop.f32.mrf.mxu0
    %1082 = vdwg.mxu0
    %v1084 = vrot.slane %v1080, 6
    %v1086 = vadd.f32 %v260, %v1084
    %v1087 = vxor.u32 %v1086, 2147483648
    %v1088 = vmul.f32 %v1087, 1.442695
    %v1089 = vpow.pop %v1088
    %v1090 = vadd.f32 %v1089, 1.0
    %v1091 = vrcp.pop %v1090
    %v1092 = vmul.f32 1.0, %v1091
    %v1093 = vtanh.pop %v1086
    %v1095 = vrot.slane %v999, 6
    %v1097 = vmul.f32 %v1092, %v1095
    %1099 = vrot.lane.b32.xlu0 %v1093, 64
    %v1100 = vpop.permute.xlu0 %1099
    %v1102 = vmul.f32 %v1092, %v1100
    %1104 = vrot.lane.b32.xlu0 %v1102, 32
    %v1105 = vpop.permute.xlu0 %1104
    %v1107 = vadd.f32 %v1097, %v1105
    %v1108 = vtanh.pop %v1107
    %1110 = vrot.lane.b32.xlu0 %v1108, 64
    %v1111 = vpop.permute.xlu0 %1110
    %v1113 = vmul.f32 %v1092, %v1111
    %1115 = vrot.lane.b32.xlu0 %v1113, 32
    %v1116 = vpop.permute.xlu0 %1115
    %1118 = vst.msk [vmem:[#allocation2 + $0x8] sm:$0xc] %vm677, %v1116
    %v1119 = vrot.slane %v1113, 2
    %1120 = vrot.lane.b32.xlu0 %v1119, 32
    %v1121 = vpop.permute.xlu0 %1120
    %v1122 = vsel %vm181, %v1121, 0
    %1124 = vmatprep.subr.mxu0 0.0
    %1125 = vmatpush1.msra.mxu0 0.0
    %1126 = vmatprep.subr.mxu0 0.0
    %1127 = vmatpush1.msra.mxu0 0.0
    %1128 = vmatprep.subr.mxu0 0.0
    %1129 = vmatpush1.msra.mxu0 0.0
    %1130 = vmatprep.subr.mxu0 0.0
    %1131 = vmatpush1.msra.mxu0 0.0
    %1132 = vmatprep.subr.mxu0 0.0
    %1133 = vmatpush1.msra.mxu0 0.0
    %1134 = vmatprep.subr.mxu0 0.0
    %1135 = vmatpush1.msra.mxu0 0.0
    %1136 = vmatprep.subr.mxu0 0.0
    %1137 = vmatpush1.msra.mxu0 0.0
    %1138 = vmatprep.subr.mxu0 0.0
    %1139 = vmatpush1.msra.mxu0 0.0
    %1140 = vmatprep.subr.mxu0 0.0
    %1141 = vmatpush1.msra.mxu0 0.0
    %1142 = vmatprep.subr.mxu0 0.0
    %1143 = vmatpush1.msra.mxu0 0.0
    %1144 = vmatprep.subr.mxu0 0.0
    %1145 = vmatpush1.msra.mxu0 0.0
    %1146 = vmatprep.subr.mxu0 0.0
    %1147 = vmatpush1.msra.mxu0 0.0
    %1148 = vmatprep.subr.mxu0 0.0
    %1149 = vmatpush1.msra.mxu0 %v54
    %1150 = vmatprep.subr.mxu0 0.0
    %1151 = vmatpush1.msra.mxu0 %v53
    %1152 = vmatprep.subr.mxu0 0.0
    %1153 = vmatpush1.msra.mxu0 %v52
    %1154 = vmatprep.subr.mxu0 0.0
    %1155 = vmatpush1.msra.mxu0 %v51
    %1156 = vmatprep.subr.mxu0 0.0
    %1157 = vmatpush2.msra.mxu0 0.0
    %1158 = vmatprep.subr.mxu0 0.0
    %1159 = vmatpush2.msra.mxu0 0.0
    %1160 = vmatprep.subr.mxu0 0.0
    %1161 = vmatpush2.msra.mxu0 0.0
    %1162 = vmatprep.subr.mxu0 0.0
    %1163 = vmatpush2.msra.mxu0 0.0
    %1164 = vmatprep.subr.mxu0 0.0
    %1165 = vmatpush2.msra.mxu0 0.0
    %1166 = vmatprep.subr.mxu0 0.0
    %1167 = vmatpush2.msra.mxu0 0.0
    %1168 = vmatprep.subr.mxu0 0.0
    %1169 = vmatpush2.msra.mxu0 0.0
    %1170 = vmatprep.subr.mxu0 0.0
    %1171 = vmatpush2.msra.mxu0 0.0
    %1172 = vmatprep.subr.mxu0 0.0
    %1173 = vmatpush2.msra.mxu0 0.0
    %1174 = vmatprep.subr.mxu0 0.0
    %1175 = vmatpush2.msra.mxu0 0.0
    %1176 = vmatprep.subr.mxu0 0.0
    %1177 = vmatpush2.msra.mxu0 0.0
    %1178 = vmatprep.subr.mxu0 0.0
    %1179 = vmatpush2.msra.mxu0 0.0
    %1180 = vmatprep.subr.mxu0 0.0
    %1181 = vmatpush2.msra.mxu0 0.0
    %1182 = vmatprep.subr.mxu0 0.0
    %1183 = vmatpush2.msra.mxu0 0.0
    %1184 = vmatprep.subr.mxu0 0.0
    %1185 = vmatpush2.msra.mxu0 0.0
    %1186 = vmatprep.subr.mxu0 0.0
    %1187 = vmatpush2.msra.mxu0 0.0
    %1188 = vmatprep.mubr.f32.mxu0 0.0
    %1189 = vmatmul.mubr.f32.gmra.mxu0 %v1122
    %v1190 = vpop.f32.mrf.mxu0
    %v1191 = vadd.f32 0.0, %v1190
    %v1192 = vpop.f32.mrf.mxu0
    %1193 = vdwg.mxu0
    %v1195 = vrot.slane %v1191, 4
    %v1197 = vadd.f32 %v260, %v1195
    %v1198 = vxor.u32 %v1197, 2147483648
    %v1199 = vmul.f32 %v1198, 1.442695
    %v1200 = vpow.pop %v1199
    %v1201 = vadd.f32 %v1200, 1.0
    %v1202 = vrcp.pop %v1201
    %v1203 = vmul.f32 1.0, %v1202
    %v1204 = vtanh.pop %v1197
    %v1206 = vrot.slane %v1107, 6
    %v1208 = vmul.f32 %v1203, %v1206
    %1210 = vrot.lane.b32.xlu0 %v1204, 64
    %v1211 = vpop.permute.xlu0 %1210
    %v1213 = vmul.f32 %v1203, %v1211
    %1215 = vrot.lane.b32.xlu0 %v1213, 32
    %v1216 = vpop.permute.xlu0 %1215
    %v1218 = vadd.f32 %v1208, %v1216
    %v1219 = vtanh.pop %v1218
    %1221 = vrot.lane.b32.xlu0 %v1219, 64
    %v1222 = vpop.permute.xlu0 %1221
    %v1224 = vmul.f32 %v1203, %v1222
    %1226 = vrot.lane.b32.xlu0 %v1224, 32
    %v1227 = vpop.permute.xlu0 %1226
    %1229 = vst.msk [vmem:[#allocation2 + $0x8] sm:$0x30] %vm789, %v1227
    %v1230 = vrot.slane %v1224, 4
    %1231 = vrot.lane.b32.xlu0 %v1230, 32
    %v1232 = vpop.permute.xlu0 %1231
    %v1233 = vsel %vm181, %v1232, 0
    %1235 = vmatprep.subr.mxu0 0.0
    %1236 = vmatpush1.msra.mxu0 0.0
    %1237 = vmatprep.subr.mxu0 0.0
    %1238 = vmatpush1.msra.mxu0 0.0
    %1239 = vmatprep.subr.mxu0 0.0
    %1240 = vmatpush1.msra.mxu0 0.0
    %1241 = vmatprep.subr.mxu0 0.0
    %1242 = vmatpush1.msra.mxu0 0.0
    %1243 = vmatprep.subr.mxu0 0.0
    %1244 = vmatpush1.msra.mxu0 0.0
    %1245 = vmatprep.subr.mxu0 0.0
    %1246 = vmatpush1.msra.mxu0 0.0
    %1247 = vmatprep.subr.mxu0 0.0
    %1248 = vmatpush1.msra.mxu0 0.0
    %1249 = vmatprep.subr.mxu0 0.0
    %1250 = vmatpush1.msra.mxu0 0.0
    %1251 = vmatprep.subr.mxu0 0.0
    %1252 = vmatpush1.msra.mxu0 0.0
    %1253 = vmatprep.subr.mxu0 0.0
    %1254 = vmatpush1.msra.mxu0 0.0
    %1255 = vmatprep.subr.mxu0 0.0
    %1256 = vmatpush1.msra.mxu0 0.0
    %1257 = vmatprep.subr.mxu0 0.0
    %1258 = vmatpush1.msra.mxu0 0.0
    %1259 = vmatprep.subr.mxu0 0.0
    %1260 = vmatpush1.msra.mxu0 %v54
    %1261 = vmatprep.subr.mxu0 0.0
    %1262 = vmatpush1.msra.mxu0 %v53
    %1263 = vmatprep.subr.mxu0 0.0
    %1264 = vmatpush1.msra.mxu0 %v52
    %1265 = vmatprep.subr.mxu0 0.0
    %1266 = vmatpush1.msra.mxu0 %v51
    %1267 = vmatprep.subr.mxu0 0.0
    %1268 = vmatpush2.msra.mxu0 0.0
    %1269 = vmatprep.subr.mxu0 0.0
    %1270 = vmatpush2.msra.mxu0 0.0
    %1271 = vmatprep.subr.mxu0 0.0
    %1272 = vmatpush2.msra.mxu0 0.0
    %1273 = vmatprep.subr.mxu0 0.0
    %1274 = vmatpush2.msra.mxu0 0.0
    %1275 = vmatprep.subr.mxu0 0.0
    %1276 = vmatpush2.msra.mxu0 0.0
    %1277 = vmatprep.subr.mxu0 0.0
    %1278 = vmatpush2.msra.mxu0 0.0
    %1279 = vmatprep.subr.mxu0 0.0
    %1280 = vmatpush2.msra.mxu0 0.0
    %1281 = vmatprep.subr.mxu0 0.0
    %1282 = vmatpush2.msra.mxu0 0.0
    %1283 = vmatprep.subr.mxu0 0.0
    %1284 = vmatpush2.msra.mxu0 0.0
    %1285 = vmatprep.subr.mxu0 0.0
    %1286 = vmatpush2.msra.mxu0 0.0
    %1287 = vmatprep.subr.mxu0 0.0
    %1288 = vmatpush2.msra.mxu0 0.0
    %1289 = vmatprep.subr.mxu0 0.0
    %1290 = vmatpush2.msra.mxu0 0.0
    %1291 = vmatprep.subr.mxu0 0.0
    %1292 = vmatpush2.msra.mxu0 0.0
    %1293 = vmatprep.subr.mxu0 0.0
    %1294 = vmatpush2.msra.mxu0 0.0
    %1295 = vmatprep.subr.mxu0 0.0
    %1296 = vmatpush2.msra.mxu0 0.0
    %1297 = vmatprep.subr.mxu0 0.0
    %1298 = vmatpush2.msra.mxu0 0.0
    %1299 = vmatprep.mubr.f32.mxu0 0.0
    %1300 = vmatmul.mubr.f32.gmra.mxu0 %v1233
    %v1301 = vpop.f32.mrf.mxu0
    %v1302 = vadd.f32 0.0, %v1301
    %v1303 = vpop.f32.mrf.mxu0
    %1304 = vdwg.mxu0
    %v1306 = vrot.slane %v1302, 2
    %v1308 = vadd.f32 %v260, %v1306
    %v1309 = vxor.u32 %v1308, 2147483648
    %v1310 = vmul.f32 %v1309, 1.442695
    %v1311 = vpow.pop %v1310
    %v1312 = vadd.f32 %v1311, 1.0
    %v1313 = vrcp.pop %v1312
    %v1314 = vmul.f32 1.0, %v1313
    %v1315 = vtanh.pop %v1308
    %v1317 = vrot.slane %v1218, 6
    %v1319 = vmul.f32 %v1314, %v1317
    %1321 = vrot.lane.b32.xlu0 %v1315, 64
    %v1322 = vpop.permute.xlu0 %1321
    %v1324 = vmul.f32 %v1314, %v1322
    %1326 = vrot.lane.b32.xlu0 %v1324, 32
    %v1327 = vpop.permute.xlu0 %1326
    %v1329 = vadd.f32 %v1319, %v1327
    %v1330 = vtanh.pop %v1329
    %1332 = vrot.lane.b32.xlu0 %v1330, 64
    %v1333 = vpop.permute.xlu0 %1332
    %v1335 = vmul.f32 %v1314, %v1333
    %1337 = vrot.lane.b32.xlu0 %v1335, 32
    %v1338 = vpop.permute.xlu0 %1337
    %1340 = vst.msk [vmem:[#allocation2 + $0x8] sm:$0xc0] %vm901, %v1338
    %v1341 = vld [vmem:[#allocation2] sm:$0xff]
    %v1342 = vld [vmem:[#allocation2 + $0x8] sm:$0xff]
    %v1343 = vld [vmem:[%s12] sm:$0xff]
    %v1344 = vld [vmem:[%s12 + $0x8] sm:$0xff]
    %v1345 = vld [vmem:[%s12 + $0x10] sm:$0xff]
    %v1346 = vld [vmem:[%s12 + $0x18] sm:$0xff]
    %v1348 = vsel %vm181, %v1341, 0
    %v1351 = vsel %vm181, %v1342, 0
    %1353 = vmatprep.subr.mxu0 0.0
    %1354 = vmatpush1.msra.mxu0 0.0
    %1355 = vmatprep.subr.mxu0 0.0
    %1356 = vmatpush1.msra.mxu0 0.0
    %1357 = vmatprep.subr.mxu0 0.0
    %1358 = vmatpush1.msra.mxu0 0.0
    %1359 = vmatprep.subr.mxu0 0.0
    %1360 = vmatpush1.msra.mxu0 0.0
    %1361 = vmatprep.subr.mxu0 0.0
    %1362 = vmatpush1.msra.mxu0 0.0
    %1363 = vmatprep.subr.mxu0 0.0
    %1364 = vmatpush1.msra.mxu0 0.0
    %1365 = vmatprep.subr.mxu0 0.0
    %1366 = vmatpush1.msra.mxu0 0.0
    %1367 = vmatprep.subr.mxu0 0.0
    %1368 = vmatpush1.msra.mxu0 0.0
    %1369 = vmatprep.subr.mxu0 0.0
    %1370 = vmatpush1.msra.mxu0 0.0
    %1371 = vmatprep.subr.mxu0 0.0
    %1372 = vmatpush1.msra.mxu0 0.0
    %1373 = vmatprep.subr.mxu0 0.0
    %1374 = vmatpush1.msra.mxu0 0.0
    %1375 = vmatprep.subr.mxu0 0.0
    %1376 = vmatpush1.msra.mxu0 0.0
    %1377 = vmatprep.subr.mxu0 0.0
    %1378 = vmatpush1.msra.mxu0 %v1346
    %1379 = vmatprep.subr.mxu0 0.0
    %1380 = vmatpush1.msra.mxu0 %v1345
    %1381 = vmatprep.subr.mxu0 0.0
    %1382 = vmatpush1.msra.mxu0 %v1344
    %1383 = vmatprep.subr.mxu0 0.0
    %1384 = vmatpush1.msra.mxu0 %v1343
    %1385 = vmatprep.subr.mxu0 0.0
    %1386 = vmatpush2.msra.mxu0 0.0
    %1387 = vmatprep.subr.mxu0 0.0
    %1388 = vmatpush2.msra.mxu0 0.0
    %1389 = vmatprep.subr.mxu0 0.0
    %1390 = vmatpush2.msra.mxu0 0.0
    %1391 = vmatprep.subr.mxu0 0.0
    %1392 = vmatpush2.msra.mxu0 0.0
    %1393 = vmatprep.subr.mxu0 0.0
    %1394 = vmatpush2.msra.mxu0 0.0
    %1395 = vmatprep.subr.mxu0 0.0
    %1396 = vmatpush2.msra.mxu0 0.0
    %1397 = vmatprep.subr.mxu0 0.0
    %1398 = vmatpush2.msra.mxu0 0.0
    %1399 = vmatprep.subr.mxu0 0.0
    %1400 = vmatpush2.msra.mxu0 0.0
    %1401 = vmatprep.subr.mxu0 0.0
    %1402 = vmatpush2.msra.mxu0 0.0
    %1403 = vmatprep.subr.mxu0 0.0
    %1404 = vmatpush2.msra.mxu0 0.0
    %1405 = vmatprep.subr.mxu0 0.0
    %1406 = vmatpush2.msra.mxu0 0.0
    %1407 = vmatprep.subr.mxu0 0.0
    %1408 = vmatpush2.msra.mxu0 0.0
    %1409 = vmatprep.subr.mxu0 0.0
    %1410 = vmatpush2.msra.mxu0 0.0
    %1411 = vmatprep.subr.mxu0 0.0
    %1412 = vmatpush2.msra.mxu0 0.0
    %1413 = vmatprep.subr.mxu0 0.0
    %1414 = vmatpush2.msra.mxu0 0.0
    %1415 = vmatprep.subr.mxu0 0.0
    %1416 = vmatpush2.msra.mxu0 0.0
    %1417 = vmatprep.mubr.f32.mxu0 0.0
    %1418 = vmatmul.mubr.f32.gmra.mxu0 %v1348
    %v1419 = vpop.f32.mrf.mxu0
    %v1420 = vadd.f32 0.0, %v1419
    %v1421 = vpop.f32.mrf.mxu0
    %1422 = vmatprep.mubr.f32.mxu0 0.0
    %1423 = vmatmul.mubr.f32.gmra.mxu0 %v1351
    %v1424 = vpop.f32.mrf.mxu0
    %v1425 = vadd.f32 0.0, %v1424
    %v1426 = vpop.f32.mrf.mxu0
    %1427 = vdwg.mxu0
    %v1428 = vlaneseq
    %v1429 = vshrl.u32 %v1428, 7
    %v1430 = vadd.s32 %v1429, 8
    %vm1431 = vcmp.lt.s32.totalorder %v1429, 0
    %v1432 = vsub.s32 0, %v1429
    %v1433 = vsel %vm1431, %v1432, %v1429
    %v1434 = vshrl.u32 %v1433, 1
    %v1435 = vand.u32 %v1433, 1
    %v1436 = vsub.s32 0, %v1435
    %v1437 = vsel %vm1431, %v1436, %v1435
    %vm1438 = vcmp.lt.s32.totalorder %v1430, 0
    %v1439 = vsub.s32 0, %v1430
    %v1440 = vsel %vm1438, %v1439, %v1430
    %v1441 = vshrl.u32 %v1440, 1
    %v1442 = vand.u32 %v1440, 1
    %v1443 = vsub.s32 0, %v1442
    %v1444 = vsel %vm1438, %v1443, %v1442
    %vm1445 = vcmp.ne.s32.totalorder %v1437, 0
    %vm1446 = vcmp.ne.s32.totalorder %v1444, 0
    %vm1447 = vcmp.lt.s32.totalorder %v1437, 0
    %vm1448 = vcmp.lt.s32.totalorder %v1444, 0
    %vm1449 = vmand %vm1447, %vm1445
    %vm1450 = vmand %vm1448, %vm1446
    %v1451 = vadd.s32 %v1437, 2
    %v1452 = vadd.s32 %v1444, 2
    %v1453 = vsel %vm1449, %v1451, %v1437
    %v1454 = vsel %vm1450, %v1452, %v1444
    %vm1455 = vcmp.eq.s32.totalorder %v1453, %v64
    %vm1456 = vcmp.eq.s32.totalorder %v1454, %v64
    %v1457 = vrot.slane %v1335, 6
    %1458 = vrot.lane.b32.xlu0 %v1457, 32
    %v1459 = vpop.permute.xlu0 %1458
    %v1460 = vsel %vm181, %v1459, 0
    %1462 = vmatprep.subr.mxu0 0.0
    %1463 = vmatpush1.msra.mxu0 0.0
    %1464 = vmatprep.subr.mxu0 0.0
    %1465 = vmatpush1.msra.mxu0 0.0
    %1466 = vmatprep.subr.mxu0 0.0
    %1467 = vmatpush1.msra.mxu0 0.0
    %1468 = vmatprep.subr.mxu0 0.0
    %1469 = vmatpush1.msra.mxu0 0.0
    %1470 = vmatprep.subr.mxu0 0.0
    %1471 = vmatpush1.msra.mxu0 0.0
    %1472 = vmatprep.subr.mxu0 0.0
    %1473 = vmatpush1.msra.mxu0 0.0
    %1474 = vmatprep.subr.mxu0 0.0
    %1475 = vmatpush1.msra.mxu0 0.0
    %1476 = vmatprep.subr.mxu0 0.0
    %1477 = vmatpush1.msra.mxu0 0.0
    %1478 = vmatprep.subr.mxu0 0.0
    %1479 = vmatpush1.msra.mxu0 0.0
    %1480 = vmatprep.subr.mxu0 0.0
    %1481 = vmatpush1.msra.mxu0 0.0
    %1482 = vmatprep.subr.mxu0 0.0
    %1483 = vmatpush1.msra.mxu0 0.0
    %1484 = vmatprep.subr.mxu0 0.0
    %1485 = vmatpush1.msra.mxu0 0.0
    %1486 = vmatprep.subr.mxu0 0.0
    %1487 = vmatpush1.msra.mxu0 %v58
    %1488 = vmatprep.subr.mxu0 0.0
    %1489 = vmatpush1.msra.mxu0 %v57
    %1490 = vmatprep.subr.mxu0 0.0
    %1491 = vmatpush1.msra.mxu0 %v56
    %1492 = vmatprep.subr.mxu0 0.0
    %1493 = vmatpush1.msra.mxu0 %v55
    %1494 = vmatprep.subr.mxu0 0.0
    %1495 = vmatpush2.msra.mxu0 0.0
    %1496 = vmatprep.subr.mxu0 0.0
    %1497 = vmatpush2.msra.mxu0 0.0
    %1498 = vmatprep.subr.mxu0 0.0
    %1499 = vmatpush2.msra.mxu0 0.0
    %1500 = vmatprep.subr.mxu0 0.0
    %1501 = vmatpush2.msra.mxu0 0.0
    %1502 = vmatprep.subr.mxu0 0.0
    %1503 = vmatpush2.msra.mxu0 0.0
    %1504 = vmatprep.subr.mxu0 0.0
    %1505 = vmatpush2.msra.mxu0 0.0
    %1506 = vmatprep.subr.mxu0 0.0
    %1507 = vmatpush2.msra.mxu0 0.0
    %1508 = vmatprep.subr.mxu0 0.0
    %1509 = vmatpush2.msra.mxu0 0.0
    %1510 = vmatprep.subr.mxu0 0.0
    %1511 = vmatpush2.msra.mxu0 0.0
    %1512 = vmatprep.subr.mxu0 0.0
    %1513 = vmatpush2.msra.mxu0 0.0
    %1514 = vmatprep.subr.mxu0 0.0
    %1515 = vmatpush2.msra.mxu0 0.0
    %1516 = vmatprep.subr.mxu0 0.0
    %1517 = vmatpush2.msra.mxu0 0.0
    %1518 = vmatprep.subr.mxu0 0.0
    %1519 = vmatpush2.msra.mxu0 0.0
    %1520 = vmatprep.subr.mxu0 0.0
    %1521 = vmatpush2.msra.mxu0 0.0
    %1522 = vmatprep.subr.mxu0 0.0
    %1523 = vmatpush2.msra.mxu0 0.0
    %1524 = vmatprep.subr.mxu0 0.0
    %1525 = vmatpush2.msra.mxu0 0.0
    %1526 = vmatprep.mubr.f32.mxu0 0.0
    %1527 = vmatmul.mubr.f32.gmra.mxu0 %v1460
    %v1528 = vpop.f32.mrf.mxu0
    %v1529 = vadd.f32 0.0, %v1528
    %v1530 = vpop.f32.mrf.mxu0
    %1531 = vdwg.mxu0
    %v1532 = vadd.f32 %v452, %v1529
    %v1533 = vxor.u32 %v1532, 2147483648
    %v1534 = vmul.f32 %v1533, 1.442695
    %v1535 = vpow.pop %v1534
    %v1536 = vadd.f32 %v1535, 1.0
    %v1537 = vrcp.pop %v1536
    %v1538 = vmul.f32 1.0, %v1537
    %v1539 = vtanh.pop %v1532
    %v1541 = vrot.slane %v1329, 6
    %v1543 = vmul.f32 %v1538, %v1541
    %1545 = vrot.lane.b32.xlu0 %v1539, 64
    %v1546 = vpop.permute.xlu0 %1545
    %v1548 = vmul.f32 %v1538, %v1546
    %1550 = vrot.lane.b32.xlu0 %v1548, 32
    %v1551 = vpop.permute.xlu0 %1550
    %v1553 = vadd.f32 %v1543, %v1551
    %v1554 = vtanh.pop %v1553
    %1556 = vrot.lane.b32.xlu0 %v1554, 64
    %v1557 = vpop.permute.xlu0 %1556
    %v1559 = vmul.f32 %v1538, %v1557
    %1561 = vrot.lane.b32.xlu0 %v1559, 32
    %v1562 = vpop.permute.xlu0 %1561
    %v1563 = vsel %vm181, %v1562, 0
    %1565 = vmatprep.subr.mxu0 0.0
    %1566 = vmatpush1.msra.mxu0 0.0
    %1567 = vmatprep.subr.mxu0 0.0
    %1568 = vmatpush1.msra.mxu0 0.0
    %1569 = vmatprep.subr.mxu0 0.0
    %1570 = vmatpush1.msra.mxu0 0.0
    %1571 = vmatprep.subr.mxu0 0.0
    %1572 = vmatpush1.msra.mxu0 0.0
    %1573 = vmatprep.subr.mxu0 0.0
    %1574 = vmatpush1.msra.mxu0 0.0
    %1575 = vmatprep.subr.mxu0 0.0
    %1576 = vmatpush1.msra.mxu0 0.0
    %1577 = vmatprep.subr.mxu0 0.0
    %1578 = vmatpush1.msra.mxu0 0.0
    %1579 = vmatprep.subr.mxu0 0.0
    %1580 = vmatpush1.msra.mxu0 0.0
    %1581 = vmatprep.subr.mxu0 0.0
    %1582 = vmatpush1.msra.mxu0 0.0
    %1583 = vmatprep.subr.mxu0 0.0
    %1584 = vmatpush1.msra.mxu0 0.0
    %1585 = vmatprep.subr.mxu0 0.0
    %1586 = vmatpush1.msra.mxu0 0.0
    %1587 = vmatprep.subr.mxu0 0.0
    %1588 = vmatpush1.msra.mxu0 0.0
    %1589 = vmatprep.subr.mxu0 0.0
    %1590 = vmatpush1.msra.mxu0 %v62
    %1591 = vmatprep.subr.mxu0 0.0
    %1592 = vmatpush1.msra.mxu0 %v61
    %1593 = vmatprep.subr.mxu0 0.0
    %1594 = vmatpush1.msra.mxu0 %v60
    %1595 = vmatprep.subr.mxu0 0.0
    %1596 = vmatpush1.msra.mxu0 %v59
    %1597 = vmatprep.subr.mxu0 0.0
    %1598 = vmatpush2.msra.mxu0 0.0
    %1599 = vmatprep.subr.mxu0 0.0
    %1600 = vmatpush2.msra.mxu0 0.0
    %1601 = vmatprep.subr.mxu0 0.0
    %1602 = vmatpush2.msra.mxu0 0.0
    %1603 = vmatprep.subr.mxu0 0.0
    %1604 = vmatpush2.msra.mxu0 0.0
    %1605 = vmatprep.subr.mxu0 0.0
    %1606 = vmatpush2.msra.mxu0 0.0
    %1607 = vmatprep.subr.mxu0 0.0
    %1608 = vmatpush2.msra.mxu0 0.0
    %1609 = vmatprep.subr.mxu0 0.0
    %1610 = vmatpush2.msra.mxu0 0.0
    %1611 = vmatprep.subr.mxu0 0.0
    %1612 = vmatpush2.msra.mxu0 0.0
    %1613 = vmatprep.subr.mxu0 0.0
    %1614 = vmatpush2.msra.mxu0 0.0
    %1615 = vmatprep.subr.mxu0 0.0
    %1616 = vmatpush2.msra.mxu0 0.0
    %1617 = vmatprep.subr.mxu0 0.0
    %1618 = vmatpush2.msra.mxu0 0.0
    %1619 = vmatprep.subr.mxu0 0.0
    %1620 = vmatpush2.msra.mxu0 0.0
    %1621 = vmatprep.subr.mxu0 0.0
    %1622 = vmatpush2.msra.mxu0 0.0
    %1623 = vmatprep.subr.mxu0 0.0
    %1624 = vmatpush2.msra.mxu0 0.0
    %1625 = vmatprep.subr.mxu0 0.0
    %1626 = vmatpush2.msra.mxu0 0.0
    %1627 = vmatprep.subr.mxu0 0.0
    %1628 = vmatpush2.msra.mxu0 0.0
    %1629 = vmatprep.mubr.f32.mxu0 0.0
    %1630 = vmatmul.mubr.f32.gmra.mxu0 %v1563
    %v1631 = vpop.f32.mrf.mxu0
    %v1632 = vadd.f32 0.0, %v1631
    %v1633 = vpop.f32.mrf.mxu0
    %1634 = vdwg.mxu0
    %v1635 = vlaneseq
    %v1636 = vshrl.u32 %v1635, 7
    %v1637 = vsub.s32 0, %v1636
    %v1638 = vrot.slane %v1559, %v1637
    %1640 = vrot.lane.b32.xlu0 %v1638, 32
    %v1641 = vpop.permute.xlu0 %1640
    %v1643 = vmul.f32 %v1341, %v1641
    %v1644 = vmul.f32 %v1342, %v1641
    %v1645 = vsel %vm181, %v1643, 0.0
    %1646 = vadd.xlane.f32.xlu0 %v1645
    %v1647 = vpop.xlane.xlu0 %1646
    %v1648 = vsel %vm181, %v1644, 0.0
    %1649 = vadd.xlane.f32.xlu0 %v1648
    %v1650 = vpop.xlane.xlu0 %1649
    %v1651 = vsel %vm1455, %v1647, -1e+30
    %v1652 = vsel %vm1456, %v1650, -1e+30
    %vm1653 = vcmask 7168
    %v1654 = vsel %vm1653, %v1651, -inf
    %v1655 = vsel %vm1653, %v1652, -inf
    %v1656 = vmax.f32 %v1654, %v1655
    %v1657 = vrot.slane %v1656, 4
    %v1658 = vmax.f32 %v1656, %v1657
    %v1659 = vrot.slane %v1658, 2
    %v1660 = vmax.f32 %v1658, %v1659
    %v1661 = vrot.slane %v1660, 1
    %v1662 = vmax.f32 %v1660, %v1661
    %v1663 = vsub.f32 %v1651, %v1662
    %v1664 = vsub.f32 %v1652, %v1662
    %v1665 = vmul.f32 %v1663, 1.442695
    %v1666 = vpow.pop %v1665
    %v1667 = vmul.f32 %v1664, 1.442695
    %v1668 = vpow.pop %v1667
    %v1669 = vsel %vm1653, %v1666, 0.0
    %v1670 = vsel %vm1653, %v1668, 0.0
    %v1671 = vadd.f32 %v1669, %v1670
    %v1672 = vrot.slane %v1671, 4
    %v1673 = vadd.f32 %v1671, %v1672
    %v1674 = vrot.slane %v1673, 2
    %v1675 = vadd.f32 %v1673, %v1674
    %v1676 = vrot.slane %v1675, 1
    %v1677 = vadd.f32 %v1675, %v1676
    %v1678 = vrcp.pop %v1677
    %v1679 = vmul.f32 %v1666, %v1678
    %v1680 = vmul.f32 %v1668, %v1678
    %1682 = vset.pattern.permute.xlu0 0
    %1683 = vperm.xlu0 %1682, %v1679
    %v1684 = vpop.permute.xlu0 %1683
    %1687 = vset.pattern.permute.xlu0 0
    %1688 = vperm.xlu0 %1687, %v1680
    %v1689 = vpop.permute.xlu0 %1688
    %v1691 = vmul.f32 %v1684, %v1420
    %v1692 = vmul.f32 %v1689, %v1425
    %v1693 = vsel %vm181, %v1691, 0.0
    %v1694 = vsel %vm181, %v1692, 0.0
    %v1695 = vadd.f32 %v1693, %v1694
    %v1696 = vrot.slane %v1695, 4
    %v1697 = vadd.f32 %v1695, %v1696
    %v1698 = vrot.slane %v1697, 2
    %v1699 = vadd.f32 %v1697, %v1698
    %v1700 = vrot.slane %v1699, 1
    %v1701 = vadd.f32 %v1699, %v1700
    %v1702 = vadd.f32 %v1701, %v1632
    %v1703 = vtanh.pop %v1702
    %vm1704 = vcmask 253952
    %1705 = vst.msk [vmem:[#allocation3] sm:$0x1] %vm1704, %v1703
    %v1706 = vlaneseq
    %v1707 = vshrl.u32 %v1706, 7
    %v1708 = vsub.s32 1, %v1707
    %v1709 = vrot.slane %v1559, %v1708
    %1711 = vrot.lane.b32.xlu0 %v1709, 32
    %v1712 = vpop.permute.xlu0 %1711
    %v1714 = vmul.f32 %v1341, %v1712
    %v1715 = vmul.f32 %v1342, %v1712
    %v1716 = vsel %vm181, %v1714, 0.0
    %1717 = vadd.xlane.f32.xlu0 %v1716
    %v1718 = vpop.xlane.xlu0 %1717
    %v1719 = vsel %vm181, %v1715, 0.0
    %1720 = vadd.xlane.f32.xlu0 %v1719
    %v1721 = vpop.xlane.xlu0 %1720
    %v1722 = vsel %vm1455, %v1718, -1e+30
    %v1723 = vsel %vm1456, %v1721, -1e+30
    %vm1724 = vcmask 15368
    %v1725 = vsel %vm1724, %v1722, -inf
    %v1726 = vsel %vm1724, %v1723, -inf
    %v1727 = vmax.f32 %v1725, %v1726
    %v1728 = vrot.slane %v1727, 4
    %v1729 = vmax.f32 %v1727, %v1728
    %v1730 = vrot.slane %v1729, 2
    %v1731 = vmax.f32 %v1729, %v1730
    %v1732 = vrot.slane %v1731, 1
    %v1733 = vmax.f32 %v1731, %v1732
    %v1734 = vsub.f32 %v1722, %v1733
    %v1735 = vsub.f32 %v1723, %v1733
    %v1736 = vmul.f32 %v1734, 1.442695
    %v1737 = vpow.pop %v1736
    %v1738 = vmul.f32 %v1735, 1.442695
    %v1739 = vpow.pop %v1738
    %v1740 = vsel %vm1724, %v1737, 0.0
    %v1741 = vsel %vm1724, %v1739, 0.0
    %v1742 = vadd.f32 %v1740, %v1741
    %v1743 = vrot.slane %v1742, 4
    %v1744 = vadd.f32 %v1742, %v1743
    %v1745 = vrot.slane %v1744, 2
    %v1746 = vadd.f32 %v1744, %v1745
    %v1747 = vrot.slane %v1746, 1
    %v1748 = vadd.f32 %v1746, %v1747
    %v1749 = vrcp.pop %v1748
    %v1750 = vmul.f32 %v1737, %v1749
    %v1751 = vmul.f32 %v1739, %v1749
    %1753 = vset.pattern.permute.xlu0 1
    %1754 = vperm.xlu0 %1753, %v1750
    %v1755 = vpop.permute.xlu0 %1754
    %1758 = vset.pattern.permute.xlu0 1
    %1759 = vperm.xlu0 %1758, %v1751
    %v1760 = vpop.permute.xlu0 %1759
    %v1762 = vmul.f32 %v1755, %v1420
    %v1763 = vmul.f32 %v1760, %v1425
    %v1764 = vsel %vm181, %v1762, 0.0
    %v1765 = vsel %vm181, %v1763, 0.0
    %v1766 = vadd.f32 %v1764, %v1765
    %v1767 = vrot.slane %v1766, 4
    %v1768 = vadd.f32 %v1766, %v1767
    %v1769 = vrot.slane %v1768, 2
    %v1770 = vadd.f32 %v1768, %v1769
    %v1771 = vrot.slane %v1770, 1
    %v1772 = vadd.f32 %v1770, %v1771
    %v1773 = vadd.f32 %v1772, %v1632
    %v1774 = vtanh.pop %v1773
    %vm1775 = vcmask 254977
    %1776 = vst.msk [vmem:[#allocation3 + $0x7] sm:$0x2] %vm1775, %v1774
    %1777 = vmatprep.subr.mxu0 0.0
    %1778 = vmatpush1.msra.mxu0 0.0
    %1779 = vmatprep.subr.mxu0 0.0
    %1780 = vmatpush1.msra.mxu0 0.0
    %1781 = vmatprep.subr.mxu0 0.0
    %1782 = vmatpush1.msra.mxu0 0.0
    %1783 = vmatprep.subr.mxu0 0.0
    %1784 = vmatpush1.msra.mxu0 0.0
    %1785 = vmatprep.subr.mxu0 0.0
    %1786 = vmatpush1.msra.mxu0 0.0
    %1787 = vmatprep.subr.mxu0 0.0
    %1788 = vmatpush1.msra.mxu0 0.0
    %1789 = vmatprep.subr.mxu0 0.0
    %1790 = vmatpush1.msra.mxu0 0.0
    %1791 = vmatprep.subr.mxu0 0.0
    %1792 = vmatpush1.msra.mxu0 0.0
    %1793 = vmatprep.subr.mxu0 0.0
    %1794 = vmatpush1.msra.mxu0 0.0
    %1795 = vmatprep.subr.mxu0 0.0
    %1796 = vmatpush1.msra.mxu0 0.0
    %1797 = vmatprep.subr.mxu0 0.0
    %1798 = vmatpush1.msra.mxu0 0.0
    %1799 = vmatprep.subr.mxu0 0.0
    %1800 = vmatpush1.msra.mxu0 0.0
    %1801 = vmatprep.subr.mxu0 0.0
    %1802 = vmatpush1.msra.mxu0 %v58
    %1803 = vmatprep.subr.mxu0 0.0
    %1804 = vmatpush1.msra.mxu0 %v57
    %1805 = vmatprep.subr.mxu0 0.0
    %1806 = vmatpush1.msra.mxu0 %v56
    %1807 = vmatprep.subr.mxu0 0.0
    %1808 = vmatpush1.msra.mxu0 %v55
    %1809 = vmatprep.subr.mxu0 0.0
    %1810 = vmatpush2.msra.mxu0 0.0
    %1811 = vmatprep.subr.mxu0 0.0
    %1812 = vmatpush2.msra.mxu0 0.0
    %1813 = vmatprep.subr.mxu0 0.0
    %1814 = vmatpush2.msra.mxu0 0.0
    %1815 = vmatprep.subr.mxu0 0.0
    %1816 = vmatpush2.msra.mxu0 0.0
    %1817 = vmatprep.subr.mxu0 0.0
    %1818 = vmatpush2.msra.mxu0 0.0
    %1819 = vmatprep.subr.mxu0 0.0
    %1820 = vmatpush2.msra.mxu0 0.0
    %1821 = vmatprep.subr.mxu0 0.0
    %1822 = vmatpush2.msra.mxu0 0.0
    %1823 = vmatprep.subr.mxu0 0.0
    %1824 = vmatpush2.msra.mxu0 0.0
    %1825 = vmatprep.subr.mxu0 0.0
    %1826 = vmatpush2.msra.mxu0 0.0
    %1827 = vmatprep.subr.mxu0 0.0
    %1828 = vmatpush2.msra.mxu0 0.0
    %1829 = vmatprep.subr.mxu0 0.0
    %1830 = vmatpush2.msra.mxu0 0.0
    %1831 = vmatprep.subr.mxu0 0.0
    %1832 = vmatpush2.msra.mxu0 0.0
    %1833 = vmatprep.subr.mxu0 0.0
    %1834 = vmatpush2.msra.mxu0 0.0
    %1835 = vmatprep.subr.mxu0 0.0
    %1836 = vmatpush2.msra.mxu0 0.0
    %1837 = vmatprep.subr.mxu0 0.0
    %1838 = vmatpush2.msra.mxu0 0.0
    %1839 = vmatprep.subr.mxu0 0.0
    %1840 = vmatpush2.msra.mxu0 0.0
    %1841 = vmatprep.mubr.f32.mxu0 0.0
    %1842 = vmatmul.mubr.f32.gmra.mxu0 %v1563
    %v1843 = vpop.f32.mrf.mxu0
    %v1844 = vadd.f32 0.0, %v1843
    %v1845 = vpop.f32.mrf.mxu0
    %1846 = vdwg.mxu0
    %v1848 = vrot.slane %v1844, 6
    %v1850 = vadd.f32 %v452, %v1848
    %v1851 = vxor.u32 %v1850, 2147483648
    %v1852 = vmul.f32 %v1851, 1.442695
    %v1853 = vpow.pop %v1852
    %v1854 = vadd.f32 %v1853, 1.0
    %v1855 = vrcp.pop %v1854
    %v1856 = vmul.f32 1.0, %v1855
    %v1857 = vtanh.pop %v1850
    %v1859 = vrot.slane %v1553, 6
    %v1861 = vmul.f32 %v1856, %v1859
    %1863 = vrot.lane.b32.xlu0 %v1857, 64
    %v1864 = vpop.permute.xlu0 %1863
    %v1866 = vmul.f32 %v1856, %v1864
    %1868 = vrot.lane.b32.xlu0 %v1866, 32
    %v1869 = vpop.permute.xlu0 %1868
    %v1871 = vadd.f32 %v1861, %v1869
    %v1872 = vtanh.pop %v1871
    %1874 = vrot.lane.b32.xlu0 %v1872, 64
    %v1875 = vpop.permute.xlu0 %1874
    %v1877 = vmul.f32 %v1856, %v1875
    %v1879 = vrot.slane %v1877, 2
    %1880 = vrot.lane.b32.xlu0 %v1879, 32
    %v1881 = vpop.permute.xlu0 %1880
    %v1882 = vsel %vm181, %v1881, 0
    %1884 = vmatprep.subr.mxu0 0.0
    %1885 = vmatpush1.msra.mxu0 0.0
    %1886 = vmatprep.subr.mxu0 0.0
    %1887 = vmatpush1.msra.mxu0 0.0
    %1888 = vmatprep.subr.mxu0 0.0
    %1889 = vmatpush1.msra.mxu0 0.0
    %1890 = vmatprep.subr.mxu0 0.0
    %1891 = vmatpush1.msra.mxu0 0.0
    %1892 = vmatprep.subr.mxu0 0.0
    %1893 = vmatpush1.msra.mxu0 0.0
    %1894 = vmatprep.subr.mxu0 0.0
    %1895 = vmatpush1.msra.mxu0 0.0
    %1896 = vmatprep.subr.mxu0 0.0
    %1897 = vmatpush1.msra.mxu0 0.0
    %1898 = vmatprep.subr.mxu0 0.0
    %1899 = vmatpush1.msra.mxu0 0.0
    %1900 = vmatprep.subr.mxu0 0.0
    %1901 = vmatpush1.msra.mxu0 0.0
    %1902 = vmatprep.subr.mxu0 0.0
    %1903 = vmatpush1.msra.mxu0 0.0
    %1904 = vmatprep.subr.mxu0 0.0
    %1905 = vmatpush1.msra.mxu0 0.0
    %1906 = vmatprep.subr.mxu0 0.0
    %1907 = vmatpush1.msra.mxu0 0.0
    %1908 = vmatprep.subr.mxu0 0.0
    %1909 = vmatpush1.msra.mxu0 %v62
    %1910 = vmatprep.subr.mxu0 0.0
    %1911 = vmatpush1.msra.mxu0 %v61
    %1912 = vmatprep.subr.mxu0 0.0
    %1913 = vmatpush1.msra.mxu0 %v60
    %1914 = vmatprep.subr.mxu0 0.0
    %1915 = vmatpush1.msra.mxu0 %v59
    %1916 = vmatprep.subr.mxu0 0.0
    %1917 = vmatpush2.msra.mxu0 0.0
    %1918 = vmatprep.subr.mxu0 0.0
    %1919 = vmatpush2.msra.mxu0 0.0
    %1920 = vmatprep.subr.mxu0 0.0
    %1921 = vmatpush2.msra.mxu0 0.0
    %1922 = vmatprep.subr.mxu0 0.0
    %1923 = vmatpush2.msra.mxu0 0.0
    %1924 = vmatprep.subr.mxu0 0.0
    %1925 = vmatpush2.msra.mxu0 0.0
    %1926 = vmatprep.subr.mxu0 0.0
    %1927 = vmatpush2.msra.mxu0 0.0
    %1928 = vmatprep.subr.mxu0 0.0
    %1929 = vmatpush2.msra.mxu0 0.0
    %1930 = vmatprep.subr.mxu0 0.0
    %1931 = vmatpush2.msra.mxu0 0.0
    %1932 = vmatprep.subr.mxu0 0.0
    %1933 = vmatpush2.msra.mxu0 0.0
    %1934 = vmatprep.subr.mxu0 0.0
    %1935 = vmatpush2.msra.mxu0 0.0
    %1936 = vmatprep.subr.mxu0 0.0
    %1937 = vmatpush2.msra.mxu0 0.0
    %1938 = vmatprep.subr.mxu0 0.0
    %1939 = vmatpush2.msra.mxu0 0.0
    %1940 = vmatprep.subr.mxu0 0.0
    %1941 = vmatpush2.msra.mxu0 0.0
    %1942 = vmatprep.subr.mxu0 0.0
    %1943 = vmatpush2.msra.mxu0 0.0
    %1944 = vmatprep.subr.mxu0 0.0
    %1945 = vmatpush2.msra.mxu0 0.0
    %1946 = vmatprep.subr.mxu0 0.0
    %1947 = vmatpush2.msra.mxu0 0.0
    %1948 = vmatprep.mubr.f32.mxu0 0.0
    %1949 = vmatmul.mubr.f32.gmra.mxu0 %v1882
    %v1950 = vpop.f32.mrf.mxu0
    %v1951 = vadd.f32 0.0, %v1950
    %v1952 = vpop.f32.mrf.mxu0
    %1953 = vdwg.mxu0
    %v1954 = vlaneseq
    %v1955 = vshrl.u32 %v1954, 7
    %v1956 = vsub.s32 2, %v1955
    %v1957 = vrot.slane %v1877, %v1956
    %1959 = vrot.lane.b32.xlu0 %v1957, 32
    %v1960 = vpop.permute.xlu0 %1959
    %v1962 = vmul.f32 %v1341, %v1960
    %v1963 = vmul.f32 %v1342, %v1960
    %v1964 = vsel %vm181, %v1962, 0.0
    %1965 = vadd.xlane.f32.xlu0 %v1964
    %v1966 = vpop.xlane.xlu0 %1965
    %v1967 = vsel %vm181, %v1963, 0.0
    %1968 = vadd.xlane.f32.xlu0 %v1967
    %v1969 = vpop.xlane.xlu0 %1968
    %v1970 = vsel %vm1455, %v1966, -1e+30
    %v1971 = vsel %vm1456, %v1969, -1e+30
    %v1972 = vsel %vm1653, %v1970, -inf
    %v1973 = vsel %vm1653, %v1971, -inf
    %v1974 = vmax.f32 %v1972, %v1973
    %v1975 = vrot.slane %v1974, 4
    %v1976 = vmax.f32 %v1974, %v1975
    %v1977 = vrot.slane %v1976, 2
    %v1978 = vmax.f32 %v1976, %v1977
    %v1979 = vrot.slane %v1978, 1
    %v1980 = vmax.f32 %v1978, %v1979
    %v1981 = vsub.f32 %v1970, %v1980
    %v1982 = vsub.f32 %v1971, %v1980
    %v1983 = vmul.f32 %v1981, 1.442695
    %v1984 = vpow.pop %v1983
    %v1985 = vmul.f32 %v1982, 1.442695
    %v1986 = vpow.pop %v1985
    %v1987 = vsel %vm1653, %v1984, 0.0
    %v1988 = vsel %vm1653, %v1986, 0.0
    %v1989 = vadd.f32 %v1987, %v1988
    %v1990 = vrot.slane %v1989, 4
    %v1991 = vadd.f32 %v1989, %v1990
    %v1992 = vrot.slane %v1991, 2
    %v1993 = vadd.f32 %v1991, %v1992
    %v1994 = vrot.slane %v1993, 1
    %v1995 = vadd.f32 %v1993, %v1994
    %v1996 = vrcp.pop %v1995
    %v1997 = vmul.f32 %v1984, %v1996
    %v1998 = vmul.f32 %v1986, %v1996
    %2000 = vset.pattern.permute.xlu0 0
    %2001 = vperm.xlu0 %2000, %v1997
    %v2002 = vpop.permute.xlu0 %2001
    %2005 = vset.pattern.permute.xlu0 0
    %2006 = vperm.xlu0 %2005, %v1998
    %v2007 = vpop.permute.xlu0 %2006
    %v2009 = vmul.f32 %v2002, %v1420
    %v2010 = vmul.f32 %v2007, %v1425
    %v2011 = vsel %vm181, %v2009, 0.0
    %v2012 = vsel %vm181, %v2010, 0.0
    %v2013 = vadd.f32 %v2011, %v2012
    %v2014 = vrot.slane %v2013, 4
    %v2015 = vadd.f32 %v2013, %v2014
    %v2016 = vrot.slane %v2015, 2
    %v2017 = vadd.f32 %v2015, %v2016
    %v2018 = vrot.slane %v2017, 1
    %v2019 = vadd.f32 %v2017, %v2018
    %v2020 = vadd.f32 %v2019, %v1951
    %v2021 = vtanh.pop %v2020
    %2022 = vst.msk [vmem:[#allocation3 + $0x1] sm:$0x1] %vm1704, %v2021
    %v2023 = vlaneseq
    %v2024 = vshrl.u32 %v2023, 7
    %v2025 = vsub.s32 3, %v2024
    %v2026 = vrot.slane %v1877, %v2025
    %2028 = vrot.lane.b32.xlu0 %v2026, 32
    %v2029 = vpop.permute.xlu0 %2028
    %v2031 = vmul.f32 %v1341, %v2029
    %v2032 = vmul.f32 %v1342, %v2029
    %v2033 = vsel %vm181, %v2031, 0.0
    %2034 = vadd.xlane.f32.xlu0 %v2033
    %v2035 = vpop.xlane.xlu0 %2034
    %v2036 = vsel %vm181, %v2032, 0.0
    %2037 = vadd.xlane.f32.xlu0 %v2036
    %v2038 = vpop.xlane.xlu0 %2037
    %v2039 = vsel %vm1455, %v2035, -1e+30
    %v2040 = vsel %vm1456, %v2038, -1e+30
    %v2041 = vsel %vm1724, %v2039, -inf
    %v2042 = vsel %vm1724, %v2040, -inf
    %v2043 = vmax.f32 %v2041, %v2042
    %v2044 = vrot.slane %v2043, 4
    %v2045 = vmax.f32 %v2043, %v2044
    %v2046 = vrot.slane %v2045, 2
    %v2047 = vmax.f32 %v2045, %v2046
    %v2048 = vrot.slane %v2047, 1
    %v2049 = vmax.f32 %v2047, %v2048
    %v2050 = vsub.f32 %v2039, %v2049
    %v2051 = vsub.f32 %v2040, %v2049
    %v2052 = vmul.f32 %v2050, 1.442695
    %v2053 = vpow.pop %v2052
    %v2054 = vmul.f32 %v2051, 1.442695
    %v2055 = vpow.pop %v2054
    %v2056 = vsel %vm1724, %v2053, 0.0
    %v2057 = vsel %vm1724, %v2055, 0.0
    %v2058 = vadd.f32 %v2056, %v2057
    %v2059 = vrot.slane %v2058, 4
    %v2060 = vadd.f32 %v2058, %v2059
    %v2061 = vrot.slane %v2060, 2
    %v2062 = vadd.f32 %v2060, %v2061
    %v2063 = vrot.slane %v2062, 1
    %v2064 = vadd.f32 %v2062, %v2063
    %v2065 = vrcp.pop %v2064
    %v2066 = vmul.f32 %v2053, %v2065
    %v2067 = vmul.f32 %v2055, %v2065
    %2069 = vset.pattern.permute.xlu0 1
    %2070 = vperm.xlu0 %2069, %v2066
    %v2071 = vpop.permute.xlu0 %2070
    %2074 = vset.pattern.permute.xlu0 1
    %2075 = vperm.xlu0 %2074, %v2067
    %v2076 = vpop.permute.xlu0 %2075
    %v2078 = vmul.f32 %v2071, %v1420
    %v2079 = vmul.f32 %v2076, %v1425
    %v2080 = vsel %vm181, %v2078, 0.0
    %v2081 = vsel %vm181, %v2079, 0.0
    %v2082 = vadd.f32 %v2080, %v2081
    %v2083 = vrot.slane %v2082, 4
    %v2084 = vadd.f32 %v2082, %v2083
    %v2085 = vrot.slane %v2084, 2
    %v2086 = vadd.f32 %v2084, %v2085
    %v2087 = vrot.slane %v2086, 1
    %v2088 = vadd.f32 %v2086, %v2087
    %v2089 = vadd.f32 %v2088, %v1951
    %v2090 = vtanh.pop %v2089
    %2091 = vst.msk [vmem:[#allocation3 + $0x8] sm:$0x2] %vm1775, %v2090
    %2092 = vmatprep.subr.mxu0 0.0
    %2093 = vmatpush1.msra.mxu0 0.0
    %2094 = vmatprep.subr.mxu0 0.0
    %2095 = vmatpush1.msra.mxu0 0.0
    %2096 = vmatprep.subr.mxu0 0.0
    %2097 = vmatpush1.msra.mxu0 0.0
    %2098 = vmatprep.subr.mxu0 0.0
    %2099 = vmatpush1.msra.mxu0 0.0
    %2100 = vmatprep.subr.mxu0 0.0
    %2101 = vmatpush1.msra.mxu0 0.0
    %2102 = vmatprep.subr.mxu0 0.0
    %2103 = vmatpush1.msra.mxu0 0.0
    %2104 = vmatprep.subr.mxu0 0.0
    %2105 = vmatpush1.msra.mxu0 0.0
    %2106 = vmatprep.subr.mxu0 0.0
    %2107 = vmatpush1.msra.mxu0 0.0
    %2108 = vmatprep.subr.mxu0 0.0
    %2109 = vmatpush1.msra.mxu0 0.0
    %2110 = vmatprep.subr.mxu0 0.0
    %2111 = vmatpush1.msra.mxu0 0.0
    %2112 = vmatprep.subr.mxu0 0.0
    %2113 = vmatpush1.msra.mxu0 0.0
    %2114 = vmatprep.subr.mxu0 0.0
    %2115 = vmatpush1.msra.mxu0 0.0
    %2116 = vmatprep.subr.mxu0 0.0
    %2117 = vmatpush1.msra.mxu0 %v58
    %2118 = vmatprep.subr.mxu0 0.0
    %2119 = vmatpush1.msra.mxu0 %v57
    %2120 = vmatprep.subr.mxu0 0.0
    %2121 = vmatpush1.msra.mxu0 %v56
    %2122 = vmatprep.subr.mxu0 0.0
    %2123 = vmatpush1.msra.mxu0 %v55
    %2124 = vmatprep.subr.mxu0 0.0
    %2125 = vmatpush2.msra.mxu0 0.0
    %2126 = vmatprep.subr.mxu0 0.0
    %2127 = vmatpush2.msra.mxu0 0.0
    %2128 = vmatprep.subr.mxu0 0.0
    %2129 = vmatpush2.msra.mxu0 0.0
    %2130 = vmatprep.subr.mxu0 0.0
    %2131 = vmatpush2.msra.mxu0 0.0
    %2132 = vmatprep.subr.mxu0 0.0
    %2133 = vmatpush2.msra.mxu0 0.0
    %2134 = vmatprep.subr.mxu0 0.0
    %2135 = vmatpush2.msra.mxu0 0.0
    %2136 = vmatprep.subr.mxu0 0.0
    %2137 = vmatpush2.msra.mxu0 0.0
    %2138 = vmatprep.subr.mxu0 0.0
    %2139 = vmatpush2.msra.mxu0 0.0
    %2140 = vmatprep.subr.mxu0 0.0
    %2141 = vmatpush2.msra.mxu0 0.0
    %2142 = vmatprep.subr.mxu0 0.0
    %2143 = vmatpush2.msra.mxu0 0.0
    %2144 = vmatprep.subr.mxu0 0.0
    %2145 = vmatpush2.msra.mxu0 0.0
    %2146 = vmatprep.subr.mxu0 0.0
    %2147 = vmatpush2.msra.mxu0 0.0
    %2148 = vmatprep.subr.mxu0 0.0
    %2149 = vmatpush2.msra.mxu0 0.0
    %2150 = vmatprep.subr.mxu0 0.0
    %2151 = vmatpush2.msra.mxu0 0.0
    %2152 = vmatprep.subr.mxu0 0.0
    %2153 = vmatpush2.msra.mxu0 0.0
    %2154 = vmatprep.subr.mxu0 0.0
    %2155 = vmatpush2.msra.mxu0 0.0
    %2156 = vmatprep.mubr.f32.mxu0 0.0
    %2157 = vmatmul.mubr.f32.gmra.mxu0 %v1882
    %v2158 = vpop.f32.mrf.mxu0
    %v2159 = vadd.f32 0.0, %v2158
    %v2160 = vpop.f32.mrf.mxu0
    %2161 = vdwg.mxu0
    %v2163 = vrot.slane %v2159, 4
    %v2165 = vadd.f32 %v452, %v2163
    %v2166 = vxor.u32 %v2165, 2147483648
    %v2167 = vmul.f32 %v2166, 1.442695
    %v2168 = vpow.pop %v2167
    %v2169 = vadd.f32 %v2168, 1.0
    %v2170 = vrcp.pop %v2169
    %v2171 = vmul.f32 1.0, %v2170
    %v2172 = vtanh.pop %v2165
    %v2174 = vrot.slane %v1871, 6
    %v2176 = vmul.f32 %v2171, %v2174
    %2178 = vrot.lane.b32.xlu0 %v2172, 64
    %v2179 = vpop.permute.xlu0 %2178
    %v2181 = vmul.f32 %v2171, %v2179
    %2183 = vrot.lane.b32.xlu0 %v2181, 32
    %v2184 = vpop.permute.xlu0 %2183
    %v2186 = vadd.f32 %v2176, %v2184
    %v2187 = vtanh.pop %v2186
    %2189 = vrot.lane.b32.xlu0 %v2187, 64
    %v2190 = vpop.permute.xlu0 %2189
    %v2192 = vmul.f32 %v2171, %v2190
    %v2194 = vrot.slane %v2192, 4
    %2195 = vrot.lane.b32.xlu0 %v2194, 32
    %v2196 = vpop.permute.xlu0 %2195
    %v2197 = vsel %vm181, %v2196, 0
    %2199 = vmatprep.subr.mxu0 0.0
    %2200 = vmatpush1.msra.mxu0 0.0
    %2201 = vmatprep.subr.mxu0 0.0
    %2202 = vmatpush1.msra.mxu0 0.0
    %2203 = vmatprep.subr.mxu0 0.0
    %2204 = vmatpush1.msra.mxu0 0.0
    %2205 = vmatprep.subr.mxu0 0.0
    %2206 = vmatpush1.msra.mxu0 0.0
    %2207 = vmatprep.subr.mxu0 0.0
    %2208 = vmatpush1.msra.mxu0 0.0
    %2209 = vmatprep.subr.mxu0 0.0
    %2210 = vmatpush1.msra.mxu0 0.0
    %2211 = vmatprep.subr.mxu0 0.0
    %2212 = vmatpush1.msra.mxu0 0.0
    %2213 = vmatprep.subr.mxu0 0.0
    %2214 = vmatpush1.msra.mxu0 0.0
    %2215 = vmatprep.subr.mxu0 0.0
    %2216 = vmatpush1.msra.mxu0 0.0
    %2217 = vmatprep.subr.mxu0 0.0
    %2218 = vmatpush1.msra.mxu0 0.0
    %2219 = vmatprep.subr.mxu0 0.0
    %2220 = vmatpush1.msra.mxu0 0.0
    %2221 = vmatprep.subr.mxu0 0.0
    %2222 = vmatpush1.msra.mxu0 0.0
    %2223 = vmatprep.subr.mxu0 0.0
    %2224 = vmatpush1.msra.mxu0 %v62
    %2225 = vmatprep.subr.mxu0 0.0
    %2226 = vmatpush1.msra.mxu0 %v61
    %2227 = vmatprep.subr.mxu0 0.0
    %2228 = vmatpush1.msra.mxu0 %v60
    %2229 = vmatprep.subr.mxu0 0.0
    %2230 = vmatpush1.msra.mxu0 %v59
    %2231 = vmatprep.subr.mxu0 0.0
    %2232 = vmatpush2.msra.mxu0 0.0
    %2233 = vmatprep.subr.mxu0 0.0
    %2234 = vmatpush2.msra.mxu0 0.0
    %2235 = vmatprep.subr.mxu0 0.0
    %2236 = vmatpush2.msra.mxu0 0.0
    %2237 = vmatprep.subr.mxu0 0.0
    %2238 = vmatpush2.msra.mxu0 0.0
    %2239 = vmatprep.subr.mxu0 0.0
    %2240 = vmatpush2.msra.mxu0 0.0
    %2241 = vmatprep.subr.mxu0 0.0
    %2242 = vmatpush2.msra.mxu0 0.0
    %2243 = vmatprep.subr.mxu0 0.0
    %2244 = vmatpush2.msra.mxu0 0.0
    %2245 = vmatprep.subr.mxu0 0.0
    %2246 = vmatpush2.msra.mxu0 0.0
    %2247 = vmatprep.subr.mxu0 0.0
    %2248 = vmatpush2.msra.mxu0 0.0
    %2249 = vmatprep.subr.mxu0 0.0
    %2250 = vmatpush2.msra.mxu0 0.0
    %2251 = vmatprep.subr.mxu0 0.0
    %2252 = vmatpush2.msra.mxu0 0.0
    %2253 = vmatprep.subr.mxu0 0.0
    %2254 = vmatpush2.msra.mxu0 0.0
    %2255 = vmatprep.subr.mxu0 0.0
    %2256 = vmatpush2.msra.mxu0 0.0
    %2257 = vmatprep.subr.mxu0 0.0
    %2258 = vmatpush2.msra.mxu0 0.0
    %2259 = vmatprep.subr.mxu0 0.0
    %2260 = vmatpush2.msra.mxu0 0.0
    %2261 = vmatprep.subr.mxu0 0.0
    %2262 = vmatpush2.msra.mxu0 0.0
    %2263 = vmatprep.mubr.f32.mxu0 0.0
    %2264 = vmatmul.mubr.f32.gmra.mxu0 %v2197
    %v2265 = vpop.f32.mrf.mxu0
    %v2266 = vadd.f32 0.0, %v2265
    %v2267 = vpop.f32.mrf.mxu0
    %2268 = vdwg.mxu0
    %v2269 = vlaneseq
    %v2270 = vshrl.u32 %v2269, 7
    %v2271 = vsub.s32 4, %v2270
    %v2272 = vrot.slane %v2192, %v2271
    %2274 = vrot.lane.b32.xlu0 %v2272, 32
    %v2275 = vpop.permute.xlu0 %2274
    %v2277 = vmul.f32 %v1341, %v2275
    %v2278 = vmul.f32 %v1342, %v2275
    %v2279 = vsel %vm181, %v2277, 0.0
    %2280 = vadd.xlane.f32.xlu0 %v2279
    %v2281 = vpop.xlane.xlu0 %2280
    %v2282 = vsel %vm181, %v2278, 0.0
    %2283 = vadd.xlane.f32.xlu0 %v2282
    %v2284 = vpop.xlane.xlu0 %2283
    %v2285 = vsel %vm1455, %v2281, -1e+30
    %v2286 = vsel %vm1456, %v2284, -1e+30
    %v2287 = vsel %vm1653, %v2285, -inf
    %v2288 = vsel %vm1653, %v2286, -inf
    %v2289 = vmax.f32 %v2287, %v2288
    %v2290 = vrot.slane %v2289, 4
    %v2291 = vmax.f32 %v2289, %v2290
    %v2292 = vrot.slane %v2291, 2
    %v2293 = vmax.f32 %v2291, %v2292
    %v2294 = vrot.slane %v2293, 1
    %v2295 = vmax.f32 %v2293, %v2294
    %v2296 = vsub.f32 %v2285, %v2295
    %v2297 = vsub.f32 %v2286, %v2295
    %v2298 = vmul.f32 %v2296, 1.442695
    %v2299 = vpow.pop %v2298
    %v2300 = vmul.f32 %v2297, 1.442695
    %v2301 = vpow.pop %v2300
    %v2302 = vsel %vm1653, %v2299, 0.0
    %v2303 = vsel %vm1653, %v2301, 0.0
    %v2304 = vadd.f32 %v2302, %v2303
    %v2305 = vrot.slane %v2304, 4
    %v2306 = vadd.f32 %v2304, %v2305
    %v2307 = vrot.slane %v2306, 2
    %v2308 = vadd.f32 %v2306, %v2307
    %v2309 = vrot.slane %v2308, 1
    %v2310 = vadd.f32 %v2308, %v2309
    %v2311 = vrcp.pop %v2310
    %v2312 = vmul.f32 %v2299, %v2311
    %v2313 = vmul.f32 %v2301, %v2311
    %2315 = vset.pattern.permute.xlu0 0
    %2316 = vperm.xlu0 %2315, %v2312
    %v2317 = vpop.permute.xlu0 %2316
    %2320 = vset.pattern.permute.xlu0 0
    %2321 = vperm.xlu0 %2320, %v2313
    %v2322 = vpop.permute.xlu0 %2321
    %v2324 = vmul.f32 %v2317, %v1420
    %v2325 = vmul.f32 %v2322, %v1425
    %v2326 = vsel %vm181, %v2324, 0.0
    %v2327 = vsel %vm181, %v2325, 0.0
    %v2328 = vadd.f32 %v2326, %v2327
    %v2329 = vrot.slane %v2328, 4
    %v2330 = vadd.f32 %v2328, %v2329
    %v2331 = vrot.slane %v2330, 2
    %v2332 = vadd.f32 %v2330, %v2331
    %v2333 = vrot.slane %v2332, 1
    %v2334 = vadd.f32 %v2332, %v2333
    %v2335 = vadd.f32 %v2334, %v2266
    %v2336 = vtanh.pop %v2335
    %2337 = vst.msk [vmem:[#allocation3 + $0x2] sm:$0x1] %vm1704, %v2336
    %v2338 = vlaneseq
    %v2339 = vshrl.u32 %v2338, 7
    %v2340 = vsub.s32 5, %v2339
    %v2341 = vrot.slane %v2192, %v2340
    %2343 = vrot.lane.b32.xlu0 %v2341, 32
    %v2344 = vpop.permute.xlu0 %2343
    %v2346 = vmul.f32 %v1341, %v2344
    %v2347 = vmul.f32 %v1342, %v2344
    %v2348 = vsel %vm181, %v2346, 0.0
    %2349 = vadd.xlane.f32.xlu0 %v2348
    %v2350 = vpop.xlane.xlu0 %2349
    %v2351 = vsel %vm181, %v2347, 0.0
    %2352 = vadd.xlane.f32.xlu0 %v2351
    %v2353 = vpop.xlane.xlu0 %2352
    %v2354 = vsel %vm1455, %v2350, -1e+30
    %v2355 = vsel %vm1456, %v2353, -1e+30
    %v2356 = vsel %vm1724, %v2354, -inf
    %v2357 = vsel %vm1724, %v2355, -inf
    %v2358 = vmax.f32 %v2356, %v2357
    %v2359 = vrot.slane %v2358, 4
    %v2360 = vmax.f32 %v2358, %v2359
    %v2361 = vrot.slane %v2360, 2
    %v2362 = vmax.f32 %v2360, %v2361
    %v2363 = vrot.slane %v2362, 1
    %v2364 = vmax.f32 %v2362, %v2363
    %v2365 = vsub.f32 %v2354, %v2364
    %v2366 = vsub.f32 %v2355, %v2364
    %v2367 = vmul.f32 %v2365, 1.442695
    %v2368 = vpow.pop %v2367
    %v2369 = vmul.f32 %v2366, 1.442695
    %v2370 = vpow.pop %v2369
    %v2371 = vsel %vm1724, %v2368, 0.0
    %v2372 = vsel %vm1724, %v2370, 0.0
    %v2373 = vadd.f32 %v2371, %v2372
    %v2374 = vrot.slane %v2373, 4
    %v2375 = vadd.f32 %v2373, %v2374
    %v2376 = vrot.slane %v2375, 2
    %v2377 = vadd.f32 %v2375, %v2376
    %v2378 = vrot.slane %v2377, 1
    %v2379 = vadd.f32 %v2377, %v2378
    %v2380 = vrcp.pop %v2379
    %v2381 = vmul.f32 %v2368, %v2380
    %v2382 = vmul.f32 %v2370, %v2380
    %2384 = vset.pattern.permute.xlu0 1
    %2385 = vperm.xlu0 %2384, %v2381
    %v2386 = vpop.permute.xlu0 %2385
    %2389 = vset.pattern.permute.xlu0 1
    %2390 = vperm.xlu0 %2389, %v2382
    %v2391 = vpop.permute.xlu0 %2390
    %v2393 = vmul.f32 %v2386, %v1420
    %v2394 = vmul.f32 %v2391, %v1425
    %v2395 = vsel %vm181, %v2393, 0.0
    %v2396 = vsel %vm181, %v2394, 0.0
    %v2397 = vadd.f32 %v2395, %v2396
    %v2398 = vrot.slane %v2397, 4
    %v2399 = vadd.f32 %v2397, %v2398
    %v2400 = vrot.slane %v2399, 2
    %v2401 = vadd.f32 %v2399, %v2400
    %v2402 = vrot.slane %v2401, 1
    %v2403 = vadd.f32 %v2401, %v2402
    %v2404 = vadd.f32 %v2403, %v2266
    %v2405 = vtanh.pop %v2404
    %2406 = vst.msk [vmem:[#allocation3 + $0x9] sm:$0x2] %vm1775, %v2405
    %2407 = vmatprep.subr.mxu0 0.0
    %2408 = vmatpush1.msra.mxu0 0.0
    %2409 = vmatprep.subr.mxu0 0.0
    %2410 = vmatpush1.msra.mxu0 0.0
    %2411 = vmatprep.subr.mxu0 0.0
    %2412 = vmatpush1.msra.mxu0 0.0
    %2413 = vmatprep.subr.mxu0 0.0
    %2414 = vmatpush1.msra.mxu0 0.0
    %2415 = vmatprep.subr.mxu0 0.0
    %2416 = vmatpush1.msra.mxu0 0.0
    %2417 = vmatprep.subr.mxu0 0.0
    %2418 = vmatpush1.msra.mxu0 0.0
    %2419 = vmatprep.subr.mxu0 0.0
    %2420 = vmatpush1.msra.mxu0 0.0
    %2421 = vmatprep.subr.mxu0 0.0
    %2422 = vmatpush1.msra.mxu0 0.0
    %2423 = vmatprep.subr.mxu0 0.0
    %2424 = vmatpush1.msra.mxu0 0.0
    %2425 = vmatprep.subr.mxu0 0.0
    %2426 = vmatpush1.msra.mxu0 0.0
    %2427 = vmatprep.subr.mxu0 0.0
    %2428 = vmatpush1.msra.mxu0 0.0
    %2429 = vmatprep.subr.mxu0 0.0
    %2430 = vmatpush1.msra.mxu0 0.0
    %2431 = vmatprep.subr.mxu0 0.0
    %2432 = vmatpush1.msra.mxu0 %v58
    %2433 = vmatprep.subr.mxu0 0.0
    %2434 = vmatpush1.msra.mxu0 %v57
    %2435 = vmatprep.subr.mxu0 0.0
    %2436 = vmatpush1.msra.mxu0 %v56
    %2437 = vmatprep.subr.mxu0 0.0
    %2438 = vmatpush1.msra.mxu0 %v55
    %2439 = vmatprep.subr.mxu0 0.0
    %2440 = vmatpush2.msra.mxu0 0.0
    %2441 = vmatprep.subr.mxu0 0.0
    %2442 = vmatpush2.msra.mxu0 0.0
    %2443 = vmatprep.subr.mxu0 0.0
    %2444 = vmatpush2.msra.mxu0 0.0
    %2445 = vmatprep.subr.mxu0 0.0
    %2446 = vmatpush2.msra.mxu0 0.0
    %2447 = vmatprep.subr.mxu0 0.0
    %2448 = vmatpush2.msra.mxu0 0.0
    %2449 = vmatprep.subr.mxu0 0.0
    %2450 = vmatpush2.msra.mxu0 0.0
    %2451 = vmatprep.subr.mxu0 0.0
    %2452 = vmatpush2.msra.mxu0 0.0
    %2453 = vmatprep.subr.mxu0 0.0
    %2454 = vmatpush2.msra.mxu0 0.0
    %2455 = vmatprep.subr.mxu0 0.0
    %2456 = vmatpush2.msra.mxu0 0.0
    %2457 = vmatprep.subr.mxu0 0.0
    %2458 = vmatpush2.msra.mxu0 0.0
    %2459 = vmatprep.subr.mxu0 0.0
    %2460 = vmatpush2.msra.mxu0 0.0
    %2461 = vmatprep.subr.mxu0 0.0
    %2462 = vmatpush2.msra.mxu0 0.0
    %2463 = vmatprep.subr.mxu0 0.0
    %2464 = vmatpush2.msra.mxu0 0.0
    %2465 = vmatprep.subr.mxu0 0.0
    %2466 = vmatpush2.msra.mxu0 0.0
    %2467 = vmatprep.subr.mxu0 0.0
    %2468 = vmatpush2.msra.mxu0 0.0
    %2469 = vmatprep.subr.mxu0 0.0
    %2470 = vmatpush2.msra.mxu0 0.0
    %2471 = vmatprep.mubr.f32.mxu0 0.0
    %2472 = vmatmul.mubr.f32.gmra.mxu0 %v2197
    %v2473 = vpop.f32.mrf.mxu0
    %v2474 = vadd.f32 0.0, %v2473
    %v2475 = vpop.f32.mrf.mxu0
    %2476 = vdwg.mxu0
    %v2478 = vrot.slane %v2474, 2
    %v2480 = vadd.f32 %v452, %v2478
    %v2481 = vxor.u32 %v2480, 2147483648
    %v2482 = vmul.f32 %v2481, 1.442695
    %v2483 = vpow.pop %v2482
    %v2484 = vadd.f32 %v2483, 1.0
    %v2485 = vrcp.pop %v2484
    %v2486 = vmul.f32 1.0, %v2485
    %v2487 = vtanh.pop %v2480
    %v2489 = vrot.slane %v2186, 6
    %v2491 = vmul.f32 %v2486, %v2489
    %2493 = vrot.lane.b32.xlu0 %v2487, 64
    %v2494 = vpop.permute.xlu0 %2493
    %v2496 = vmul.f32 %v2486, %v2494
    %2498 = vrot.lane.b32.xlu0 %v2496, 32
    %v2499 = vpop.permute.xlu0 %2498
    %v2501 = vadd.f32 %v2491, %v2499
    %v2502 = vtanh.pop %v2501
    %2504 = vrot.lane.b32.xlu0 %v2502, 64
    %v2505 = vpop.permute.xlu0 %2504
    %v2507 = vmul.f32 %v2486, %v2505
    %v2509 = vrot.slane %v2507, 6
    %2510 = vrot.lane.b32.xlu0 %v2509, 32
    %v2511 = vpop.permute.xlu0 %2510
    %v2512 = vsel %vm181, %v2511, 0
    %2514 = vmatprep.subr.mxu0 0.0
    %2515 = vmatpush1.msra.mxu0 0.0
    %2516 = vmatprep.subr.mxu0 0.0
    %2517 = vmatpush1.msra.mxu0 0.0
    %2518 = vmatprep.subr.mxu0 0.0
    %2519 = vmatpush1.msra.mxu0 0.0
    %2520 = vmatprep.subr.mxu0 0.0
    %2521 = vmatpush1.msra.mxu0 0.0
    %2522 = vmatprep.subr.mxu0 0.0
    %2523 = vmatpush1.msra.mxu0 0.0
    %2524 = vmatprep.subr.mxu0 0.0
    %2525 = vmatpush1.msra.mxu0 0.0
    %2526 = vmatprep.subr.mxu0 0.0
    %2527 = vmatpush1.msra.mxu0 0.0
    %2528 = vmatprep.subr.mxu0 0.0
    %2529 = vmatpush1.msra.mxu0 0.0
    %2530 = vmatprep.subr.mxu0 0.0
    %2531 = vmatpush1.msra.mxu0 0.0
    %2532 = vmatprep.subr.mxu0 0.0
    %2533 = vmatpush1.msra.mxu0 0.0
    %2534 = vmatprep.subr.mxu0 0.0
    %2535 = vmatpush1.msra.mxu0 0.0
    %2536 = vmatprep.subr.mxu0 0.0
    %2537 = vmatpush1.msra.mxu0 0.0
    %2538 = vmatprep.subr.mxu0 0.0
    %2539 = vmatpush1.msra.mxu0 %v62
    %2540 = vmatprep.subr.mxu0 0.0
    %2541 = vmatpush1.msra.mxu0 %v61
    %2542 = vmatprep.subr.mxu0 0.0
    %2543 = vmatpush1.msra.mxu0 %v60
    %2544 = vmatprep.subr.mxu0 0.0
    %2545 = vmatpush1.msra.mxu0 %v59
    %2546 = vmatprep.subr.mxu0 0.0
    %2547 = vmatpush2.msra.mxu0 0.0
    %2548 = vmatprep.subr.mxu0 0.0
    %2549 = vmatpush2.msra.mxu0 0.0
    %2550 = vmatprep.subr.mxu0 0.0
    %2551 = vmatpush2.msra.mxu0 0.0
    %2552 = vmatprep.subr.mxu0 0.0
    %2553 = vmatpush2.msra.mxu0 0.0
    %2554 = vmatprep.subr.mxu0 0.0
    %2555 = vmatpush2.msra.mxu0 0.0
    %2556 = vmatprep.subr.mxu0 0.0
    %2557 = vmatpush2.msra.mxu0 0.0
    %2558 = vmatprep.subr.mxu0 0.0
    %2559 = vmatpush2.msra.mxu0 0.0
    %2560 = vmatprep.subr.mxu0 0.0
    %2561 = vmatpush2.msra.mxu0 0.0
    %2562 = vmatprep.subr.mxu0 0.0
    %2563 = vmatpush2.msra.mxu0 0.0
    %2564 = vmatprep.subr.mxu0 0.0
    %2565 = vmatpush2.msra.mxu0 0.0
    %2566 = vmatprep.subr.mxu0 0.0
    %2567 = vmatpush2.msra.mxu0 0.0
    %2568 = vmatprep.subr.mxu0 0.0
    %2569 = vmatpush2.msra.mxu0 0.0
    %2570 = vmatprep.subr.mxu0 0.0
    %2571 = vmatpush2.msra.mxu0 0.0
    %2572 = vmatprep.subr.mxu0 0.0
    %2573 = vmatpush2.msra.mxu0 0.0
    %2574 = vmatprep.subr.mxu0 0.0
    %2575 = vmatpush2.msra.mxu0 0.0
    %2576 = vmatprep.subr.mxu0 0.0
    %2577 = vmatpush2.msra.mxu0 0.0
    %2578 = vmatprep.mubr.f32.mxu0 0.0
    %2579 = vmatmul.mubr.f32.gmra.mxu0 %v2512
    %v2580 = vpop.f32.mrf.mxu0
    %v2581 = vadd.f32 0.0, %v2580
    %v2582 = vpop.f32.mrf.mxu0
    %2583 = vdwg.mxu0
    %v2584 = vlaneseq
    %v2585 = vshrl.u32 %v2584, 7
    %v2586 = vsub.s32 6, %v2585
    %v2587 = vrot.slane %v2507, %v2586
    %2589 = vrot.lane.b32.xlu0 %v2587, 32
    %v2590 = vpop.permute.xlu0 %2589
    %v2592 = vmul.f32 %v1341, %v2590
    %v2593 = vmul.f32 %v1342, %v2590
    %v2594 = vsel %vm181, %v2592, 0.0
    %2595 = vadd.xlane.f32.xlu0 %v2594
    %v2596 = vpop.xlane.xlu0 %2595
    %v2597 = vsel %vm181, %v2593, 0.0
    %2598 = vadd.xlane.f32.xlu0 %v2597
    %v2599 = vpop.xlane.xlu0 %2598
    %v2600 = vsel %vm1455, %v2596, -1e+30
    %v2601 = vsel %vm1456, %v2599, -1e+30
    %v2602 = vsel %vm1653, %v2600, -inf
    %v2603 = vsel %vm1653, %v2601, -inf
    %v2604 = vmax.f32 %v2602, %v2603
    %v2605 = vrot.slane %v2604, 4
    %v2606 = vmax.f32 %v2604, %v2605
    %v2607 = vrot.slane %v2606, 2
    %v2608 = vmax.f32 %v2606, %v2607
    %v2609 = vrot.slane %v2608, 1
    %v2610 = vmax.f32 %v2608, %v2609
    %v2611 = vsub.f32 %v2600, %v2610
    %v2612 = vsub.f32 %v2601, %v2610
    %v2613 = vmul.f32 %v2611, 1.442695
    %v2614 = vpow.pop %v2613
    %v2615 = vmul.f32 %v2612, 1.442695
    %v2616 = vpow.pop %v2615
    %v2617 = vsel %vm1653, %v2614, 0.0
    %v2618 = vsel %vm1653, %v2616, 0.0
    %v2619 = vadd.f32 %v2617, %v2618
    %v2620 = vrot.slane %v2619, 4
    %v2621 = vadd.f32 %v2619, %v2620
    %v2622 = vrot.slane %v2621, 2
    %v2623 = vadd.f32 %v2621, %v2622
    %v2624 = vrot.slane %v2623, 1
    %v2625 = vadd.f32 %v2623, %v2624
    %v2626 = vrcp.pop %v2625
    %v2627 = vmul.f32 %v2614, %v2626
    %v2628 = vmul.f32 %v2616, %v2626
    %2630 = vset.pattern.permute.xlu0 0
    %2631 = vperm.xlu0 %2630, %v2627
    %v2632 = vpop.permute.xlu0 %2631
    %2635 = vset.pattern.permute.xlu0 0
    %2636 = vperm.xlu0 %2635, %v2628
    %v2637 = vpop.permute.xlu0 %2636
    %v2639 = vmul.f32 %v2632, %v1420
    %v2640 = vmul.f32 %v2637, %v1425
    %v2641 = vsel %vm181, %v2639, 0.0
    %v2642 = vsel %vm181, %v2640, 0.0
    %v2643 = vadd.f32 %v2641, %v2642
    %v2644 = vrot.slane %v2643, 4
    %v2645 = vadd.f32 %v2643, %v2644
    %v2646 = vrot.slane %v2645, 2
    %v2647 = vadd.f32 %v2645, %v2646
    %v2648 = vrot.slane %v2647, 1
    %v2649 = vadd.f32 %v2647, %v2648
    %v2650 = vadd.f32 %v2649, %v2581
    %v2651 = vtanh.pop %v2650
    %2652 = vst.msk [vmem:[#allocation3 + $0x3] sm:$0x1] %vm1704, %v2651
    %v2653 = vlaneseq
    %v2654 = vshrl.u32 %v2653, 7
    %v2655 = vsub.s32 7, %v2654
    %v2656 = vrot.slane %v2507, %v2655
    %2658 = vrot.lane.b32.xlu0 %v2656, 32
    %v2659 = vpop.permute.xlu0 %2658
    %v2661 = vmul.f32 %v1341, %v2659
    %v2662 = vmul.f32 %v1342, %v2659
    %v2663 = vsel %vm181, %v2661, 0.0
    %2664 = vadd.xlane.f32.xlu0 %v2663
    %v2665 = vpop.xlane.xlu0 %2664
    %v2666 = vsel %vm181, %v2662, 0.0
    %2667 = vadd.xlane.f32.xlu0 %v2666
    %v2668 = vpop.xlane.xlu0 %2667
    %v2669 = vsel %vm1455, %v2665, -1e+30
    %v2670 = vsel %vm1456, %v2668, -1e+30
    %v2671 = vsel %vm1724, %v2669, -inf
    %v2672 = vsel %vm1724, %v2670, -inf
    %v2673 = vmax.f32 %v2671, %v2672
    %v2674 = vrot.slane %v2673, 4
    %v2675 = vmax.f32 %v2673, %v2674
    %v2676 = vrot.slane %v2675, 2
    %v2677 = vmax.f32 %v2675, %v2676
    %v2678 = vrot.slane %v2677, 1
    %v2679 = vmax.f32 %v2677, %v2678
    %v2680 = vsub.f32 %v2669, %v2679
    %v2681 = vsub.f32 %v2670, %v2679
    %v2682 = vmul.f32 %v2680, 1.442695
    %v2683 = vpow.pop %v2682
    %v2684 = vmul.f32 %v2681, 1.442695
    %v2685 = vpow.pop %v2684
    %v2686 = vsel %vm1724, %v2683, 0.0
    %v2687 = vsel %vm1724, %v2685, 0.0
    %v2688 = vadd.f32 %v2686, %v2687
    %v2689 = vrot.slane %v2688, 4
    %v2690 = vadd.f32 %v2688, %v2689
    %v2691 = vrot.slane %v2690, 2
    %v2692 = vadd.f32 %v2690, %v2691
    %v2693 = vrot.slane %v2692, 1
    %v2694 = vadd.f32 %v2692, %v2693
    %v2695 = vrcp.pop %v2694
    %v2696 = vmul.f32 %v2683, %v2695
    %v2697 = vmul.f32 %v2685, %v2695
    %2699 = vset.pattern.permute.xlu0 1
    %2700 = vperm.xlu0 %2699, %v2696
    %v2701 = vpop.permute.xlu0 %2700
    %2704 = vset.pattern.permute.xlu0 1
    %2705 = vperm.xlu0 %2704, %v2697
    %v2706 = vpop.permute.xlu0 %2705
    %v2708 = vmul.f32 %v2701, %v1420
    %v2709 = vmul.f32 %v2706, %v1425
    %v2710 = vsel %vm181, %v2708, 0.0
    %v2711 = vsel %vm181, %v2709, 0.0
    %v2712 = vadd.f32 %v2710, %v2711
    %v2713 = vrot.slane %v2712, 4
    %v2714 = vadd.f32 %v2712, %v2713
    %v2715 = vrot.slane %v2714, 2
    %v2716 = vadd.f32 %v2714, %v2715
    %v2717 = vrot.slane %v2716, 1
    %v2718 = vadd.f32 %v2716, %v2717
    %v2719 = vadd.f32 %v2718, %v2581
    %v2720 = vtanh.pop %v2719
    %2721 = vst.msk [vmem:[#allocation3 + $0xa] sm:$0x2] %vm1775, %v2720
    %2722 = vmatprep.subr.mxu0 0.0
    %2723 = vmatpush1.msra.mxu0 0.0
    %2724 = vmatprep.subr.mxu0 0.0
    %2725 = vmatpush1.msra.mxu0 0.0
    %2726 = vmatprep.subr.mxu0 0.0
    %2727 = vmatpush1.msra.mxu0 0.0
    %2728 = vmatprep.subr.mxu0 0.0
    %2729 = vmatpush1.msra.mxu0 0.0
    %2730 = vmatprep.subr.mxu0 0.0
    %2731 = vmatpush1.msra.mxu0 0.0
    %2732 = vmatprep.subr.mxu0 0.0
    %2733 = vmatpush1.msra.mxu0 0.0
    %2734 = vmatprep.subr.mxu0 0.0
    %2735 = vmatpush1.msra.mxu0 0.0
    %2736 = vmatprep.subr.mxu0 0.0
    %2737 = vmatpush1.msra.mxu0 0.0
    %2738 = vmatprep.subr.mxu0 0.0
    %2739 = vmatpush1.msra.mxu0 0.0
    %2740 = vmatprep.subr.mxu0 0.0
    %2741 = vmatpush1.msra.mxu0 0.0
    %2742 = vmatprep.subr.mxu0 0.0
    %2743 = vmatpush1.msra.mxu0 0.0
    %2744 = vmatprep.subr.mxu0 0.0
    %2745 = vmatpush1.msra.mxu0 0.0
    %2746 = vmatprep.subr.mxu0 0.0
    %2747 = vmatpush1.msra.mxu0 %v58
    %2748 = vmatprep.subr.mxu0 0.0
    %2749 = vmatpush1.msra.mxu0 %v57
    %2750 = vmatprep.subr.mxu0 0.0
    %2751 = vmatpush1.msra.mxu0 %v56
    %2752 = vmatprep.subr.mxu0 0.0
    %2753 = vmatpush1.msra.mxu0 %v55
    %2754 = vmatprep.subr.mxu0 0.0
    %2755 = vmatpush2.msra.mxu0 0.0
    %2756 = vmatprep.subr.mxu0 0.0
    %2757 = vmatpush2.msra.mxu0 0.0
    %2758 = vmatprep.subr.mxu0 0.0
    %2759 = vmatpush2.msra.mxu0 0.0
    %2760 = vmatprep.subr.mxu0 0.0
    %2761 = vmatpush2.msra.mxu0 0.0
    %2762 = vmatprep.subr.mxu0 0.0
    %2763 = vmatpush2.msra.mxu0 0.0
    %2764 = vmatprep.subr.mxu0 0.0
    %2765 = vmatpush2.msra.mxu0 0.0
    %2766 = vmatprep.subr.mxu0 0.0
    %2767 = vmatpush2.msra.mxu0 0.0
    %2768 = vmatprep.subr.mxu0 0.0
    %2769 = vmatpush2.msra.mxu0 0.0
    %2770 = vmatprep.subr.mxu0 0.0
    %2771 = vmatpush2.msra.mxu0 0.0
    %2772 = vmatprep.subr.mxu0 0.0
    %2773 = vmatpush2.msra.mxu0 0.0
    %2774 = vmatprep.subr.mxu0 0.0
    %2775 = vmatpush2.msra.mxu0 0.0
    %2776 = vmatprep.subr.mxu0 0.0
    %2777 = vmatpush2.msra.mxu0 0.0
    %2778 = vmatprep.subr.mxu0 0.0
    %2779 = vmatpush2.msra.mxu0 0.0
    %2780 = vmatprep.subr.mxu0 0.0
    %2781 = vmatpush2.msra.mxu0 0.0
    %2782 = vmatprep.subr.mxu0 0.0
    %2783 = vmatpush2.msra.mxu0 0.0
    %2784 = vmatprep.subr.mxu0 0.0
    %2785 = vmatpush2.msra.mxu0 0.0
    %2786 = vmatprep.mubr.f32.mxu0 0.0
    %2787 = vmatmul.mubr.f32.gmra.mxu0 %v2512
    %v2788 = vpop.f32.mrf.mxu0
    %v2789 = vadd.f32 0.0, %v2788
    %v2790 = vpop.f32.mrf.mxu0
    %2791 = vdwg.mxu0
    %v2792 = vadd.f32 %v457, %v2789
    %v2793 = vxor.u32 %v2792, 2147483648
    %v2794 = vmul.f32 %v2793, 1.442695
    %v2795 = vpow.pop %v2794
    %v2796 = vadd.f32 %v2795, 1.0
    %v2797 = vrcp.pop %v2796
    %v2798 = vmul.f32 1.0, %v2797
    %v2799 = vtanh.pop %v2792
    %v2801 = vrot.slane %v2501, 6
    %v2803 = vmul.f32 %v2798, %v2801
    %2805 = vrot.lane.b32.xlu0 %v2799, 64
    %v2806 = vpop.permute.xlu0 %2805
    %v2808 = vmul.f32 %v2798, %v2806
    %2810 = vrot.lane.b32.xlu0 %v2808, 32
    %v2811 = vpop.permute.xlu0 %2810
    %v2813 = vadd.f32 %v2803, %v2811
    %v2814 = vtanh.pop %v2813
    %2816 = vrot.lane.b32.xlu0 %v2814, 64
    %v2817 = vpop.permute.xlu0 %2816
    %v2819 = vmul.f32 %v2798, %v2817
    %2821 = vrot.lane.b32.xlu0 %v2819, 32
    %v2822 = vpop.permute.xlu0 %2821
    %v2823 = vsel %vm181, %v2822, 0
    %2825 = vmatprep.subr.mxu0 0.0
    %2826 = vmatpush1.msra.mxu0 0.0
    %2827 = vmatprep.subr.mxu0 0.0
    %2828 = vmatpush1.msra.mxu0 0.0
    %2829 = vmatprep.subr.mxu0 0.0
    %2830 = vmatpush1.msra.mxu0 0.0
    %2831 = vmatprep.subr.mxu0 0.0
    %2832 = vmatpush1.msra.mxu0 0.0
    %2833 = vmatprep.subr.mxu0 0.0
    %2834 = vmatpush1.msra.mxu0 0.0
    %2835 = vmatprep.subr.mxu0 0.0
    %2836 = vmatpush1.msra.mxu0 0.0
    %2837 = vmatprep.subr.mxu0 0.0
    %2838 = vmatpush1.msra.mxu0 0.0
    %2839 = vmatprep.subr.mxu0 0.0
    %2840 = vmatpush1.msra.mxu0 0.0
    %2841 = vmatprep.subr.mxu0 0.0
    %2842 = vmatpush1.msra.mxu0 0.0
    %2843 = vmatprep.subr.mxu0 0.0
    %2844 = vmatpush1.msra.mxu0 0.0
    %2845 = vmatprep.subr.mxu0 0.0
    %2846 = vmatpush1.msra.mxu0 0.0
    %2847 = vmatprep.subr.mxu0 0.0
    %2848 = vmatpush1.msra.mxu0 0.0
    %2849 = vmatprep.subr.mxu0 0.0
    %2850 = vmatpush1.msra.mxu0 %v62
    %2851 = vmatprep.subr.mxu0 0.0
    %2852 = vmatpush1.msra.mxu0 %v61
    %2853 = vmatprep.subr.mxu0 0.0
    %2854 = vmatpush1.msra.mxu0 %v60
    %2855 = vmatprep.subr.mxu0 0.0
    %2856 = vmatpush1.msra.mxu0 %v59
    %2857 = vmatprep.subr.mxu0 0.0
    %2858 = vmatpush2.msra.mxu0 0.0
    %2859 = vmatprep.subr.mxu0 0.0
    %2860 = vmatpush2.msra.mxu0 0.0
    %2861 = vmatprep.subr.mxu0 0.0
    %2862 = vmatpush2.msra.mxu0 0.0
    %2863 = vmatprep.subr.mxu0 0.0
    %2864 = vmatpush2.msra.mxu0 0.0
    %2865 = vmatprep.subr.mxu0 0.0
    %2866 = vmatpush2.msra.mxu0 0.0
    %2867 = vmatprep.subr.mxu0 0.0
    %2868 = vmatpush2.msra.mxu0 0.0
    %2869 = vmatprep.subr.mxu0 0.0
    %2870 = vmatpush2.msra.mxu0 0.0
    %2871 = vmatprep.subr.mxu0 0.0
    %2872 = vmatpush2.msra.mxu0 0.0
    %2873 = vmatprep.subr.mxu0 0.0
    %2874 = vmatpush2.msra.mxu0 0.0
    %2875 = vmatprep.subr.mxu0 0.0
    %2876 = vmatpush2.msra.mxu0 0.0
    %2877 = vmatprep.subr.mxu0 0.0
    %2878 = vmatpush2.msra.mxu0 0.0
    %2879 = vmatprep.subr.mxu0 0.0
    %2880 = vmatpush2.msra.mxu0 0.0
    %2881 = vmatprep.subr.mxu0 0.0
    %2882 = vmatpush2.msra.mxu0 0.0
    %2883 = vmatprep.subr.mxu0 0.0
    %2884 = vmatpush2.msra.mxu0 0.0
    %2885 = vmatprep.subr.mxu0 0.0
    %2886 = vmatpush2.msra.mxu0 0.0
    %2887 = vmatprep.subr.mxu0 0.0
    %2888 = vmatpush2.msra.mxu0 0.0
    %2889 = vmatprep.mubr.f32.mxu0 0.0
    %2890 = vmatmul.mubr.f32.gmra.mxu0 %v2823
    %v2891 = vpop.f32.mrf.mxu0
    %v2892 = vadd.f32 0.0, %v2891
    %v2893 = vpop.f32.mrf.mxu0
    %2894 = vdwg.mxu0
    %v2895 = vlaneseq
    %v2896 = vshrl.u32 %v2895, 7
    %v2897 = vsub.s32 0, %v2896
    %v2898 = vrot.slane %v2819, %v2897
    %2900 = vrot.lane.b32.xlu0 %v2898, 32
    %v2901 = vpop.permute.xlu0 %2900
    %v2903 = vmul.f32 %v1341, %v2901
    %v2904 = vmul.f32 %v1342, %v2901
    %v2905 = vsel %vm181, %v2903, 0.0
    %2906 = vadd.xlane.f32.xlu0 %v2905
    %v2907 = vpop.xlane.xlu0 %2906
    %v2908 = vsel %vm181, %v2904, 0.0
    %2909 = vadd.xlane.f32.xlu0 %v2908
    %v2910 = vpop.xlane.xlu0 %2909
    %v2911 = vsel %vm1455, %v2907, -1e+30
    %v2912 = vsel %vm1456, %v2910, -1e+30
    %v2913 = vsel %vm1653, %v2911, -inf
    %v2914 = vsel %vm1653, %v2912, -inf
    %v2915 = vmax.f32 %v2913, %v2914
    %v2916 = vrot.slane %v2915, 4
    %v2917 = vmax.f32 %v2915, %v2916
    %v2918 = vrot.slane %v2917, 2
    %v2919 = vmax.f32 %v2917, %v2918
    %v2920 = vrot.slane %v2919, 1
    %v2921 = vmax.f32 %v2919, %v2920
    %v2922 = vsub.f32 %v2911, %v2921
    %v2923 = vsub.f32 %v2912, %v2921
    %v2924 = vmul.f32 %v2922, 1.442695
    %v2925 = vpow.pop %v2924
    %v2926 = vmul.f32 %v2923, 1.442695
    %v2927 = vpow.pop %v2926
    %v2928 = vsel %vm1653, %v2925, 0.0
    %v2929 = vsel %vm1653, %v2927, 0.0
    %v2930 = vadd.f32 %v2928, %v2929
    %v2931 = vrot.slane %v2930, 4
    %v2932 = vadd.f32 %v2930, %v2931
    %v2933 = vrot.slane %v2932, 2
    %v2934 = vadd.f32 %v2932, %v2933
    %v2935 = vrot.slane %v2934, 1
    %v2936 = vadd.f32 %v2934, %v2935
    %v2937 = vrcp.pop %v2936
    %v2938 = vmul.f32 %v2925, %v2937
    %v2939 = vmul.f32 %v2927, %v2937
    %2941 = vset.pattern.permute.xlu0 0
    %2942 = vperm.xlu0 %2941, %v2938
    %v2943 = vpop.permute.xlu0 %2942
    %2946 = vset.pattern.permute.xlu0 0
    %2947 = vperm.xlu0 %2946, %v2939
    %v2948 = vpop.permute.xlu0 %2947
    %v2950 = vmul.f32 %v2943, %v1420
    %v2951 = vmul.f32 %v2948, %v1425
    %v2952 = vsel %vm181, %v2950, 0.0
    %v2953 = vsel %vm181, %v2951, 0.0
    %v2954 = vadd.f32 %v2952, %v2953
    %v2955 = vrot.slane %v2954, 4
    %v2956 = vadd.f32 %v2954, %v2955
    %v2957 = vrot.slane %v2956, 2
    %v2958 = vadd.f32 %v2956, %v2957
    %v2959 = vrot.slane %v2958, 1
    %v2960 = vadd.f32 %v2958, %v2959
    %v2961 = vadd.f32 %v2960, %v2892
    %v2962 = vtanh.pop %v2961
    %2963 = vst.msk [vmem:[#allocation3 + $0x4] sm:$0x1] %vm1704, %v2962
    %v2964 = vlaneseq
    %v2965 = vshrl.u32 %v2964, 7
    %v2966 = vsub.s32 1, %v2965
    %v2967 = vrot.slane %v2819, %v2966
    %2969 = vrot.lane.b32.xlu0 %v2967, 32
    %v2970 = vpop.permute.xlu0 %2969
    %v2972 = vmul.f32 %v1341, %v2970
    %v2973 = vmul.f32 %v1342, %v2970
    %v2974 = vsel %vm181, %v2972, 0.0
    %2975 = vadd.xlane.f32.xlu0 %v2974
    %v2976 = vpop.xlane.xlu0 %2975
    %v2977 = vsel %vm181, %v2973, 0.0
    %2978 = vadd.xlane.f32.xlu0 %v2977
    %v2979 = vpop.xlane.xlu0 %2978
    %v2980 = vsel %vm1455, %v2976, -1e+30
    %v2981 = vsel %vm1456, %v2979, -1e+30
    %v2982 = vsel %vm1724, %v2980, -inf
    %v2983 = vsel %vm1724, %v2981, -inf
    %v2984 = vmax.f32 %v2982, %v2983
    %v2985 = vrot.slane %v2984, 4
    %v2986 = vmax.f32 %v2984, %v2985
    %v2987 = vrot.slane %v2986, 2
    %v2988 = vmax.f32 %v2986, %v2987
    %v2989 = vrot.slane %v2988, 1
    %v2990 = vmax.f32 %v2988, %v2989
    %v2991 = vsub.f32 %v2980, %v2990
    %v2992 = vsub.f32 %v2981, %v2990
    %v2993 = vmul.f32 %v2991, 1.442695
    %v2994 = vpow.pop %v2993
    %v2995 = vmul.f32 %v2992, 1.442695
    %v2996 = vpow.pop %v2995
    %v2997 = vsel %vm1724, %v2994, 0.0
    %v2998 = vsel %vm1724, %v2996, 0.0
    %v2999 = vadd.f32 %v2997, %v2998
    %v3000 = vrot.slane %v2999, 4
    %v3001 = vadd.f32 %v2999, %v3000
    %v3002 = vrot.slane %v3001, 2
    %v3003 = vadd.f32 %v3001, %v3002
    %v3004 = vrot.slane %v3003, 1
    %v3005 = vadd.f32 %v3003, %v3004
    %v3006 = vrcp.pop %v3005
    %v3007 = vmul.f32 %v2994, %v3006
    %v3008 = vmul.f32 %v2996, %v3006
    %3010 = vset.pattern.permute.xlu0 1
    %3011 = vperm.xlu0 %3010, %v3007
    %v3012 = vpop.permute.xlu0 %3011
    %3015 = vset.pattern.permute.xlu0 1
    %3016 = vperm.xlu0 %3015, %v3008
    %v3017 = vpop.permute.xlu0 %3016
    %v3019 = vmul.f32 %v3012, %v1420
    %v3020 = vmul.f32 %v3017, %v1425
    %v3021 = vsel %vm181, %v3019, 0.0
    %v3022 = vsel %vm181, %v3020, 0.0
    %v3023 = vadd.f32 %v3021, %v3022
    %v3024 = vrot.slane %v3023, 4
    %v3025 = vadd.f32 %v3023, %v3024
    %v3026 = vrot.slane %v3025, 2
    %v3027 = vadd.f32 %v3025, %v3026
    %v3028 = vrot.slane %v3027, 1
    %v3029 = vadd.f32 %v3027, %v3028
    %v3030 = vadd.f32 %v3029, %v2892
    %v3031 = vtanh.pop %v3030
    %3032 = vst.msk [vmem:[#allocation3 + $0xb] sm:$0x2] %vm1775, %v3031
    %3033 = vmatprep.subr.mxu0 0.0
    %3034 = vmatpush1.msra.mxu0 0.0
    %3035 = vmatprep.subr.mxu0 0.0
    %3036 = vmatpush1.msra.mxu0 0.0
    %3037 = vmatprep.subr.mxu0 0.0
    %3038 = vmatpush1.msra.mxu0 0.0
    %3039 = vmatprep.subr.mxu0 0.0
    %3040 = vmatpush1.msra.mxu0 0.0
    %3041 = vmatprep.subr.mxu0 0.0
    %3042 = vmatpush1.msra.mxu0 0.0
    %3043 = vmatprep.subr.mxu0 0.0
    %3044 = vmatpush1.msra.mxu0 0.0
    %3045 = vmatprep.subr.mxu0 0.0
    %3046 = vmatpush1.msra.mxu0 0.0
    %3047 = vmatprep.subr.mxu0 0.0
    %3048 = vmatpush1.msra.mxu0 0.0
    %3049 = vmatprep.subr.mxu0 0.0
    %3050 = vmatpush1.msra.mxu0 0.0
    %3051 = vmatprep.subr.mxu0 0.0
    %3052 = vmatpush1.msra.mxu0 0.0
    %3053 = vmatprep.subr.mxu0 0.0
    %3054 = vmatpush1.msra.mxu0 0.0
    %3055 = vmatprep.subr.mxu0 0.0
    %3056 = vmatpush1.msra.mxu0 0.0
    %3057 = vmatprep.subr.mxu0 0.0
    %3058 = vmatpush1.msra.mxu0 %v58
    %3059 = vmatprep.subr.mxu0 0.0
    %3060 = vmatpush1.msra.mxu0 %v57
    %3061 = vmatprep.subr.mxu0 0.0
    %3062 = vmatpush1.msra.mxu0 %v56
    %3063 = vmatprep.subr.mxu0 0.0
    %3064 = vmatpush1.msra.mxu0 %v55
    %3065 = vmatprep.subr.mxu0 0.0
    %3066 = vmatpush2.msra.mxu0 0.0
    %3067 = vmatprep.subr.mxu0 0.0
    %3068 = vmatpush2.msra.mxu0 0.0
    %3069 = vmatprep.subr.mxu0 0.0
    %3070 = vmatpush2.msra.mxu0 0.0
    %3071 = vmatprep.subr.mxu0 0.0
    %3072 = vmatpush2.msra.mxu0 0.0
    %3073 = vmatprep.subr.mxu0 0.0
    %3074 = vmatpush2.msra.mxu0 0.0
    %3075 = vmatprep.subr.mxu0 0.0
    %3076 = vmatpush2.msra.mxu0 0.0
    %3077 = vmatprep.subr.mxu0 0.0
    %3078 = vmatpush2.msra.mxu0 0.0
    %3079 = vmatprep.subr.mxu0 0.0
    %3080 = vmatpush2.msra.mxu0 0.0
    %3081 = vmatprep.subr.mxu0 0.0
    %3082 = vmatpush2.msra.mxu0 0.0
    %3083 = vmatprep.subr.mxu0 0.0
    %3084 = vmatpush2.msra.mxu0 0.0
    %3085 = vmatprep.subr.mxu0 0.0
    %3086 = vmatpush2.msra.mxu0 0.0
    %3087 = vmatprep.subr.mxu0 0.0
    %3088 = vmatpush2.msra.mxu0 0.0
    %3089 = vmatprep.subr.mxu0 0.0
    %3090 = vmatpush2.msra.mxu0 0.0
    %3091 = vmatprep.subr.mxu0 0.0
    %3092 = vmatpush2.msra.mxu0 0.0
    %3093 = vmatprep.subr.mxu0 0.0
    %3094 = vmatpush2.msra.mxu0 0.0
    %3095 = vmatprep.subr.mxu0 0.0
    %3096 = vmatpush2.msra.mxu0 0.0
    %3097 = vmatprep.mubr.f32.mxu0 0.0
    %3098 = vmatmul.mubr.f32.gmra.mxu0 %v2823
    %v3099 = vpop.f32.mrf.mxu0
    %v3100 = vadd.f32 0.0, %v3099
    %v3101 = vpop.f32.mrf.mxu0
    %3102 = vdwg.mxu0
    %v3104 = vrot.slane %v3100, 6
    %v3106 = vadd.f32 %v457, %v3104
    %v3107 = vxor.u32 %v3106, 2147483648
    %v3108 = vmul.f32 %v3107, 1.442695
    %v3109 = vpow.pop %v3108
    %v3110 = vadd.f32 %v3109, 1.0
    %v3111 = vrcp.pop %v3110
    %v3112 = vmul.f32 1.0, %v3111
    %v3113 = vtanh.pop %v3106
    %v3115 = vrot.slane %v2813, 6
    %v3117 = vmul.f32 %v3112, %v3115
    %3119 = vrot.lane.b32.xlu0 %v3113, 64
    %v3120 = vpop.permute.xlu0 %3119
    %v3122 = vmul.f32 %v3112, %v3120
    %3124 = vrot.lane.b32.xlu0 %v3122, 32
    %v3125 = vpop.permute.xlu0 %3124
    %v3127 = vadd.f32 %v3117, %v3125
    %v3128 = vtanh.pop %v3127
    %3130 = vrot.lane.b32.xlu0 %v3128, 64
    %v3131 = vpop.permute.xlu0 %3130
    %v3133 = vmul.f32 %v3112, %v3131
    %v3135 = vrot.slane %v3133, 2
    %3136 = vrot.lane.b32.xlu0 %v3135, 32
    %v3137 = vpop.permute.xlu0 %3136
    %v3138 = vsel %vm181, %v3137, 0
    %3140 = vmatprep.subr.mxu0 0.0
    %3141 = vmatpush1.msra.mxu0 0.0
    %3142 = vmatprep.subr.mxu0 0.0
    %3143 = vmatpush1.msra.mxu0 0.0
    %3144 = vmatprep.subr.mxu0 0.0
    %3145 = vmatpush1.msra.mxu0 0.0
    %3146 = vmatprep.subr.mxu0 0.0
    %3147 = vmatpush1.msra.mxu0 0.0
    %3148 = vmatprep.subr.mxu0 0.0
    %3149 = vmatpush1.msra.mxu0 0.0
    %3150 = vmatprep.subr.mxu0 0.0
    %3151 = vmatpush1.msra.mxu0 0.0
    %3152 = vmatprep.subr.mxu0 0.0
    %3153 = vmatpush1.msra.mxu0 0.0
    %3154 = vmatprep.subr.mxu0 0.0
    %3155 = vmatpush1.msra.mxu0 0.0
    %3156 = vmatprep.subr.mxu0 0.0
    %3157 = vmatpush1.msra.mxu0 0.0
    %3158 = vmatprep.subr.mxu0 0.0
    %3159 = vmatpush1.msra.mxu0 0.0
    %3160 = vmatprep.subr.mxu0 0.0
    %3161 = vmatpush1.msra.mxu0 0.0
    %3162 = vmatprep.subr.mxu0 0.0
    %3163 = vmatpush1.msra.mxu0 0.0
    %3164 = vmatprep.subr.mxu0 0.0
    %3165 = vmatpush1.msra.mxu0 %v62
    %3166 = vmatprep.subr.mxu0 0.0
    %3167 = vmatpush1.msra.mxu0 %v61
    %3168 = vmatprep.subr.mxu0 0.0
    %3169 = vmatpush1.msra.mxu0 %v60
    %3170 = vmatprep.subr.mxu0 0.0
    %3171 = vmatpush1.msra.mxu0 %v59
    %3172 = vmatprep.subr.mxu0 0.0
    %3173 = vmatpush2.msra.mxu0 0.0
    %3174 = vmatprep.subr.mxu0 0.0
    %3175 = vmatpush2.msra.mxu0 0.0
    %3176 = vmatprep.subr.mxu0 0.0
    %3177 = vmatpush2.msra.mxu0 0.0
    %3178 = vmatprep.subr.mxu0 0.0
    %3179 = vmatpush2.msra.mxu0 0.0
    %3180 = vmatprep.subr.mxu0 0.0
    %3181 = vmatpush2.msra.mxu0 0.0
    %3182 = vmatprep.subr.mxu0 0.0
    %3183 = vmatpush2.msra.mxu0 0.0
    %3184 = vmatprep.subr.mxu0 0.0
    %3185 = vmatpush2.msra.mxu0 0.0
    %3186 = vmatprep.subr.mxu0 0.0
    %3187 = vmatpush2.msra.mxu0 0.0
    %3188 = vmatprep.subr.mxu0 0.0
    %3189 = vmatpush2.msra.mxu0 0.0
    %3190 = vmatprep.subr.mxu0 0.0
    %3191 = vmatpush2.msra.mxu0 0.0
    %3192 = vmatprep.subr.mxu0 0.0
    %3193 = vmatpush2.msra.mxu0 0.0
    %3194 = vmatprep.subr.mxu0 0.0
    %3195 = vmatpush2.msra.mxu0 0.0
    %3196 = vmatprep.subr.mxu0 0.0
    %3197 = vmatpush2.msra.mxu0 0.0
    %3198 = vmatprep.subr.mxu0 0.0
    %3199 = vmatpush2.msra.mxu0 0.0
    %3200 = vmatprep.subr.mxu0 0.0
    %3201 = vmatpush2.msra.mxu0 0.0
    %3202 = vmatprep.subr.mxu0 0.0
    %3203 = vmatpush2.msra.mxu0 0.0
    %3204 = vmatprep.mubr.f32.mxu0 0.0
    %3205 = vmatmul.mubr.f32.gmra.mxu0 %v3138
    %v3206 = vpop.f32.mrf.mxu0
    %v3207 = vadd.f32 0.0, %v3206
    %v3208 = vpop.f32.mrf.mxu0
    %3209 = vdwg.mxu0
    %v3210 = vlaneseq
    %v3211 = vshrl.u32 %v3210, 7
    %v3212 = vsub.s32 2, %v3211
    %v3213 = vrot.slane %v3133, %v3212
    %3215 = vrot.lane.b32.xlu0 %v3213, 32
    %v3216 = vpop.permute.xlu0 %3215
    %v3218 = vmul.f32 %v1341, %v3216
    %v3219 = vmul.f32 %v1342, %v3216
    %v3220 = vsel %vm181, %v3218, 0.0
    %3221 = vadd.xlane.f32.xlu0 %v3220
    %v3222 = vpop.xlane.xlu0 %3221
    %v3223 = vsel %vm181, %v3219, 0.0
    %3224 = vadd.xlane.f32.xlu0 %v3223
    %v3225 = vpop.xlane.xlu0 %3224
    %v3226 = vsel %vm1455, %v3222, -1e+30
    %v3227 = vsel %vm1456, %v3225, -1e+30
    %v3228 = vsel %vm1653, %v3226, -inf
    %v3229 = vsel %vm1653, %v3227, -inf
    %v3230 = vmax.f32 %v3228, %v3229
    %v3231 = vrot.slane %v3230, 4
    %v3232 = vmax.f32 %v3230, %v3231
    %v3233 = vrot.slane %v3232, 2
    %v3234 = vmax.f32 %v3232, %v3233
    %v3235 = vrot.slane %v3234, 1
    %v3236 = vmax.f32 %v3234, %v3235
    %v3237 = vsub.f32 %v3226, %v3236
    %v3238 = vsub.f32 %v3227, %v3236
    %v3239 = vmul.f32 %v3237, 1.442695
    %v3240 = vpow.pop %v3239
    %v3241 = vmul.f32 %v3238, 1.442695
    %v3242 = vpow.pop %v3241
    %v3243 = vsel %vm1653, %v3240, 0.0
    %v3244 = vsel %vm1653, %v3242, 0.0
    %v3245 = vadd.f32 %v3243, %v3244
    %v3246 = vrot.slane %v3245, 4
    %v3247 = vadd.f32 %v3245, %v3246
    %v3248 = vrot.slane %v3247, 2
    %v3249 = vadd.f32 %v3247, %v3248
    %v3250 = vrot.slane %v3249, 1
    %v3251 = vadd.f32 %v3249, %v3250
    %v3252 = vrcp.pop %v3251
    %v3253 = vmul.f32 %v3240, %v3252
    %v3254 = vmul.f32 %v3242, %v3252
    %3256 = vset.pattern.permute.xlu0 0
    %3257 = vperm.xlu0 %3256, %v3253
    %v3258 = vpop.permute.xlu0 %3257
    %3261 = vset.pattern.permute.xlu0 0
    %3262 = vperm.xlu0 %3261, %v3254
    %v3263 = vpop.permute.xlu0 %3262
    %v3265 = vmul.f32 %v3258, %v1420
    %v3266 = vmul.f32 %v3263, %v1425
    %v3267 = vsel %vm181, %v3265, 0.0
    %v3268 = vsel %vm181, %v3266, 0.0
    %v3269 = vadd.f32 %v3267, %v3268
    %v3270 = vrot.slane %v3269, 4
    %v3271 = vadd.f32 %v3269, %v3270
    %v3272 = vrot.slane %v3271, 2
    %v3273 = vadd.f32 %v3271, %v3272
    %v3274 = vrot.slane %v3273, 1
    %v3275 = vadd.f32 %v3273, %v3274
    %v3276 = vadd.f32 %v3275, %v3207
    %v3277 = vtanh.pop %v3276
    %3278 = vst.msk [vmem:[#allocation3 + $0x5] sm:$0x1] %vm1704, %v3277
    %v3279 = vlaneseq
    %v3280 = vshrl.u32 %v3279, 7
    %v3281 = vsub.s32 3, %v3280
    %v3282 = vrot.slane %v3133, %v3281
    %3284 = vrot.lane.b32.xlu0 %v3282, 32
    %v3285 = vpop.permute.xlu0 %3284
    %v3287 = vmul.f32 %v1341, %v3285
    %v3288 = vmul.f32 %v1342, %v3285
    %v3289 = vsel %vm181, %v3287, 0.0
    %3290 = vadd.xlane.f32.xlu0 %v3289
    %v3291 = vpop.xlane.xlu0 %3290
    %v3292 = vsel %vm181, %v3288, 0.0
    %3293 = vadd.xlane.f32.xlu0 %v3292
    %v3294 = vpop.xlane.xlu0 %3293
    %v3295 = vsel %vm1455, %v3291, -1e+30
    %v3296 = vsel %vm1456, %v3294, -1e+30
    %v3297 = vsel %vm1724, %v3295, -inf
    %v3298 = vsel %vm1724, %v3296, -inf
    %v3299 = vmax.f32 %v3297, %v3298
    %v3300 = vrot.slane %v3299, 4
    %v3301 = vmax.f32 %v3299, %v3300
    %v3302 = vrot.slane %v3301, 2
    %v3303 = vmax.f32 %v3301, %v3302
    %v3304 = vrot.slane %v3303, 1
    %v3305 = vmax.f32 %v3303, %v3304
    %v3306 = vsub.f32 %v3295, %v3305
    %v3307 = vsub.f32 %v3296, %v3305
    %v3308 = vmul.f32 %v3306, 1.442695
    %v3309 = vpow.pop %v3308
    %v3310 = vmul.f32 %v3307, 1.442695
    %v3311 = vpow.pop %v3310
    %v3312 = vsel %vm1724, %v3309, 0.0
    %v3313 = vsel %vm1724, %v3311, 0.0
    %v3314 = vadd.f32 %v3312, %v3313
    %v3315 = vrot.slane %v3314, 4
    %v3316 = vadd.f32 %v3314, %v3315
    %v3317 = vrot.slane %v3316, 2
    %v3318 = vadd.f32 %v3316, %v3317
    %v3319 = vrot.slane %v3318, 1
    %v3320 = vadd.f32 %v3318, %v3319
    %v3321 = vrcp.pop %v3320
    %v3322 = vmul.f32 %v3309, %v3321
    %v3323 = vmul.f32 %v3311, %v3321
    %3325 = vset.pattern.permute.xlu0 1
    %3326 = vperm.xlu0 %3325, %v3322
    %v3327 = vpop.permute.xlu0 %3326
    %3330 = vset.pattern.permute.xlu0 1
    %3331 = vperm.xlu0 %3330, %v3323
    %v3332 = vpop.permute.xlu0 %3331
    %v3334 = vmul.f32 %v3327, %v1420
    %v3335 = vmul.f32 %v3332, %v1425
    %v3336 = vsel %vm181, %v3334, 0.0
    %v3337 = vsel %vm181, %v3335, 0.0
    %v3338 = vadd.f32 %v3336, %v3337
    %v3339 = vrot.slane %v3338, 4
    %v3340 = vadd.f32 %v3338, %v3339
    %v3341 = vrot.slane %v3340, 2
    %v3342 = vadd.f32 %v3340, %v3341
    %v3343 = vrot.slane %v3342, 1
    %v3344 = vadd.f32 %v3342, %v3343
    %v3345 = vadd.f32 %v3344, %v3207
    %v3346 = vtanh.pop %v3345
    %3347 = vst.msk [vmem:[#allocation3 + $0xc] sm:$0x2] %vm1775, %v3346
    %3348 = vmatprep.subr.mxu0 0.0
    %3349 = vmatpush1.msra.mxu0 0.0
    %3350 = vmatprep.subr.mxu0 0.0
    %3351 = vmatpush1.msra.mxu0 0.0
    %3352 = vmatprep.subr.mxu0 0.0
    %3353 = vmatpush1.msra.mxu0 0.0
    %3354 = vmatprep.subr.mxu0 0.0
    %3355 = vmatpush1.msra.mxu0 0.0
    %3356 = vmatprep.subr.mxu0 0.0
    %3357 = vmatpush1.msra.mxu0 0.0
    %3358 = vmatprep.subr.mxu0 0.0
    %3359 = vmatpush1.msra.mxu0 0.0
    %3360 = vmatprep.subr.mxu0 0.0
    %3361 = vmatpush1.msra.mxu0 0.0
    %3362 = vmatprep.subr.mxu0 0.0
    %3363 = vmatpush1.msra.mxu0 0.0
    %3364 = vmatprep.subr.mxu0 0.0
    %3365 = vmatpush1.msra.mxu0 0.0
    %3366 = vmatprep.subr.mxu0 0.0
    %3367 = vmatpush1.msra.mxu0 0.0
    %3368 = vmatprep.subr.mxu0 0.0
    %3369 = vmatpush1.msra.mxu0 0.0
    %3370 = vmatprep.subr.mxu0 0.0
    %3371 = vmatpush1.msra.mxu0 0.0
    %3372 = vmatprep.subr.mxu0 0.0
    %3373 = vmatpush1.msra.mxu0 %v58
    %3374 = vmatprep.subr.mxu0 0.0
    %3375 = vmatpush1.msra.mxu0 %v57
    %3376 = vmatprep.subr.mxu0 0.0
    %3377 = vmatpush1.msra.mxu0 %v56
    %3378 = vmatprep.subr.mxu0 0.0
    %3379 = vmatpush1.msra.mxu0 %v55
    %3380 = vmatprep.subr.mxu0 0.0
    %3381 = vmatpush2.msra.mxu0 0.0
    %3382 = vmatprep.subr.mxu0 0.0
    %3383 = vmatpush2.msra.mxu0 0.0
    %3384 = vmatprep.subr.mxu0 0.0
    %3385 = vmatpush2.msra.mxu0 0.0
    %3386 = vmatprep.subr.mxu0 0.0
    %3387 = vmatpush2.msra.mxu0 0.0
    %3388 = vmatprep.subr.mxu0 0.0
    %3389 = vmatpush2.msra.mxu0 0.0
    %3390 = vmatprep.subr.mxu0 0.0
    %3391 = vmatpush2.msra.mxu0 0.0
    %3392 = vmatprep.subr.mxu0 0.0
    %3393 = vmatpush2.msra.mxu0 0.0
    %3394 = vmatprep.subr.mxu0 0.0
    %3395 = vmatpush2.msra.mxu0 0.0
    %3396 = vmatprep.subr.mxu0 0.0
    %3397 = vmatpush2.msra.mxu0 0.0
    %3398 = vmatprep.subr.mxu0 0.0
    %3399 = vmatpush2.msra.mxu0 0.0
    %3400 = vmatprep.subr.mxu0 0.0
    %3401 = vmatpush2.msra.mxu0 0.0
    %3402 = vmatprep.subr.mxu0 0.0
    %3403 = vmatpush2.msra.mxu0 0.0
    %3404 = vmatprep.subr.mxu0 0.0
    %3405 = vmatpush2.msra.mxu0 0.0
    %3406 = vmatprep.subr.mxu0 0.0
    %3407 = vmatpush2.msra.mxu0 0.0
    %3408 = vmatprep.subr.mxu0 0.0
    %3409 = vmatpush2.msra.mxu0 0.0
    %3410 = vmatprep.subr.mxu0 0.0
    %3411 = vmatpush2.msra.mxu0 0.0
    %3412 = vmatprep.mubr.f32.mxu0 0.0
    %3413 = vmatmul.mubr.f32.gmra.mxu0 %v3138
    %v3414 = vpop.f32.mrf.mxu0
    %v3415 = vadd.f32 0.0, %v3414
    %v3416 = vpop.f32.mrf.mxu0
    %3417 = vdwg.mxu0
    %v3419 = vrot.slane %v3415, 4
    %v3421 = vadd.f32 %v457, %v3419
    %v3422 = vxor.u32 %v3421, 2147483648
    %v3423 = vmul.f32 %v3422, 1.442695
    %v3424 = vpow.pop %v3423
    %v3425 = vadd.f32 %v3424, 1.0
    %v3426 = vrcp.pop %v3425
    %v3427 = vmul.f32 1.0, %v3426
    %v3428 = vtanh.pop %v3421
    %v3430 = vrot.slane %v3127, 6
    %v3432 = vmul.f32 %v3427, %v3430
    %3434 = vrot.lane.b32.xlu0 %v3428, 64
    %v3435 = vpop.permute.xlu0 %3434
    %v3437 = vmul.f32 %v3427, %v3435
    %3439 = vrot.lane.b32.xlu0 %v3437, 32
    %v3440 = vpop.permute.xlu0 %3439
    %v3442 = vadd.f32 %v3432, %v3440
    %v3443 = vtanh.pop %v3442
    %3445 = vrot.lane.b32.xlu0 %v3443, 64
    %v3446 = vpop.permute.xlu0 %3445
    %v3448 = vmul.f32 %v3427, %v3446
    %v3450 = vrot.slane %v3448, 4
    %3451 = vrot.lane.b32.xlu0 %v3450, 32
    %v3452 = vpop.permute.xlu0 %3451
    %v3453 = vsel %vm181, %v3452, 0
    %3455 = vmatprep.subr.mxu0 0.0
    %3456 = vmatpush1.msra.mxu0 0.0
    %3457 = vmatprep.subr.mxu0 0.0
    %3458 = vmatpush1.msra.mxu0 0.0
    %3459 = vmatprep.subr.mxu0 0.0
    %3460 = vmatpush1.msra.mxu0 0.0
    %3461 = vmatprep.subr.mxu0 0.0
    %3462 = vmatpush1.msra.mxu0 0.0
    %3463 = vmatprep.subr.mxu0 0.0
    %3464 = vmatpush1.msra.mxu0 0.0
    %3465 = vmatprep.subr.mxu0 0.0
    %3466 = vmatpush1.msra.mxu0 0.0
    %3467 = vmatprep.subr.mxu0 0.0
    %3468 = vmatpush1.msra.mxu0 0.0
    %3469 = vmatprep.subr.mxu0 0.0
    %3470 = vmatpush1.msra.mxu0 0.0
    %3471 = vmatprep.subr.mxu0 0.0
    %3472 = vmatpush1.msra.mxu0 0.0
    %3473 = vmatprep.subr.mxu0 0.0
    %3474 = vmatpush1.msra.mxu0 0.0
    %3475 = vmatprep.subr.mxu0 0.0
    %3476 = vmatpush1.msra.mxu0 0.0
    %3477 = vmatprep.subr.mxu0 0.0
    %3478 = vmatpush1.msra.mxu0 0.0
    %3479 = vmatprep.subr.mxu0 0.0
    %3480 = vmatpush1.msra.mxu0 %v62
    %3481 = vmatprep.subr.mxu0 0.0
    %3482 = vmatpush1.msra.mxu0 %v61
    %3483 = vmatprep.subr.mxu0 0.0
    %3484 = vmatpush1.msra.mxu0 %v60
    %3485 = vmatprep.subr.mxu0 0.0
    %3486 = vmatpush1.msra.mxu0 %v59
    %3487 = vmatprep.subr.mxu0 0.0
    %3488 = vmatpush2.msra.mxu0 0.0
    %3489 = vmatprep.subr.mxu0 0.0
    %3490 = vmatpush2.msra.mxu0 0.0
    %3491 = vmatprep.subr.mxu0 0.0
    %3492 = vmatpush2.msra.mxu0 0.0
    %3493 = vmatprep.subr.mxu0 0.0
    %3494 = vmatpush2.msra.mxu0 0.0
    %3495 = vmatprep.subr.mxu0 0.0
    %3496 = vmatpush2.msra.mxu0 0.0
    %3497 = vmatprep.subr.mxu0 0.0
    %3498 = vmatpush2.msra.mxu0 0.0
    %3499 = vmatprep.subr.mxu0 0.0
    %3500 = vmatpush2.msra.mxu0 0.0
    %3501 = vmatprep.subr.mxu0 0.0
    %3502 = vmatpush2.msra.mxu0 0.0
    %3503 = vmatprep.subr.mxu0 0.0
    %3504 = vmatpush2.msra.mxu0 0.0
    %3505 = vmatprep.subr.mxu0 0.0
    %3506 = vmatpush2.msra.mxu0 0.0
    %3507 = vmatprep.subr.mxu0 0.0
    %3508 = vmatpush2.msra.mxu0 0.0
    %3509 = vmatprep.subr.mxu0 0.0
    %3510 = vmatpush2.msra.mxu0 0.0
    %3511 = vmatprep.subr.mxu0 0.0
    %3512 = vmatpush2.msra.mxu0 0.0
    %3513 = vmatprep.subr.mxu0 0.0
    %3514 = vmatpush2.msra.mxu0 0.0
    %3515 = vmatprep.subr.mxu0 0.0
    %3516 = vmatpush2.msra.mxu0 0.0
    %3517 = vmatprep.subr.mxu0 0.0
    %3518 = vmatpush2.msra.mxu0 0.0
    %3519 = vmatprep.mubr.f32.mxu0 0.0
    %3520 = vmatmul.mubr.f32.gmra.mxu0 %v3453
    %v3521 = vpop.f32.mrf.mxu0
    %v3522 = vadd.f32 0.0, %v3521
    %v3523 = vpop.f32.mrf.mxu0
    %3524 = vdwg.mxu0
    %v3525 = vlaneseq
    %v3526 = vshrl.u32 %v3525, 7
    %v3527 = vsub.s32 4, %v3526
    %v3528 = vrot.slane %v3448, %v3527
    %3530 = vrot.lane.b32.xlu0 %v3528, 32
    %v3531 = vpop.permute.xlu0 %3530
    %v3533 = vmul.f32 %v1341, %v3531
    %v3534 = vmul.f32 %v1342, %v3531
    %v3535 = vsel %vm181, %v3533, 0.0
    %3536 = vadd.xlane.f32.xlu0 %v3535
    %v3537 = vpop.xlane.xlu0 %3536
    %v3538 = vsel %vm181, %v3534, 0.0
    %3539 = vadd.xlane.f32.xlu0 %v3538
    %v3540 = vpop.xlane.xlu0 %3539
    %v3541 = vsel %vm1455, %v3537, -1e+30
    %v3542 = vsel %vm1456, %v3540, -1e+30
    %v3543 = vsel %vm1653, %v3541, -inf
    %v3544 = vsel %vm1653, %v3542, -inf
    %v3545 = vmax.f32 %v3543, %v3544
    %v3546 = vrot.slane %v3545, 4
    %v3547 = vmax.f32 %v3545, %v3546
    %v3548 = vrot.slane %v3547, 2
    %v3549 = vmax.f32 %v3547, %v3548
    %v3550 = vrot.slane %v3549, 1
    %v3551 = vmax.f32 %v3549, %v3550
    %v3552 = vsub.f32 %v3541, %v3551
    %v3553 = vsub.f32 %v3542, %v3551
    %v3554 = vmul.f32 %v3552, 1.442695
    %v3555 = vpow.pop %v3554
    %v3556 = vmul.f32 %v3553, 1.442695
    %v3557 = vpow.pop %v3556
    %v3558 = vsel %vm1653, %v3555, 0.0
    %v3559 = vsel %vm1653, %v3557, 0.0
    %v3560 = vadd.f32 %v3558, %v3559
    %v3561 = vrot.slane %v3560, 4
    %v3562 = vadd.f32 %v3560, %v3561
    %v3563 = vrot.slane %v3562, 2
    %v3564 = vadd.f32 %v3562, %v3563
    %v3565 = vrot.slane %v3564, 1
    %v3566 = vadd.f32 %v3564, %v3565
    %v3567 = vrcp.pop %v3566
    %v3568 = vmul.f32 %v3555, %v3567
    %v3569 = vmul.f32 %v3557, %v3567
    %3571 = vset.pattern.permute.xlu0 0
    %3572 = vperm.xlu0 %3571, %v3568
    %v3573 = vpop.permute.xlu0 %3572
    %3576 = vset.pattern.permute.xlu0 0
    %3577 = vperm.xlu0 %3576, %v3569
    %v3578 = vpop.permute.xlu0 %3577
    %v3580 = vmul.f32 %v3573, %v1420
    %v3581 = vmul.f32 %v3578, %v1425
    %v3582 = vsel %vm181, %v3580, 0.0
    %v3583 = vsel %vm181, %v3581, 0.0
    %v3584 = vadd.f32 %v3582, %v3583
    %v3585 = vrot.slane %v3584, 4
    %v3586 = vadd.f32 %v3584, %v3585
    %v3587 = vrot.slane %v3586, 2
    %v3588 = vadd.f32 %v3586, %v3587
    %v3589 = vrot.slane %v3588, 1
    %v3590 = vadd.f32 %v3588, %v3589
    %v3591 = vadd.f32 %v3590, %v3522
    %v3592 = vtanh.pop %v3591
    %3593 = vst.msk [vmem:[#allocation3 + $0x6] sm:$0x1] %vm1704, %v3592
    %v3594 = vlaneseq
    %v3595 = vshrl.u32 %v3594, 7
    %v3596 = vsub.s32 5, %v3595
    %v3597 = vrot.slane %v3448, %v3596
    %3599 = vrot.lane.b32.xlu0 %v3597, 32
    %v3600 = vpop.permute.xlu0 %3599
    %v3602 = vmul.f32 %v1341, %v3600
    %v3603 = vmul.f32 %v1342, %v3600
    %v3604 = vsel %vm181, %v3602, 0.0
    %3605 = vadd.xlane.f32.xlu0 %v3604
    %v3606 = vpop.xlane.xlu0 %3605
    %v3607 = vsel %vm181, %v3603, 0.0
    %3608 = vadd.xlane.f32.xlu0 %v3607
    %v3609 = vpop.xlane.xlu0 %3608
    %v3610 = vsel %vm1455, %v3606, -1e+30
    %v3611 = vsel %vm1456, %v3609, -1e+30
    %v3612 = vsel %vm1724, %v3610, -inf
    %v3613 = vsel %vm1724, %v3611, -inf
    %v3614 = vmax.f32 %v3612, %v3613
    %v3615 = vrot.slane %v3614, 4
    %v3616 = vmax.f32 %v3614, %v3615
    %v3617 = vrot.slane %v3616, 2
    %v3618 = vmax.f32 %v3616, %v3617
    %v3619 = vrot.slane %v3618, 1
    %v3620 = vmax.f32 %v3618, %v3619
    %v3621 = vsub.f32 %v3610, %v3620
    %v3622 = vsub.f32 %v3611, %v3620
    %v3623 = vmul.f32 %v3621, 1.442695
    %v3624 = vpow.pop %v3623
    %v3625 = vmul.f32 %v3622, 1.442695
    %v3626 = vpow.pop %v3625
    %v3627 = vsel %vm1724, %v3624, 0.0
    %v3628 = vsel %vm1724, %v3626, 0.0
    %v3629 = vadd.f32 %v3627, %v3628
    %v3630 = vrot.slane %v3629, 4
    %v3631 = vadd.f32 %v3629, %v3630
    %v3632 = vrot.slane %v3631, 2
    %v3633 = vadd.f32 %v3631, %v3632
    %v3634 = vrot.slane %v3633, 1
    %v3635 = vadd.f32 %v3633, %v3634
    %v3636 = vrcp.pop %v3635
    %v3637 = vmul.f32 %v3624, %v3636
    %v3638 = vmul.f32 %v3626, %v3636
    %3640 = vset.pattern.permute.xlu0 1
    %3641 = vperm.xlu0 %3640, %v3637
    %v3642 = vpop.permute.xlu0 %3641
    %3645 = vset.pattern.permute.xlu0 1
    %3646 = vperm.xlu0 %3645, %v3638
    %v3647 = vpop.permute.xlu0 %3646
    %v3649 = vmul.f32 %v3642, %v1420
    %v3650 = vmul.f32 %v3647, %v1425
    %v3651 = vsel %vm181, %v3649, 0.0
    %v3652 = vsel %vm181, %v3650, 0.0
    %v3653 = vadd.f32 %v3651, %v3652
    %v3654 = vrot.slane %v3653, 4
    %v3655 = vadd.f32 %v3653, %v3654
    %v3656 = vrot.slane %v3655, 2
    %v3657 = vadd.f32 %v3655, %v3656
    %v3658 = vrot.slane %v3657, 1
    %v3659 = vadd.f32 %v3657, %v3658
    %v3660 = vadd.f32 %v3659, %v3522
    %v3661 = vtanh.pop %v3660
    %3662 = vst.msk [vmem:[#allocation3 + $0xd] sm:$0x2] %vm1775, %v3661
    %3663 = vmatprep.subr.mxu0 0.0
    %3664 = vmatpush1.msra.mxu0 0.0
    %3665 = vmatprep.subr.mxu0 0.0
    %3666 = vmatpush1.msra.mxu0 0.0
    %3667 = vmatprep.subr.mxu0 0.0
    %3668 = vmatpush1.msra.mxu0 0.0
    %3669 = vmatprep.subr.mxu0 0.0
    %3670 = vmatpush1.msra.mxu0 0.0
    %3671 = vmatprep.subr.mxu0 0.0
    %3672 = vmatpush1.msra.mxu0 0.0
    %3673 = vmatprep.subr.mxu0 0.0
    %3674 = vmatpush1.msra.mxu0 0.0
    %3675 = vmatprep.subr.mxu0 0.0
    %3676 = vmatpush1.msra.mxu0 0.0
    %3677 = vmatprep.subr.mxu0 0.0
    %3678 = vmatpush1.msra.mxu0 0.0
    %3679 = vmatprep.subr.mxu0 0.0
    %3680 = vmatpush1.msra.mxu0 0.0
    %3681 = vmatprep.subr.mxu0 0.0
    %3682 = vmatpush1.msra.mxu0 0.0
    %3683 = vmatprep.subr.mxu0 0.0
    %3684 = vmatpush1.msra.mxu0 0.0
    %3685 = vmatprep.subr.mxu0 0.0
    %3686 = vmatpush1.msra.mxu0 0.0
    %3687 = vmatprep.subr.mxu0 0.0
    %3688 = vmatpush1.msra.mxu0 %v58
    %3689 = vmatprep.subr.mxu0 0.0
    %3690 = vmatpush1.msra.mxu0 %v57
    %3691 = vmatprep.subr.mxu0 0.0
    %3692 = vmatpush1.msra.mxu0 %v56
    %3693 = vmatprep.subr.mxu0 0.0
    %3694 = vmatpush1.msra.mxu0 %v55
    %3695 = vmatprep.subr.mxu0 0.0
    %3696 = vmatpush2.msra.mxu0 0.0
    %3697 = vmatprep.subr.mxu0 0.0
    %3698 = vmatpush2.msra.mxu0 0.0
    %3699 = vmatprep.subr.mxu0 0.0
    %3700 = vmatpush2.msra.mxu0 0.0
    %3701 = vmatprep.subr.mxu0 0.0
    %3702 = vmatpush2.msra.mxu0 0.0
    %3703 = vmatprep.subr.mxu0 0.0
    %3704 = vmatpush2.msra.mxu0 0.0
    %3705 = vmatprep.subr.mxu0 0.0
    %3706 = vmatpush2.msra.mxu0 0.0
    %3707 = vmatprep.subr.mxu0 0.0
    %3708 = vmatpush2.msra.mxu0 0.0
    %3709 = vmatprep.subr.mxu0 0.0
    %3710 = vmatpush2.msra.mxu0 0.0
    %3711 = vmatprep.subr.mxu0 0.0
    %3712 = vmatpush2.msra.mxu0 0.0
    %3713 = vmatprep.subr.mxu0 0.0
    %3714 = vmatpush2.msra.mxu0 0.0
    %3715 = vmatprep.subr.mxu0 0.0
    %3716 = vmatpush2.msra.mxu0 0.0
    %3717 = vmatprep.subr.mxu0 0.0
    %3718 = vmatpush2.msra.mxu0 0.0
    %3719 = vmatprep.subr.mxu0 0.0
    %3720 = vmatpush2.msra.mxu0 0.0
    %3721 = vmatprep.subr.mxu0 0.0
    %3722 = vmatpush2.msra.mxu0 0.0
    %3723 = vmatprep.subr.mxu0 0.0
    %3724 = vmatpush2.msra.mxu0 0.0
    %3725 = vmatprep.subr.mxu0 0.0
    %3726 = vmatpush2.msra.mxu0 0.0
    %3727 = vmatprep.mubr.f32.mxu0 0.0
    %3728 = vmatmul.mubr.f32.gmra.mxu0 %v3453
    %v3729 = vpop.f32.mrf.mxu0
    %v3730 = vadd.f32 0.0, %v3729
    %v3731 = vpop.f32.mrf.mxu0
    %3732 = vdwg.mxu0
    %v3734 = vrot.slane %v3730, 2
    %v3736 = vadd.f32 %v457, %v3734
    %v3737 = vxor.u32 %v3736, 2147483648
    %v3738 = vmul.f32 %v3737, 1.442695
    %v3739 = vpow.pop %v3738
    %v3740 = vadd.f32 %v3739, 1.0
    %v3741 = vrcp.pop %v3740
    %v3742 = vmul.f32 1.0, %v3741
    %v3743 = vtanh.pop %v3736
    %v3745 = vrot.slane %v3442, 6
    %v3747 = vmul.f32 %v3742, %v3745
    %3749 = vrot.lane.b32.xlu0 %v3743, 64
    %v3750 = vpop.permute.xlu0 %3749
    %v3752 = vmul.f32 %v3742, %v3750
    %3754 = vrot.lane.b32.xlu0 %v3752, 32
    %v3755 = vpop.permute.xlu0 %3754
    %v3757 = vadd.f32 %v3747, %v3755
    %v3758 = vtanh.pop %v3757
    %3760 = vrot.lane.b32.xlu0 %v3758, 64
    %v3761 = vpop.permute.xlu0 %3760
    %v3763 = vmul.f32 %v3742, %v3761
    %v3765 = vrot.slane %v3763, 6
    %3766 = vrot.lane.b32.xlu0 %v3765, 32
    %v3767 = vpop.permute.xlu0 %3766
    %v3768 = vsel %vm181, %v3767, 0
    %3770 = vmatprep.subr.mxu0 0.0
    %3771 = vmatpush1.msra.mxu0 0.0
    %3772 = vmatprep.subr.mxu0 0.0
    %3773 = vmatpush1.msra.mxu0 0.0
    %3774 = vmatprep.subr.mxu0 0.0
    %3775 = vmatpush1.msra.mxu0 0.0
    %3776 = vmatprep.subr.mxu0 0.0
    %3777 = vmatpush1.msra.mxu0 0.0
    %3778 = vmatprep.subr.mxu0 0.0
    %3779 = vmatpush1.msra.mxu0 0.0
    %3780 = vmatprep.subr.mxu0 0.0
    %3781 = vmatpush1.msra.mxu0 0.0
    %3782 = vmatprep.subr.mxu0 0.0
    %3783 = vmatpush1.msra.mxu0 0.0
    %3784 = vmatprep.subr.mxu0 0.0
    %3785 = vmatpush1.msra.mxu0 0.0
    %3786 = vmatprep.subr.mxu0 0.0
    %3787 = vmatpush1.msra.mxu0 0.0
    %3788 = vmatprep.subr.mxu0 0.0
    %3789 = vmatpush1.msra.mxu0 0.0
    %3790 = vmatprep.subr.mxu0 0.0
    %3791 = vmatpush1.msra.mxu0 0.0
    %3792 = vmatprep.subr.mxu0 0.0
    %3793 = vmatpush1.msra.mxu0 0.0
    %3794 = vmatprep.subr.mxu0 0.0
    %3795 = vmatpush1.msra.mxu0 %v62
    %3796 = vmatprep.subr.mxu0 0.0
    %3797 = vmatpush1.msra.mxu0 %v61
    %3798 = vmatprep.subr.mxu0 0.0
    %3799 = vmatpush1.msra.mxu0 %v60
    %3800 = vmatprep.subr.mxu0 0.0
    %3801 = vmatpush1.msra.mxu0 %v59
    %3802 = vmatprep.subr.mxu0 0.0
    %3803 = vmatpush2.msra.mxu0 0.0
    %3804 = vmatprep.subr.mxu0 0.0
    %3805 = vmatpush2.msra.mxu0 0.0
    %3806 = vmatprep.subr.mxu0 0.0
    %3807 = vmatpush2.msra.mxu0 0.0
    %3808 = vmatprep.subr.mxu0 0.0
    %3809 = vmatpush2.msra.mxu0 0.0
    %3810 = vmatprep.subr.mxu0 0.0
    %3811 = vmatpush2.msra.mxu0 0.0
    %3812 = vmatprep.subr.mxu0 0.0
    %3813 = vmatpush2.msra.mxu0 0.0
    %3814 = vmatprep.subr.mxu0 0.0
    %3815 = vmatpush2.msra.mxu0 0.0
    %3816 = vmatprep.subr.mxu0 0.0
    %3817 = vmatpush2.msra.mxu0 0.0
    %3818 = vmatprep.subr.mxu0 0.0
    %3819 = vmatpush2.msra.mxu0 0.0
    %3820 = vmatprep.subr.mxu0 0.0
    %3821 = vmatpush2.msra.mxu0 0.0
    %3822 = vmatprep.subr.mxu0 0.0
    %3823 = vmatpush2.msra.mxu0 0.0
    %3824 = vmatprep.subr.mxu0 0.0
    %3825 = vmatpush2.msra.mxu0 0.0
    %3826 = vmatprep.subr.mxu0 0.0
    %3827 = vmatpush2.msra.mxu0 0.0
    %3828 = vmatprep.subr.mxu0 0.0
    %3829 = vmatpush2.msra.mxu0 0.0
    %3830 = vmatprep.subr.mxu0 0.0
    %3831 = vmatpush2.msra.mxu0 0.0
    %3832 = vmatprep.subr.mxu0 0.0
    %3833 = vmatpush2.msra.mxu0 0.0
    %3834 = vmatprep.mubr.f32.mxu0 0.0
    %3835 = vmatmul.mubr.f32.gmra.mxu0 %v3768
    %v3836 = vpop.f32.mrf.mxu0
    %v3837 = vadd.f32 0.0, %v3836
    %v3838 = vpop.f32.mrf.mxu0
    %3839 = vdwg.mxu0
    %v3840 = vlaneseq
    %v3841 = vshrl.u32 %v3840, 7
    %v3842 = vsub.s32 6, %v3841
    %v3843 = vrot.slane %v3763, %v3842
    %3845 = vrot.lane.b32.xlu0 %v3843, 32
    %v3846 = vpop.permute.xlu0 %3845
    %v3848 = vmul.f32 %v1341, %v3846
    %v3849 = vmul.f32 %v1342, %v3846
    %v3850 = vsel %vm181, %v3848, 0.0
    %3851 = vadd.xlane.f32.xlu0 %v3850
    %v3852 = vpop.xlane.xlu0 %3851
    %v3853 = vsel %vm181, %v3849, 0.0
    %3854 = vadd.xlane.f32.xlu0 %v3853
    %v3855 = vpop.xlane.xlu0 %3854
    %v3856 = vsel %vm1455, %v3852, -1e+30
    %v3857 = vsel %vm1456, %v3855, -1e+30
    %v3858 = vsel %vm1653, %v3856, -inf
    %v3859 = vsel %vm1653, %v3857, -inf
    %v3860 = vmax.f32 %v3858, %v3859
    %v3861 = vrot.slane %v3860, 4
    %v3862 = vmax.f32 %v3860, %v3861
    %v3863 = vrot.slane %v3862, 2
    %v3864 = vmax.f32 %v3862, %v3863
    %v3865 = vrot.slane %v3864, 1
    %v3866 = vmax.f32 %v3864, %v3865
    %v3867 = vsub.f32 %v3856, %v3866
    %v3868 = vsub.f32 %v3857, %v3866
    %v3869 = vmul.f32 %v3867, 1.442695
    %v3870 = vpow.pop %v3869
    %v3871 = vmul.f32 %v3868, 1.442695
    %v3872 = vpow.pop %v3871
    %v3873 = vsel %vm1653, %v3870, 0.0
    %v3874 = vsel %vm1653, %v3872, 0.0
    %v3875 = vadd.f32 %v3873, %v3874
    %v3876 = vrot.slane %v3875, 4
    %v3877 = vadd.f32 %v3875, %v3876
    %v3878 = vrot.slane %v3877, 2
    %v3879 = vadd.f32 %v3877, %v3878
    %v3880 = vrot.slane %v3879, 1
    %v3881 = vadd.f32 %v3879, %v3880
    %v3882 = vrcp.pop %v3881
    %v3883 = vmul.f32 %v3870, %v3882
    %v3884 = vmul.f32 %v3872, %v3882
    %3886 = vset.pattern.permute.xlu0 0
    %3887 = vperm.xlu0 %3886, %v3883
    %v3888 = vpop.permute.xlu0 %3887
    %3891 = vset.pattern.permute.xlu0 0
    %3892 = vperm.xlu0 %3891, %v3884
    %v3893 = vpop.permute.xlu0 %3892
    %v3895 = vmul.f32 %v3888, %v1420
    %v3896 = vmul.f32 %v3893, %v1425
    %v3897 = vsel %vm181, %v3895, 0.0
    %v3898 = vsel %vm181, %v3896, 0.0
    %v3899 = vadd.f32 %v3897, %v3898
    %v3900 = vrot.slane %v3899, 4
    %v3901 = vadd.f32 %v3899, %v3900
    %v3902 = vrot.slane %v3901, 2
    %v3903 = vadd.f32 %v3901, %v3902
    %v3904 = vrot.slane %v3903, 1
    %v3905 = vadd.f32 %v3903, %v3904
    %v3906 = vadd.f32 %v3905, %v3837
    %v3907 = vtanh.pop %v3906
    %3908 = vst.msk [vmem:[#allocation3 + $0x7] sm:$0x1] %vm1704, %v3907
    %v3909 = vlaneseq
    %v3910 = vshrl.u32 %v3909, 7
    %v3911 = vsub.s32 7, %v3910
    %v3912 = vrot.slane %v3763, %v3911
    %3914 = vrot.lane.b32.xlu0 %v3912, 32
    %v3915 = vpop.permute.xlu0 %3914
    %v3917 = vmul.f32 %v1341, %v3915
    %v3918 = vmul.f32 %v1342, %v3915
    %v3919 = vsel %vm181, %v3917, 0.0
    %3920 = vadd.xlane.f32.xlu0 %v3919
    %v3921 = vpop.xlane.xlu0 %3920
    %v3922 = vsel %vm181, %v3918, 0.0
    %3923 = vadd.xlane.f32.xlu0 %v3922
    %v3924 = vpop.xlane.xlu0 %3923
    %v3925 = vsel %vm1455, %v3921, -1e+30
    %v3926 = vsel %vm1456, %v3924, -1e+30
    %v3927 = vsel %vm1724, %v3925, -inf
    %v3928 = vsel %vm1724, %v3926, -inf
    %v3929 = vmax.f32 %v3927, %v3928
    %v3930 = vrot.slane %v3929, 4
    %v3931 = vmax.f32 %v3929, %v3930
    %v3932 = vrot.slane %v3931, 2
    %v3933 = vmax.f32 %v3931, %v3932
    %v3934 = vrot.slane %v3933, 1
    %v3935 = vmax.f32 %v3933, %v3934
    %v3936 = vsub.f32 %v3925, %v3935
    %v3937 = vsub.f32 %v3926, %v3935
    %v3938 = vmul.f32 %v3936, 1.442695
    %v3939 = vpow.pop %v3938
    %v3940 = vmul.f32 %v3937, 1.442695
    %v3941 = vpow.pop %v3940
    %v3942 = vsel %vm1724, %v3939, 0.0
    %v3943 = vsel %vm1724, %v3941, 0.0
    %v3944 = vadd.f32 %v3942, %v3943
    %v3945 = vrot.slane %v3944, 4
    %v3946 = vadd.f32 %v3944, %v3945
    %v3947 = vrot.slane %v3946, 2
    %v3948 = vadd.f32 %v3946, %v3947
    %v3949 = vrot.slane %v3948, 1
    %v3950 = vadd.f32 %v3948, %v3949
    %v3951 = vrcp.pop %v3950
    %v3952 = vmul.f32 %v3939, %v3951
    %v3953 = vmul.f32 %v3941, %v3951
    %3955 = vset.pattern.permute.xlu0 1
    %3956 = vperm.xlu0 %3955, %v3952
    %v3957 = vpop.permute.xlu0 %3956
    %3960 = vset.pattern.permute.xlu0 1
    %3961 = vperm.xlu0 %3960, %v3953
    %v3962 = vpop.permute.xlu0 %3961
    %v3964 = vmul.f32 %v3957, %v1420
    %v3965 = vmul.f32 %v3962, %v1425
    %v3966 = vsel %vm181, %v3964, 0.0
    %v3967 = vsel %vm181, %v3965, 0.0
    %v3968 = vadd.f32 %v3966, %v3967
    %v3969 = vrot.slane %v3968, 4
    %v3970 = vadd.f32 %v3968, %v3969
    %v3971 = vrot.slane %v3970, 2
    %v3972 = vadd.f32 %v3970, %v3971
    %v3973 = vrot.slane %v3972, 1
    %v3974 = vadd.f32 %v3972, %v3973
    %v3975 = vadd.f32 %v3974, %v3837
    %v3976 = vtanh.pop %v3975
    %3977 = vst.msk [vmem:[#allocation3 + $0xe] sm:$0x2] %vm1775, %v3976
    %v3978 = vld [vmem:[#allocation3] sm:$0xff]
    %v3979 = vld [vmem:[#allocation3 + $0x8] sm:$0xff]
    %v3980 = vld [vmem:[%s14] sm:$0xff]
    %v3981 = vld [vmem:[%s14 + $0x8] sm:$0xff]
    %v3982 = vld [vmem:[%s14 + $0x10] sm:$0xff]
    %v3983 = vld [vmem:[%s14 + $0x18] sm:$0xff]
    %v3985 = vsel %vm181, %v3978, 0
    %v3988 = vsel %vm181, %v3979, 0
    %3990 = vmatprep.subr.mxu0 0.0
    %3991 = vmatpush1.msra.mxu0 0.0
    %3992 = vmatprep.subr.mxu0 0.0
    %3993 = vmatpush1.msra.mxu0 0.0
    %3994 = vmatprep.subr.mxu0 0.0
    %3995 = vmatpush1.msra.mxu0 0.0
    %3996 = vmatprep.subr.mxu0 0.0
    %3997 = vmatpush1.msra.mxu0 0.0
    %3998 = vmatprep.subr.mxu0 0.0
    %3999 = vmatpush1.msra.mxu0 0.0
    %4000 = vmatprep.subr.mxu0 0.0
    %4001 = vmatpush1.msra.mxu0 0.0
    %4002 = vmatprep.subr.mxu0 0.0
    %4003 = vmatpush1.msra.mxu0 0.0
    %4004 = vmatprep.subr.mxu0 0.0
    %4005 = vmatpush1.msra.mxu0 0.0
    %4006 = vmatprep.subr.mxu0 0.0
    %4007 = vmatpush1.msra.mxu0 0.0
    %4008 = vmatprep.subr.mxu0 0.0
    %4009 = vmatpush1.msra.mxu0 0.0
    %4010 = vmatprep.subr.mxu0 0.0
    %4011 = vmatpush1.msra.mxu0 0.0
    %4012 = vmatprep.subr.mxu0 0.0
    %4013 = vmatpush1.msra.mxu0 0.0
    %4014 = vmatprep.subr.mxu0 0.0
    %4015 = vmatpush1.msra.mxu0 %v3983
    %4016 = vmatprep.subr.mxu0 0.0
    %4017 = vmatpush1.msra.mxu0 %v3982
    %4018 = vmatprep.subr.mxu0 0.0
    %4019 = vmatpush1.msra.mxu0 %v3981
    %4020 = vmatprep.subr.mxu0 0.0
    %4021 = vmatpush1.msra.mxu0 %v3980
    %4022 = vmatprep.subr.mxu0 0.0
    %4023 = vmatpush2.msra.mxu0 0.0
    %4024 = vmatprep.subr.mxu0 0.0
    %4025 = vmatpush2.msra.mxu0 0.0
    %4026 = vmatprep.subr.mxu0 0.0
    %4027 = vmatpush2.msra.mxu0 0.0
    %4028 = vmatprep.subr.mxu0 0.0
    %4029 = vmatpush2.msra.mxu0 0.0
    %4030 = vmatprep.subr.mxu0 0.0
    %4031 = vmatpush2.msra.mxu0 0.0
    %4032 = vmatprep.subr.mxu0 0.0
    %4033 = vmatpush2.msra.mxu0 0.0
    %4034 = vmatprep.subr.mxu0 0.0
    %4035 = vmatpush2.msra.mxu0 0.0
    %4036 = vmatprep.subr.mxu0 0.0
    %4037 = vmatpush2.msra.mxu0 0.0
    %4038 = vmatprep.subr.mxu0 0.0
    %4039 = vmatpush2.msra.mxu0 0.0
    %4040 = vmatprep.subr.mxu0 0.0
    %4041 = vmatpush2.msra.mxu0 0.0
    %4042 = vmatprep.subr.mxu0 0.0
    %4043 = vmatpush2.msra.mxu0 0.0
    %4044 = vmatprep.subr.mxu0 0.0
    %4045 = vmatpush2.msra.mxu0 0.0
    %4046 = vmatprep.subr.mxu0 0.0
    %4047 = vmatpush2.msra.mxu0 0.0
    %4048 = vmatprep.subr.mxu0 0.0
    %4049 = vmatpush2.msra.mxu0 0.0
    %4050 = vmatprep.subr.mxu0 0.0
    %4051 = vmatpush2.msra.mxu0 0.0
    %4052 = vmatprep.subr.mxu0 0.0
    %4053 = vmatpush2.msra.mxu0 0.0
    %4054 = vmatprep.mubr.f32.mxu0 0.0
    %4055 = vmatmul.mubr.f32.gmra.mxu0 %v3985
    %v4056 = vpop.f32.mrf.mxu0
    %v4057 = vadd.f32 0.0, %v4056
    %v4058 = vpop.f32.mrf.mxu0
    %4059 = vmatprep.mubr.f32.mxu0 0.0
    %4060 = vmatmul.mubr.f32.gmra.mxu0 %v3988
    %v4061 = vpop.f32.mrf.mxu0
    %v4062 = vadd.f32 0.0, %v4061
    %v4063 = vpop.f32.mrf.mxu0
    %4064 = vdwg.mxu0
    %4065 = vst [vmem:[#allocation4] sm:$0xff] %v4057
    %s4066 = scalar_lea.vmem [#allocation4], 8
    %4067 = vst [vmem:[%s4066] sm:$0xff] %v4062
    // Predicated region
    $region62: #{seq2seq_forward.1} parent=1 // pred_check
      _
    $region63: #{seq2seq_forward.1} parent=1 // pred_check_branch
      %4069 = sbr.rel (0) target = $region65
    $region64: #{seq2seq_forward.1} parent=1 // pred_region
      %s4071 = ssub.s32 256, 256
      %4072 = vsyncadd [#allocation5], %s4071
      %s4073 = sshll.u32 [#allocation4], 4
      %s4074 = int_to_ptr.vmem [resolvable:$true] %s4073
      %4079 = dma.vmem_to_hbm [thread:$0]  %s4074, 256, %s15, [#allocation5], 128, 128, 8
    $region65: #{seq2seq_forward.1} parent=1 // pred_fallthru
      _
    // Predicated region
    $region66: #{seq2seq_forward.1} parent=1 // pred_check
      _
    $region67: #{seq2seq_forward.1} parent=1 // pred_check_branch
      %4081 = sbr.rel (0) target = $region69
    $region68: #{seq2seq_forward.1} parent=1 // pred_region
      %4082 = dma.done [#allocation5], 256
    $region69: #{seq2seq_forward.1} parent=1 // pred_fallthru
      _
    %4083 = vsyncpa [#allocation5], 1

</llo_original>
